<compile_context>
chip_gen: v5e
topology: v5e:2x2
jax: 0.10.0
libtpu: 0.0.40
codegen_flags: <defaults>
</compile_context>

<pallas_src>
import jax
import jax.numpy as jnp
from jax import lax
from jax.experimental import pallas as pl
from jax.experimental.pallas import tpu as pltpu

# -----------------------------------------------------------------------------
# ResNet34 feature extractor (plain JAX glue; eval-mode batch norm)
# TODO(synk): the torchvision resnet34 backbone is an external dependency; its
# convolutions run through lax.conv_general_dilated (XLA), not Pallas.  It dominates
# end-to-end FLOPs (~3.6 GFLOP/image vs ~35 MFLOP/image for the head).
# -----------------------------------------------------------------------------

RESNET34_CFG = (  # (in_ch, out_ch, num_blocks, first_stride)
    (64, 64, 3, 1),
    (64, 128, 4, 2),
    (128, 256, 6, 2),
    (256, 512, 3, 2),
)


class _KeyGen:
    def __init__(self, key):
        self._key = key

    def __call__(self):
        self._key, sub = jax.random.split(self._key)
        return sub


def _kaiming_conv(key, out_c, in_c, kh, kw):
    fan_out = out_c * kh * kw
    return jax.random.normal(key, (out_c, in_c, kh, kw), jnp.float32) * jnp.sqrt(
        2.0 / fan_out
    )


def _make_bn(c):
    return dict(
        gamma=jnp.ones((c,), jnp.float32),
        beta=jnp.zeros((c,), jnp.float32),
        mean=jnp.zeros((c,), jnp.float32),
        var=jnp.ones((c,), jnp.float32),
    )


def _conv2d(x, w, stride=1, padding=0):
    return lax.conv_general_dilated(
        x,
        w,
        window_strides=(stride, stride),
        padding=[(padding, padding), (padding, padding)],
        dimension_numbers=("NCHW", "OIHW", "NCHW"),
    )


def _batchnorm(x, p, eps=1e-5):
    g = p["gamma"].reshape(1, -1, 1, 1)
    b = p["beta"].reshape(1, -1, 1, 1)
    m = p["mean"].reshape(1, -1, 1, 1)
    v = p["var"].reshape(1, -1, 1, 1)
    return (x - m) * g / jnp.sqrt(v + eps) + b


def _maxpool_3x3_s2(x):
    return lax.reduce_window(
        x,
        -jnp.inf,
        lax.max,
        (1, 1, 3, 3),
        (1, 1, 2, 2),
        [(0, 0), (0, 0), (1, 1), (1, 1)],
    )


def build_backbone_params(key):
    kg = _KeyGen(key)
    params = {
        "conv1": _kaiming_conv(kg(), 64, 3, 7, 7),
        "bn1": _make_bn(64),
        "layers": [],
    }
    for in_c, out_c, n_blocks, stride in RESNET34_CFG:
        blocks = []
        for i in range(n_blocks):
            s = stride if i == 0 else 1
            ic = in_c if i == 0 else out_c
            blk = dict(
                conv1=_kaiming_conv(kg(), out_c, ic, 3, 3),
                bn1=_make_bn(out_c),
                conv2=_kaiming_conv(kg(), out_c, out_c, 3, 3),
                bn2=_make_bn(out_c),
            )
            if s != 1 or ic != out_c:
                blk["down_conv"] = _kaiming_conv(kg(), out_c, ic, 1, 1)
                blk["down_bn"] = _make_bn(out_c)
            blocks.append(blk)
        params["layers"].append(blocks)
    return params


def _basic_block(x, blk, stride):
    identity = x
    out = _conv2d(x, blk["conv1"], stride=stride, padding=1)
    out = jax.nn.relu(_batchnorm(out, blk["bn1"]))
    out = _conv2d(out, blk["conv2"], stride=1, padding=1)
    out = _batchnorm(out, blk["bn2"])
    if "down_conv" in blk:
        identity = _batchnorm(
            _conv2d(x, blk["down_conv"], stride=stride, padding=0), blk["down_bn"]
        )
    return jax.nn.relu(out + identity)


def resnet34_features(params, x):
    # x: (B, 3, 224, 224) -> (B, 512, 7, 7)
    x = _conv2d(x, params["conv1"], stride=2, padding=3)
    x = jax.nn.relu(_batchnorm(x, params["bn1"]))
    x = _maxpool_3x3_s2(x)
    for (_, _, n_blocks, stride), blocks in zip(RESNET34_CFG, params["layers"]):
        for i in range(n_blocks):
            s = stride if i == 0 else 1
            x = _basic_block(x, blocks[i], s)
    return x


# -----------------------------------------------------------------------------
# Pallas kernel: Self_Attn (fused 1x1 Q/K, 1x1 V, block-diag softmax attention,
# gamma*out + x) fused with AvgPool2d(7) and the final Linear(512 -> 125/128pad).
# -----------------------------------------------------------------------------

def attn_head_kernel(x_ref, wqk_ref, bqk_ref, wv_ref, bv_ref, bias_ref, pool_ref,
                     gamma_ref, wfc_ref, bfc_ref, logits_ref, feat_ref):
    C8 = wqk_ref.shape[1] // 2

    x32 = x_ref[0]                                    # (M, C) f32, M = Bt*49
    x_bf = x32.astype(jnp.bfloat16)                   # bf16 copy for MXU operands

    # fused 1x1 Q/K projection: one lane-dense 128-wide bf16 matmul on the flat slab
    qk = jnp.dot(x_bf, wqk_ref[...], preferred_element_type=jnp.float32) + bqk_ref[...]
    qk_bf = qk.astype(jnp.bfloat16)                   # cast once, then lane-64 split
    q = qk_bf[:, :C8]                                 # (M, 64) bf16
    k = qk_bf[:, C8:]                                 # (M, 64) bf16

    # 1x1 V projection (bf16 MXU inputs, f32 accumulation), bf16 copy for attn@v
    v = jnp.dot(x_bf, wv_ref[...], preferred_element_type=jnp.float32) + bv_ref[...]
    v_bf = v.astype(jnp.bfloat16)

    # energy[i, j] = <q_i, k_j> as a bf16 MXU matmul with f32 accumulation.
    # The block-diagonal mask (0 inside each image's 49x49 block, -1e30 across images)
    # is added AFTER the matmul, in f32, so masked entries stay finite and the softmax
    # stays per-image while the matmuls use the full flat slab.
    energy = lax.dot_general(q, k, (((1,), (1,)), ((), ())),
                             preferred_element_type=jnp.float32) + bias_ref[...]
    energy = energy - jnp.max(energy, axis=-1, keepdims=True)      # f32
    p = jnp.exp(energy)
    attn = p * pl.reciprocal(jnp.sum(p, axis=-1, keepdims=True), approx=True)

    # out = attn @ v  (== torch.bmm(V, attention.permute(0,2,1)) in (N, C) layout),
    # bf16 operands, f32 accumulation; residual add stays f32 on the un-rounded x.
    out = jnp.dot(attn.astype(jnp.bfloat16), v_bf,
                  preferred_element_type=jnp.float32)              # (M, C) f32
    out = gamma_ref[0] * out + x32                                 # gamma*out + x

    # AvgPool2d(7, stride=1) on a 7x7 map == per-image mean over the 49 positions,
    # expressed as a small MXU dot with a block-diagonal (1/49) matrix (f32: tiny,
    # and keeps the pooled attn_feature at full precision).
    pooled = jnp.dot(pool_ref[...], out, preferred_element_type=jnp.float32)  # (Bt, C)
    feat_ref[0] = pooled

    # fc: (Bt, C) @ (C, 128) + (1, 128)  (output padded 125 -> 128 lanes; pad cols are 0)
    logits_ref[0] = (
        jnp.dot(pooled.astype(jnp.bfloat16), wfc_ref[...],
                preferred_element_type=jnp.float32) + bfc_ref[...]
    )


def build_head_params(key):
    C, C8, OUT = 512, 64, 125
    ks = jax.random.split(key, 8)

    def u(k, shape, fan_in):
        bound = 1.0 / jnp.sqrt(fan_in)
        return jax.random.uniform(k, shape, jnp.float32, -bound, bound)

    return dict(
        wq=u(ks[0], (C8, C), C), bq=u(ks[1], (C8,), C),
        wk=u(ks[2], (C8, C), C), bk=u(ks[3], (C8,), C),
        wv=u(ks[4], (C, C), C), bv=u(ks[5], (C,), C),
        gamma=jnp.zeros((1,), jnp.float32),
        wfc=u(ks[6], (OUT, C), C), bfc=u(ks[7], (OUT,), C),
    )


def attn_head(feat_map, hp, *, block_b=None):
    B, C, H, W = feat_map.shape
    N = H * W                                   # 49
    C8 = hp["wq"].shape[0]                      # 64
    OUT = hp["wfc"].shape[0]                    # 125
    OUT_PAD = 128                               # lane-dense fc output

    if block_b is None:
        # block_b images share one grid step (amortizes ~0.35us/step and widens the
        # projection matmuls), but the flat block-diagonal attention wastes
        # O(block_b^2) exp / XLU-reduce / MXU work, so cap at 2 (pinned for v5e;
        # conservative default for v6e/v7x -- raise only if profiling shows the MXU,
        # not the EUP/XLU, is the binding unit).
        block_b = max(1, min(2, B))
    G = pl.cdiv(B, block_b)
    if G > 1 and G % 2 == 1:
        # keep the "parallel" grid axis even so v7x's two TensorCores stay balanced;
        # the extra dummy step runs on zero-padded images (~0.2us) and is sliced off.
        G += 1
    B_pad = G * block_b
    M = block_b * N

    # (B, C, H, W) -> (B, N, C): channels on the lane axis inside the kernel.
    # x stays f32 into the kernel so the residual/pooled feature keep full precision.
    # TODO(synk): emitting the last backbone stage channels-last would avoid this
    # wrapper-side transpose copy (pure layout plumbing handled by XLA today).
    xt = feat_map.reshape(B, C, N).transpose(0, 2, 1)
    if B_pad != B:
        xt = jnp.pad(xt, ((0, B_pad - B), (0, 0), (0, 0)))
    x3 = xt.reshape(G, M, C)

    # fused Q/K weight (C, 128), value weight (C, C), padded fc weight (C, 128)
    wqk = jnp.concatenate([hp["wq"], hp["wk"]], axis=0).T.astype(jnp.bfloat16)
    bqk = jnp.concatenate([hp["bq"], hp["bk"]]).reshape(1, 2 * C8)
    wv_t = hp["wv"].T.astype(jnp.bfloat16)
    bv = hp["bv"].reshape(1, C)
    wfc_t = jnp.pad(hp["wfc"].T, ((0, 0), (0, OUT_PAD - OUT))).astype(jnp.bfloat16)
    bfc = jnp.pad(hp["bfc"], (0, OUT_PAD - OUT)).reshape(1, OUT_PAD)
    gamma = hp["gamma"]                         # (1,) -> SMEM scalar

    # block-diagonal additive attention mask and 1/49 pooling matrix (static consts;
    # at block_b=2 the mask is only ~38 KB, well inside the double-buffered VMEM budget)
    eye_b = jnp.eye(block_b, dtype=jnp.float32)
    attn_bias = jnp.kron(1.0 - eye_b, jnp.full((N, N), -1e30, jnp.float32))   # (M, M)
    pool_mat = jnp.kron(eye_b, jnp.full((1, N), 1.0 / N, jnp.float32))        # (Bt, M)

    # advisory cost estimate so XLA can overlap the head with the backbone tail
    flops_per_step = (
        2 * M * C * (2 * C8)        # fused Q/K projection
        + 2 * M * C * C             # V projection
        + 2 * M * M * C8            # energy
        + 2 * M * M * C             # attn @ v
        + 2 * block_b * M * C       # pooling
        + 2 * block_b * C * OUT_PAD # fc
    )
    cost = pl.CostEstimate(
        flops=G * flops_per_step,
        transcendentals=G * (M * M + M),
        bytes_accessed=(
            G * (M * C * 4 + block_b * (OUT_PAD + C) * 4)
            + (wqk.size + wv_t.size + wfc_t.size) * 2
            + (attn_bias.size + pool_mat.size + bqk.size + bv.size + bfc.size) * 4
        ),
    )

    const = lambda g: (0, 0)
    grid_spec = pltpu.PrefetchScalarGridSpec(
        num_scalar_prefetch=0,
        grid=(G,),
        in_specs=[
            pl.BlockSpec((1, M, C), lambda g: (g, 0, 0)),   # x slab (f32)
            pl.BlockSpec((C, 2 * C8), const),               # wqk (bf16)
            pl.BlockSpec((1, 2 * C8), const),               # bqk
            pl.BlockSpec((C, C), const),                    # wv (bf16)
            pl.BlockSpec((1, C), const),                    # bv
            pl.BlockSpec((M, M), const),                    # attn bias (block-diag)
            pl.BlockSpec((block_b, M), const),              # pooling matrix
            pl.BlockSpec(memory_space=pltpu.MemorySpace.SMEM),  # gamma scalar
            pl.BlockSpec((C, OUT_PAD), const),              # wfc (padded, bf16)
            pl.BlockSpec((1, OUT_PAD), const),              # bfc (padded)
        ],
        out_specs=[
            pl.BlockSpec((1, block_b, OUT_PAD), lambda g: (g, 0, 0)),
            pl.BlockSpec((1, block_b, C), lambda g: (g, 0, 0)),
        ],
    )
    logits, feat = pl.pallas_call(
        attn_head_kernel,
        out_shape=(
            jax.ShapeDtypeStruct((G, block_b, OUT_PAD), jnp.float32),
            jax.ShapeDtypeStruct((G, block_b, C), jnp.float32),
        ),
        grid_spec=grid_spec,
        compiler_params=pltpu.CompilerParams(dimension_semantics=("parallel",)),
        cost_estimate=cost,
    )(x3, wqk, bqk, wv_t, bv, attn_bias, pool_mat, gamma, wfc_t, bfc)

    logits = logits.reshape(B_pad, OUT_PAD)[:B, :OUT]
    feat = feat.reshape(B_pad, C)[:B]
    return logits, feat


# -----------------------------------------------------------------------------
# Full forward:  (logits, attn_feature)  ==  ResNet34_Attn_Single.forward(x)
# -----------------------------------------------------------------------------

@jax.jit
def forward(backbone_params, head_params, x):
    feat_map = resnet34_features(backbone_params, x)      # (B, 512, 7, 7)
    logits, attn_feature = attn_head(feat_map, head_params)
    return logits, attn_feature


if __name__ == "__main__":
    key = jax.random.PRNGKey(0)
    k_bb, k_head, k_x = jax.random.split(key, 3)

    backbone_params = build_backbone_params(k_bb)
    head_params = build_head_params(k_head)

    # ResNet34 + AvgPool2d(7) requires a 224x224 input (-> 7x7 feature map).
    # B=4 exercises the multi-image-per-step head path (block_b=2, grid=(2,)).
    x = jax.random.normal(k_x, (4, 3, 224, 224), jnp.float32)

    logits, attn_feature = forward(backbone_params, head_params, x)
    jax.block_until_ready((logits, attn_feature))

    assert logits.shape == (4, 125), logits.shape
    assert attn_feature.shape == (4, 512), attn_feature.shape
    assert bool(jnp.all(jnp.isfinite(logits))) and bool(jnp.all(jnp.isfinite(attn_feature)))
    print("KERNEL_OK")
</pallas_src>

<mosaic_0001>
module attributes {stable_mosaic.version = 11 : i64} {
  func.func @attn_head_kernel(%arg0: i32, %arg1: memref<1x98x512xf32, #tpu.memory_space<vmem>>, %arg2: memref<512x128xbf16, #tpu.memory_space<vmem>>, %arg3: memref<1x128xf32, #tpu.memory_space<vmem>>, %arg4: memref<512x512xbf16, #tpu.memory_space<vmem>>, %arg5: memref<1x512xf32, #tpu.memory_space<vmem>>, %arg6: memref<98x98xf32, #tpu.memory_space<vmem>>, %arg7: memref<2x98xf32, #tpu.memory_space<vmem>>, %arg8: memref<1xf32, #tpu.memory_space<smem>>, %arg9: memref<512x128xbf16, #tpu.memory_space<vmem>>, %arg10: memref<1x128xf32, #tpu.memory_space<vmem>>, %arg11: memref<1x2x128xf32, #tpu.memory_space<vmem>>, %arg12: memref<1x2x512xf32, #tpu.memory_space<vmem>>) attributes {dimension_semantics = [#tpu.dimension_semantics<parallel>], iteration_bounds = array<i64: 2>, scalar_prefetch = 0 : i64, scratch_operands = 0 : i64, tpu.core_type = #tpu.core_type<tc>, window_params = [{transform_indices = @transform_0, window_bounds = array<i64: 1, 98, 512>}, {pipeline_mode = #tpu.pipeline_mode<synchronous>, transform_indices = @transform_1, window_bounds = array<i64: 512, 128>}, {pipeline_mode = #tpu.pipeline_mode<synchronous>, transform_indices = @transform_2, window_bounds = array<i64: 1, 128>}, {pipeline_mode = #tpu.pipeline_mode<synchronous>, transform_indices = @transform_3, window_bounds = array<i64: 512, 512>}, {pipeline_mode = #tpu.pipeline_mode<synchronous>, transform_indices = @transform_4, window_bounds = array<i64: 1, 512>}, {pipeline_mode = #tpu.pipeline_mode<synchronous>, transform_indices = @transform_5, window_bounds = array<i64: 98, 98>}, {pipeline_mode = #tpu.pipeline_mode<synchronous>, transform_indices = @transform_6, window_bounds = array<i64: 2, 98>}, {transform_indices = @transform_7, window_bounds = array<i64: 1>}, {pipeline_mode = #tpu.pipeline_mode<synchronous>, transform_indices = @transform_8, window_bounds = array<i64: 512, 128>}, {pipeline_mode = #tpu.pipeline_mode<synchronous>, transform_indices = @transform_9, window_bounds = array<i64: 1, 128>}, {transform_indices = @transform_10, window_bounds = array<i64: 1, 2, 128>}, {transform_indices = @transform_11, window_bounds = array<i64: 1, 2, 512>}]} {
    %c0 = arith.constant 0 : index
    %c0_0 = arith.constant 0 : index
    %c0_1 = arith.constant 0 : index
    %0 = vector.load %arg1[%c0, %c0_0, %c0_1] : memref<1x98x512xf32, #tpu.memory_space<vmem>>, vector<1x98x512xf32>
    %1 = vector.shape_cast %0 : vector<1x98x512xf32> to vector<98x512xf32>
    %2 = arith.truncf %1 : vector<98x512xf32> to vector<98x512xbf16>
    %c0_2 = arith.constant 0 : index
    %c0_3 = arith.constant 0 : index
    %3 = vector.load %arg2[%c0_2, %c0_3] : memref<512x128xbf16, #tpu.memory_space<vmem>>, vector<512x128xbf16>
    %cst = arith.constant dense<0.000000e+00> : vector<98x128xf32>
    %4 = tpu.matmul %2, %3, %cst {dimension_numbers = #tpu.dot_dimension_numbers<[1], [0], [0], [1], [0, 0, 1, 1], [], []>} : vector<98x512xbf16>, vector<512x128xbf16>, vector<98x128xf32> -> vector<98x128xf32>
    %c0_4 = arith.constant 0 : index
    %c0_5 = arith.constant 0 : index
    %5 = vector.load %arg3[%c0_4, %c0_5] : memref<1x128xf32, #tpu.memory_space<vmem>>, vector<1x128xf32>
    %6 = vector.broadcast %5 : vector<1x128xf32> to vector<98x128xf32>
    %7 = arith.addf %4, %6 : vector<98x128xf32>
    %8 = arith.truncf %7 : vector<98x128xf32> to vector<98x128xbf16>
    %9 = vector.extract_strided_slice %8 {offsets = [0, 0], sizes = [98, 64], strides = [1, 1]} : vector<98x128xbf16> to vector<98x64xbf16>
    %10 = vector.extract_strided_slice %8 {offsets = [0, 64], sizes = [98, 64], strides = [1, 1]} : vector<98x128xbf16> to vector<98x64xbf16>
    %c0_6 = arith.constant 0 : index
    %c0_7 = arith.constant 0 : index
    %11 = vector.load %arg4[%c0_6, %c0_7] : memref<512x512xbf16, #tpu.memory_space<vmem>>, vector<512x512xbf16>
    %cst_8 = arith.constant dense<0.000000e+00> : vector<98x512xf32>
    %12 = tpu.matmul %2, %11, %cst_8 {dimension_numbers = #tpu.dot_dimension_numbers<[1], [0], [0], [1], [0, 0, 1, 1], [], []>} : vector<98x512xbf16>, vector<512x512xbf16>, vector<98x512xf32> -> vector<98x512xf32>
    %c0_9 = arith.constant 0 : index
    %c0_10 = arith.constant 0 : index
    %13 = vector.load %arg5[%c0_9, %c0_10] : memref<1x512xf32, #tpu.memory_space<vmem>>, vector<1x512xf32>
    %14 = vector.broadcast %13 : vector<1x512xf32> to vector<98x512xf32>
    %15 = arith.addf %12, %14 : vector<98x512xf32>
    %16 = arith.truncf %15 : vector<98x512xf32> to vector<98x512xbf16>
    %cst_11 = arith.constant dense<0.000000e+00> : vector<98x98xf32>
    %17 = tpu.matmul %9, %10, %cst_11 {dimension_numbers = #tpu.dot_dimension_numbers<[1], [1], [0], [0], [0, 0, 1, 0], [], []>} : vector<98x64xbf16>, vector<98x64xbf16>, vector<98x98xf32> -> vector<98x98xf32>
    %c0_12 = arith.constant 0 : index
    %c0_13 = arith.constant 0 : index
    %18 = vector.load %arg6[%c0_12, %c0_13] : memref<98x98xf32, #tpu.memory_space<vmem>>, vector<98x98xf32>
    %19 = arith.addf %17, %18 : vector<98x98xf32>
    %cst_14 = arith.constant dense<0xFF800000> : vector<98xf32>
    %20 = vector.multi_reduction <maximumf>, %19, %cst_14 [1] : vector<98x98xf32> to vector<98xf32>
    %21 = vector.shape_cast %20 : vector<98xf32> to vector<98x1xf32>
    %22 = vector.broadcast %21 : vector<98x1xf32> to vector<98x98xf32>
    %23 = arith.subf %19, %22 : vector<98x98xf32>
    %24 = math.exp %23 : vector<98x98xf32>
    %cst_15 = arith.constant dense<0.000000e+00> : vector<98xf32>
    %25 = vector.multi_reduction <add>, %24, %cst_15 [1] : vector<98x98xf32> to vector<98xf32>
    %26 = vector.shape_cast %25 : vector<98xf32> to vector<98x1xf32>
    %27 = tpu.reciprocal %26 {approx = true} : vector<98x1xf32> -> vector<98x1xf32>
    %28 = vector.broadcast %27 : vector<98x1xf32> to vector<98x98xf32>
    %29 = arith.mulf %24, %28 : vector<98x98xf32>
    %30 = arith.truncf %29 : vector<98x98xf32> to vector<98x98xbf16>
    %cst_16 = arith.constant dense<0.000000e+00> : vector<98x512xf32>
    %31 = tpu.matmul %30, %16, %cst_16 {dimension_numbers = #tpu.dot_dimension_numbers<[1], [0], [0], [1], [0, 0, 1, 1], [], []>} : vector<98x98xbf16>, vector<98x512xbf16>, vector<98x512xf32> -> vector<98x512xf32>
    %c0_17 = arith.constant 0 : index
    %32 = memref.load %arg8[%c0_17] : memref<1xf32, #tpu.memory_space<smem>>
    %33 = vector.broadcast %32 : f32 to vector<98x512xf32>
    %34 = arith.mulf %33, %31 : vector<98x512xf32>
    %35 = arith.addf %34, %1 : vector<98x512xf32>
    %c0_18 = arith.constant 0 : index
    %c0_19 = arith.constant 0 : index
    %36 = vector.load %arg7[%c0_18, %c0_19] : memref<2x98xf32, #tpu.memory_space<vmem>>, vector<2x98xf32>
    %cst_20 = arith.constant dense<0.000000e+00> : vector<2x512xf32>
    %37 = tpu.matmul %36, %35, %cst_20 {dimension_numbers = #tpu.dot_dimension_numbers<[1], [0], [0], [1], [0, 0, 1, 1], [], []>} : vector<2x98xf32>, vector<98x512xf32>, vector<2x512xf32> -> vector<2x512xf32>
    %c0_21 = arith.constant 0 : index
    %c0_22 = arith.constant 0 : index
    %c0_23 = arith.constant 0 : index
    %38 = vector.load %arg12[%c0_21, %c0_22, %c0_23] : memref<1x2x512xf32, #tpu.memory_space<vmem>>, vector<1x2x512xf32>
    %39 = vector.shape_cast %38 : vector<1x2x512xf32> to vector<2x512xf32>
    %40 = vector.shape_cast %37 : vector<2x512xf32> to vector<1x2x512xf32>
    tpu.vector_store %arg12[%c0_21, %c0_22, %c0_23], %40 {strides = array<i32>} : memref<1x2x512xf32, #tpu.memory_space<vmem>>, vector<1x2x512xf32>,
    %41 = arith.truncf %37 : vector<2x512xf32> to vector<2x512xbf16>
    %c0_24 = arith.constant 0 : index
    %c0_25 = arith.constant 0 : index
    %42 = vector.load %arg9[%c0_24, %c0_25] : memref<512x128xbf16, #tpu.memory_space<vmem>>, vector<512x128xbf16>
    %cst_26 = arith.constant dense<0.000000e+00> : vector<2x128xf32>
    %43 = tpu.matmul %41, %42, %cst_26 {dimension_numbers = #tpu.dot_dimension_numbers<[1], [0], [0], [1], [0, 0, 1, 1], [], []>} : vector<2x512xbf16>, vector<512x128xbf16>, vector<2x128xf32> -> vector<2x128xf32>
    %c0_27 = arith.constant 0 : index
    %c0_28 = arith.constant 0 : index
    %44 = vector.load %arg10[%c0_27, %c0_28] : memref<1x128xf32, #tpu.memory_space<vmem>>, vector<1x128xf32>
    %45 = vector.broadcast %44 : vector<1x128xf32> to vector<2x128xf32>
    %46 = arith.addf %43, %45 : vector<2x128xf32>
    %c0_29 = arith.constant 0 : index
    %c0_30 = arith.constant 0 : index
    %c0_31 = arith.constant 0 : index
    %47 = vector.load %arg11[%c0_29, %c0_30, %c0_31] : memref<1x2x128xf32, #tpu.memory_space<vmem>>, vector<1x2x128xf32>
    %48 = vector.shape_cast %47 : vector<1x2x128xf32> to vector<2x128xf32>
    %49 = vector.shape_cast %46 : vector<2x128xf32> to vector<1x2x128xf32>
    tpu.vector_store %arg11[%c0_29, %c0_30, %c0_31], %49 {strides = array<i32>} : memref<1x2x128xf32, #tpu.memory_space<vmem>>, vector<1x2x128xf32>,
    return
  }
  func.func @transform_0(%arg0: i32) -> (i32, i32, i32) {
    %c0_i32 = arith.constant 0 : i32
    %c0_i32_0 = arith.constant 0 : i32
    %c0_i32_1 = arith.constant 0 : i32
    return %arg0, %c0_i32, %c0_i32_0 : i32, i32, i32
  }
  func.func @transform_1(%arg0: i32) -> (i32, i32) {
    %c0_i32 = arith.constant 0 : i32
    %c0_i32_0 = arith.constant 0 : i32
    %c0_i32_1 = arith.constant 0 : i32
    return %c0_i32, %c0_i32_0 : i32, i32
  }
  func.func @transform_2(%arg0: i32) -> (i32, i32) {
    %c0_i32 = arith.constant 0 : i32
    %c0_i32_0 = arith.constant 0 : i32
    %c0_i32_1 = arith.constant 0 : i32
    return %c0_i32, %c0_i32_0 : i32, i32
  }
  func.func @transform_3(%arg0: i32) -> (i32, i32) {
    %c0_i32 = arith.constant 0 : i32
    %c0_i32_0 = arith.constant 0 : i32
    %c0_i32_1 = arith.constant 0 : i32
    return %c0_i32, %c0_i32_0 : i32, i32
  }
  func.func @transform_4(%arg0: i32) -> (i32, i32) {
    %c0_i32 = arith.constant 0 : i32
    %c0_i32_0 = arith.constant 0 : i32
    %c0_i32_1 = arith.constant 0 : i32
    return %c0_i32, %c0_i32_0 : i32, i32
  }
  func.func @transform_5(%arg0: i32) -> (i32, i32) {
    %c0_i32 = arith.constant 0 : i32
    %c0_i32_0 = arith.constant 0 : i32
    %c0_i32_1 = arith.constant 0 : i32
    return %c0_i32, %c0_i32_0 : i32, i32
  }
  func.func @transform_6(%arg0: i32) -> (i32, i32) {
    %c0_i32 = arith.constant 0 : i32
    %c0_i32_0 = arith.constant 0 : i32
    %c0_i32_1 = arith.constant 0 : i32
    return %c0_i32, %c0_i32_0 : i32, i32
  }
  func.func @transform_7(%arg0: i32) -> i32 {
    %c0_i32 = arith.constant 0 : i32
    %c0_i32_0 = arith.constant 0 : i32
    return %c0_i32 : i32
  }
  func.func @transform_8(%arg0: i32) -> (i32, i32) {
    %c0_i32 = arith.constant 0 : i32
    %c0_i32_0 = arith.constant 0 : i32
    %c0_i32_1 = arith.constant 0 : i32
    return %c0_i32, %c0_i32_0 : i32, i32
  }
  func.func @transform_9(%arg0: i32) -> (i32, i32) {
    %c0_i32 = arith.constant 0 : i32
    %c0_i32_0 = arith.constant 0 : i32
    %c0_i32_1 = arith.constant 0 : i32
    return %c0_i32, %c0_i32_0 : i32, i32
  }
  func.func @transform_10(%arg0: i32) -> (i32, i32, i32) {
    %c0_i32 = arith.constant 0 : i32
    %c0_i32_0 = arith.constant 0 : i32
    %c0_i32_1 = arith.constant 0 : i32
    return %arg0, %c0_i32, %c0_i32_0 : i32, i32, i32
  }
  func.func @transform_11(%arg0: i32) -> (i32, i32, i32) {
    %c0_i32 = arith.constant 0 : i32
    %c0_i32_0 = arith.constant 0 : i32
    %c0_i32_1 = arith.constant 0 : i32
    return %arg0, %c0_i32, %c0_i32_0 : i32, i32, i32
  }
}

</mosaic_0001>

<llo_original>
// kernel: forward.1
$region0: #{forward.1}
  #allocation0 [shape = 'u32[]', space=smem, size = 0x4, offset = 0x4, fixed_abs, tag = 'smem constant byte address 0x4 - core index']
  #allocation1 [shape = 'u32[72,128]{1,0:T(1,128)}', space=vmem, size = 0x9000, scoped, tag = 'internal scratch']
  #allocation2 [shape = 'f32[1]{0:T(128)S(6)}', space=smem, size = 0x200, scoped, tag = 'scoped memory for forward.1']
  %s0 = inlined_call_operand.vmem [shape: f32[2,98,512], index: 0, kind: input, shape index: {}]
  %s1 = inlined_call_operand.vmem [shape: bf16[512,128], index: 1, kind: input, shape index: {}]
  %s2 = inlined_call_operand.vmem [shape: f32[1,128], index: 2, kind: input, shape index: {}]
  %s3 = inlined_call_operand.vmem [shape: bf16[512,512], index: 3, kind: input, shape index: {}]
  %s4 = inlined_call_operand.vmem [shape: f32[1,512], index: 4, kind: input, shape index: {}]
  %s5 = inlined_call_operand.vmem [shape: f32[98,98], index: 5, kind: input, shape index: {}]
  %s6 = inlined_call_operand.vmem [shape: f32[2,98], index: 6, kind: input, shape index: {}]
  %s7 = inlined_call_operand.<no memory space> [shape: f32[1], index: 7, kind: input, shape index: {}]
  %s8 = inlined_call_operand.vmem [shape: bf16[512,128], index: 8, kind: input, shape index: {}]
  %s9 = inlined_call_operand.vmem [shape: f32[1,128], index: 9, kind: input, shape index: {}]
  %s10 = inlined_call_operand.hbm [shape: f32[2,2,128], index: 10, kind: output, shape index: {0}]
  %s11 = inlined_call_operand.vmem [shape: f32[2,2,512], index: 11, kind: output, shape index: {1}]
  %12 = xla_tuple %s10, %s11
  %s13 = sld [smem:[#allocation0]]
  $region81: #{forward.1} parent=0
    _
  %s15 = ssub.s32 1, %s13
  %s16 = scalar_select 0, %s15, %s13
  %17 = sst [smem:[#allocation2]] %s7
  $region1: #{forward.1} parent=0
    #allocation3 [shape = 'u8[2048]{0}', space=vmem, size = 0x800, scoped, tag = 'output window, operand 0']
    #allocation4 [shape = 's32[2]{0}', space=sflag, size = 0x8, scoped, tag = 'scoped memory for forward.1']
    %18 = vsyncpa [#allocation4], 0
    %s19 = scalar_lea.sflag [#allocation4], 1
    %20 = vsyncpa %s19, 0
    loop: start=0, step=1, limit=4
    $region2: #{forward.1} parent=1 // loop_pre_header
      _
    $region3: #{forward.1} parent=1 // loop_header
      %s22 = sphi 0, %s26
      %p23 = scmp.ge.s32.totalorder %s22, 4
      %s32 = sphi 0, %s34
      %s35 = sphi 0, %s32
      %s36 = sphi 0, %s35
      %s52 = sphi 0, %s36
      %s56 = sphi 0, %s56
      %s58 = sphi 0, %s56
      %s59 = sphi 0, %s58
      %s73 = sphi 0, %s59
      %s77 = sphi 0, %s77
      %s79 = sphi 0, %s77
      %s80 = sphi 0, %s79
      %s94 = sphi 0, %s80
      %s98 = sphi 0, %s98
      %s100 = sphi 0, %s98
      %s101 = sphi 0, %s100
      %s115 = sphi 0, %s101
      %s119 = sphi 0, %s119
      %s121 = sphi 0, %s119
      %s122 = sphi 0, %s121
      %s136 = sphi 0, %s122
      %s140 = sphi 0, %s140
      %s142 = sphi 0, %s140
      %s143 = sphi 0, %s142
      %s157 = sphi 0, %s143
      %s161 = sphi 0, %s161
      %s163 = sphi 0, %s161
      %s164 = sphi 0, %s163
      %s178 = sphi 0, %s164
      %s182 = sphi 0, %s182
      %s184 = sphi 0, %s182
      %s185 = sphi 0, %s184
      %s199 = sphi 0, %s185
      %s203 = sphi 0, %s203
      %s205 = sphi 0, %s203
      %s206 = sphi 0, %s205
      %s220 = sphi 0, %s206
      %s224 = sphi 0, %s224
      %s226 = sphi 0, %s224
      %s227 = sphi 0, %s226
      %s241 = sphi 0, %s227
      %s247 = sphi 0, %s249
      %s250 = sphi 0, %s247
      %s251 = sphi 0, %s250
      %s267 = sphi 0, %s251
      %s273 = sphi 0, %s275
      %s276 = sphi 0, %s273
      %s277 = sphi 0, %s276
      %s293 = sphi 0, %s277
    $region4: #{forward.1} parent=1 // loop_header_branch
      %25 = sbr.rel (%p23) target = $region8
    $region5: #{forward.1} parent=1 // loop_body
      %s27 = ssub.s32 %s22, 1
      %s28 = ssub.s32 %s22, 2
      %s29 = sadd.s32 %s22, 1
      %s30 = ssub.s32 %s22, %s29
      %p31 = scmp.eq.s32.totalorder %s30, 0
      %s33 = sadd.s32 %s32, 1
      %s34 = scalar_select %p31, %s32, %s33
      %p37 = pneg %p31
      %p38 = scmp.eq.s32.totalorder %s22, 1
      %p39 = por %p37, %p38
      %p40 = scmp.ne.s32.totalorder %s32, %s35
      %p41 = scmp.eq.s32.totalorder %s22, 0
      %p42 = por %p40, %p41
      %p43 = scmp.ne.s32.totalorder %s32, %s35
      %p44 = scmp.eq.s32.totalorder %s27, 1
      %p45 = por %p43, %p44
      %p46 = scmp.ne.s32.totalorder %s35, %s36
      %p47 = scmp.eq.s32.totalorder %s27, 0
      %p48 = por %p46, %p47
      %p49 = scmp.ne.s32.totalorder %s35, %s36
      %p50 = scmp.eq.s32.totalorder %s28, 1
      %p51 = por %p49, %p50
      %p53 = scmp.ne.s32.totalorder %s36, %s52
      %p54 = scmp.eq.s32.totalorder %s28, 0
      %p55 = por %p53, %p54
      %s57 = sadd.s32 %s56, 1
      %p60 = scmp.eq.s32.totalorder %s22, 1
      %p61 = scmp.ne.s32.totalorder %s56, %s58
      %p62 = scmp.eq.s32.totalorder %s22, 0
      %p63 = por %p61, %p62
      %p64 = scmp.ne.s32.totalorder %s56, %s58
      %p65 = scmp.eq.s32.totalorder %s27, 1
      %p66 = por %p64, %p65
      %p67 = scmp.ne.s32.totalorder %s58, %s59
      %p68 = scmp.eq.s32.totalorder %s27, 0
      %p69 = por %p67, %p68
      %p70 = scmp.ne.s32.totalorder %s58, %s59
      %p71 = scmp.eq.s32.totalorder %s28, 1
      %p72 = por %p70, %p71
      %p74 = scmp.ne.s32.totalorder %s59, %s73
      %p75 = scmp.eq.s32.totalorder %s28, 0
      %p76 = por %p74, %p75
      %s78 = sadd.s32 %s77, 1
      %p81 = scmp.eq.s32.totalorder %s22, 1
      %p82 = scmp.ne.s32.totalorder %s77, %s79
      %p83 = scmp.eq.s32.totalorder %s22, 0
      %p84 = por %p82, %p83
      %p85 = scmp.ne.s32.totalorder %s77, %s79
      %p86 = scmp.eq.s32.totalorder %s27, 1
      %p87 = por %p85, %p86
      %p88 = scmp.ne.s32.totalorder %s79, %s80
      %p89 = scmp.eq.s32.totalorder %s27, 0
      %p90 = por %p88, %p89
      %p91 = scmp.ne.s32.totalorder %s79, %s80
      %p92 = scmp.eq.s32.totalorder %s28, 1
      %p93 = por %p91, %p92
      %p95 = scmp.ne.s32.totalorder %s80, %s94
      %p96 = scmp.eq.s32.totalorder %s28, 0
      %p97 = por %p95, %p96
      %s99 = sadd.s32 %s98, 1
      %p102 = scmp.eq.s32.totalorder %s22, 1
      %p103 = scmp.ne.s32.totalorder %s98, %s100
      %p104 = scmp.eq.s32.totalorder %s22, 0
      %p105 = por %p103, %p104
      %p106 = scmp.ne.s32.totalorder %s98, %s100
      %p107 = scmp.eq.s32.totalorder %s27, 1
      %p108 = por %p106, %p107
      %p109 = scmp.ne.s32.totalorder %s100, %s101
      %p110 = scmp.eq.s32.totalorder %s27, 0
      %p111 = por %p109, %p110
      %p112 = scmp.ne.s32.totalorder %s100, %s101
      %p113 = scmp.eq.s32.totalorder %s28, 1
      %p114 = por %p112, %p113
      %p116 = scmp.ne.s32.totalorder %s101, %s115
      %p117 = scmp.eq.s32.totalorder %s28, 0
      %p118 = por %p116, %p117
      %s120 = sadd.s32 %s119, 1
      %p123 = scmp.eq.s32.totalorder %s22, 1
      %p124 = scmp.ne.s32.totalorder %s119, %s121
      %p125 = scmp.eq.s32.totalorder %s22, 0
      %p126 = por %p124, %p125
      %p127 = scmp.ne.s32.totalorder %s119, %s121
      %p128 = scmp.eq.s32.totalorder %s27, 1
      %p129 = por %p127, %p128
      %p130 = scmp.ne.s32.totalorder %s121, %s122
      %p131 = scmp.eq.s32.totalorder %s27, 0
      %p132 = por %p130, %p131
      %p133 = scmp.ne.s32.totalorder %s121, %s122
      %p134 = scmp.eq.s32.totalorder %s28, 1
      %p135 = por %p133, %p134
      %p137 = scmp.ne.s32.totalorder %s122, %s136
      %p138 = scmp.eq.s32.totalorder %s28, 0
      %p139 = por %p137, %p138
      %s141 = sadd.s32 %s140, 1
      %p144 = scmp.eq.s32.totalorder %s22, 1
      %p145 = scmp.ne.s32.totalorder %s140, %s142
      %p146 = scmp.eq.s32.totalorder %s22, 0
      %p147 = por %p145, %p146
      %p148 = scmp.ne.s32.totalorder %s140, %s142
      %p149 = scmp.eq.s32.totalorder %s27, 1
      %p150 = por %p148, %p149
      %p151 = scmp.ne.s32.totalorder %s142, %s143
      %p152 = scmp.eq.s32.totalorder %s27, 0
      %p153 = por %p151, %p152
      %p154 = scmp.ne.s32.totalorder %s142, %s143
      %p155 = scmp.eq.s32.totalorder %s28, 1
      %p156 = por %p154, %p155
      %p158 = scmp.ne.s32.totalorder %s143, %s157
      %p159 = scmp.eq.s32.totalorder %s28, 0
      %p160 = por %p158, %p159
      %s162 = sadd.s32 %s161, 1
      %p165 = scmp.eq.s32.totalorder %s22, 1
      %p166 = scmp.ne.s32.totalorder %s161, %s163
      %p167 = scmp.eq.s32.totalorder %s22, 0
      %p168 = por %p166, %p167
      %p169 = scmp.ne.s32.totalorder %s161, %s163
      %p170 = scmp.eq.s32.totalorder %s27, 1
      %p171 = por %p169, %p170
      %p172 = scmp.ne.s32.totalorder %s163, %s164
      %p173 = scmp.eq.s32.totalorder %s27, 0
      %p174 = por %p172, %p173
      %p175 = scmp.ne.s32.totalorder %s163, %s164
      %p176 = scmp.eq.s32.totalorder %s28, 1
      %p177 = por %p175, %p176
      %p179 = scmp.ne.s32.totalorder %s164, %s178
      %p180 = scmp.eq.s32.totalorder %s28, 0
      %p181 = por %p179, %p180
      %s183 = sadd.s32 %s182, 1
      %p186 = scmp.eq.s32.totalorder %s22, 1
      %p187 = scmp.ne.s32.totalorder %s182, %s184
      %p188 = scmp.eq.s32.totalorder %s22, 0
      %p189 = por %p187, %p188
      %p190 = scmp.ne.s32.totalorder %s182, %s184
      %p191 = scmp.eq.s32.totalorder %s27, 1
      %p192 = por %p190, %p191
      %p193 = scmp.ne.s32.totalorder %s184, %s185
      %p194 = scmp.eq.s32.totalorder %s27, 0
      %p195 = por %p193, %p194
      %p196 = scmp.ne.s32.totalorder %s184, %s185
      %p197 = scmp.eq.s32.totalorder %s28, 1
      %p198 = por %p196, %p197
      %p200 = scmp.ne.s32.totalorder %s185, %s199
      %p201 = scmp.eq.s32.totalorder %s28, 0
      %p202 = por %p200, %p201
      %s204 = sadd.s32 %s203, 1
      %p207 = scmp.eq.s32.totalorder %s22, 1
      %p208 = scmp.ne.s32.totalorder %s203, %s205
      %p209 = scmp.eq.s32.totalorder %s22, 0
      %p210 = por %p208, %p209
      %p211 = scmp.ne.s32.totalorder %s203, %s205
      %p212 = scmp.eq.s32.totalorder %s27, 1
      %p213 = por %p211, %p212
      %p214 = scmp.ne.s32.totalorder %s205, %s206
      %p215 = scmp.eq.s32.totalorder %s27, 0
      %p216 = por %p214, %p215
      %p217 = scmp.ne.s32.totalorder %s205, %s206
      %p218 = scmp.eq.s32.totalorder %s28, 1
      %p219 = por %p217, %p218
      %p221 = scmp.ne.s32.totalorder %s206, %s220
      %p222 = scmp.eq.s32.totalorder %s28, 0
      %p223 = por %p221, %p222
      %s225 = sadd.s32 %s224, 1
      %p228 = scmp.eq.s32.totalorder %s22, 1
      %p229 = scmp.ne.s32.totalorder %s224, %s226
      %p230 = scmp.eq.s32.totalorder %s22, 0
      %p231 = por %p229, %p230
      %p232 = scmp.ne.s32.totalorder %s224, %s226
      %p233 = scmp.eq.s32.totalorder %s27, 1
      %p234 = por %p232, %p233
      %p235 = scmp.ne.s32.totalorder %s226, %s227
      %p236 = scmp.eq.s32.totalorder %s27, 0
      %p237 = por %p235, %p236
      %p238 = scmp.ne.s32.totalorder %s226, %s227
      %p239 = scmp.eq.s32.totalorder %s28, 1
      %p240 = por %p238, %p239
      %p242 = scmp.ne.s32.totalorder %s227, %s241
      %p243 = scmp.eq.s32.totalorder %s28, 0
      %p244 = por %p242, %p243
      %s245 = ssub.s32 %s22, %s29
      %p246 = scmp.eq.s32.totalorder %s245, 0
      %s248 = sadd.s32 %s247, 1
      %s249 = scalar_select %p246, %s247, %s248
      %p252 = pneg %p246
      %p253 = scmp.eq.s32.totalorder %s22, 1
      %p254 = por %p252, %p253
      %p255 = scmp.ne.s32.totalorder %s247, %s250
      %p256 = scmp.eq.s32.totalorder %s22, 0
      %p257 = por %p255, %p256
      %p258 = scmp.ne.s32.totalorder %s247, %s250
      %p259 = scmp.eq.s32.totalorder %s27, 1
      %p260 = por %p258, %p259
      %p261 = scmp.ne.s32.totalorder %s250, %s251
      %p262 = scmp.eq.s32.totalorder %s27, 0
      %p263 = por %p261, %p262
      %p264 = scmp.ne.s32.totalorder %s250, %s251
      %p265 = scmp.eq.s32.totalorder %s28, 1
      %p266 = por %p264, %p265
      %p268 = scmp.ne.s32.totalorder %s251, %s267
      %p269 = scmp.eq.s32.totalorder %s28, 0
      %p270 = por %p268, %p269
      %s271 = ssub.s32 %s22, %s29
      %p272 = scmp.eq.s32.totalorder %s271, 0
      %s274 = sadd.s32 %s273, 1
      %s275 = scalar_select %p272, %s273, %s274
      %p278 = pneg %p272
      %p279 = scmp.eq.s32.totalorder %s22, 1
      %p280 = por %p278, %p279
      %p281 = scmp.ne.s32.totalorder %s273, %s276
      %p282 = scmp.eq.s32.totalorder %s22, 0
      %p283 = por %p281, %p282
      %p284 = scmp.ne.s32.totalorder %s273, %s276
      %p285 = scmp.eq.s32.totalorder %s27, 1
      %p286 = por %p284, %p285
      %p287 = scmp.ne.s32.totalorder %s276, %s277
      %p288 = scmp.eq.s32.totalorder %s27, 0
      %p289 = por %p287, %p288
      %p290 = scmp.ne.s32.totalorder %s276, %s277
      %p291 = scmp.eq.s32.totalorder %s28, 1
      %p292 = por %p290, %p291
      %p294 = scmp.ne.s32.totalorder %s277, %s293
      %p295 = scmp.eq.s32.totalorder %s28, 0
      %p296 = por %p294, %p295
      %p297 = scmp.le.s32.totalorder 1, %s22
      %p298 = scmp.lt.s32.totalorder %s22, 3
      %p299 = pnand %p297, %p298
      %p300 = pneg %p299
      // Predicated region
      $region9: #{forward.1} parent=5 // pred_check
        _
      $region10: #{forward.1} parent=5 // pred_check_branch
        %302 = sbr.rel (%p299) target = $region12
      $region11: #{forward.1} parent=5 // pred_region
        %s303 = ssub.s32 %s22, 1
        // Predicated region
        $region13: #{forward.1} parent=11 // pred_check
          %p304 = pneg %p69
        $region14: #{forward.1} parent=11 // pred_check_branch
          %306 = sbr.rel (%p304) target = $region16
        $region15: #{forward.1} parent=11 // pred_region
          _
        $region16: #{forward.1} parent=11 // pred_fallthru
          _
        // Predicated region
        $region17: #{forward.1} parent=11 // pred_check
          %p307 = pneg %p90
        $region18: #{forward.1} parent=11 // pred_check_branch
          %309 = sbr.rel (%p307) target = $region20
        $region19: #{forward.1} parent=11 // pred_region
          _
        $region20: #{forward.1} parent=11 // pred_fallthru
          _
        // Predicated region
        $region21: #{forward.1} parent=11 // pred_check
          %p310 = pneg %p111
        $region22: #{forward.1} parent=11 // pred_check_branch
          %312 = sbr.rel (%p310) target = $region24
        $region23: #{forward.1} parent=11 // pred_region
          _
        $region24: #{forward.1} parent=11 // pred_fallthru
          _
        // Predicated region
        $region25: #{forward.1} parent=11 // pred_check
          %p313 = pneg %p132
        $region26: #{forward.1} parent=11 // pred_check_branch
          %315 = sbr.rel (%p313) target = $region28
        $region27: #{forward.1} parent=11 // pred_region
          _
        $region28: #{forward.1} parent=11 // pred_fallthru
          _
        // Predicated region
        $region29: #{forward.1} parent=11 // pred_check
          %p316 = pneg %p153
        $region30: #{forward.1} parent=11 // pred_check_branch
          %318 = sbr.rel (%p316) target = $region32
        $region31: #{forward.1} parent=11 // pred_region
          _
        $region32: #{forward.1} parent=11 // pred_fallthru
          _
        // Predicated region
        $region33: #{forward.1} parent=11 // pred_check
          %p319 = pneg %p174
        $region34: #{forward.1} parent=11 // pred_check_branch
          %321 = sbr.rel (%p319) target = $region36
        $region35: #{forward.1} parent=11 // pred_region
          _
        $region36: #{forward.1} parent=11 // pred_fallthru
          _
        // Predicated region
        $region37: #{forward.1} parent=11 // pred_check
          %p322 = pneg %p195
        $region38: #{forward.1} parent=11 // pred_check_branch
          %324 = sbr.rel (%p322) target = $region40
        $region39: #{forward.1} parent=11 // pred_region
          _
        $region40: #{forward.1} parent=11 // pred_fallthru
          _
        // Predicated region
        $region41: #{forward.1} parent=11 // pred_check
          %p325 = pneg %p216
        $region42: #{forward.1} parent=11 // pred_check_branch
          %327 = sbr.rel (%p325) target = $region44
        $region43: #{forward.1} parent=11 // pred_region
          _
        $region44: #{forward.1} parent=11 // pred_fallthru
          _
        // Predicated region
        $region45: #{forward.1} parent=11 // pred_check
          %p328 = pneg %p237
        $region46: #{forward.1} parent=11 // pred_check_branch
          %330 = sbr.rel (%p328) target = $region48
        $region47: #{forward.1} parent=11 // pred_region
          _
        $region48: #{forward.1} parent=11 // pred_fallthru
          _
      $region12: #{forward.1} parent=5 // pred_fallthru
        _
      %p331 = scmp.lt.s32.totalorder %s22, 2
      // Predicated region
      $region49: #{forward.1} parent=5 // pred_check
        %p332 = pneg %p331
      $region50: #{forward.1} parent=5 // pred_check_branch
        %334 = sbr.rel (%p332) target = $region52
      $region51: #{forward.1} parent=5 // pred_region
        // Predicated region
        $region53: #{forward.1} parent=51 // pred_check
          %p335 = pneg %p42
        $region54: #{forward.1} parent=51 // pred_check_branch
          %337 = sbr.rel (%p335) target = $region56
        $region55: #{forward.1} parent=51 // pred_region
          %p338 = scmp.lt.s32.totalorder %s22, 1
          %s339 = scalar_select %p338, %s22, 1
          %s340 = smul.addr %s339, 52
          %s341 = smul.addr %s340, 8
          %s342 = scalar_lea.vmem %s0, %s341
        $region56: #{forward.1} parent=51 // pred_fallthru
          _
      $region52: #{forward.1} parent=5 // pred_fallthru
        _
      %p343 = scmp.le.s32.totalorder 1, %s22
      %p344 = scmp.lt.s32.totalorder %s22, 3
      %p345 = pnand %p343, %p344
      %p346 = pneg %p345
      // Predicated region
      $region57: #{forward.1} parent=5 // pred_check
        _
      $region58: #{forward.1} parent=5 // pred_check_branch
        %348 = sbr.rel (%p345) target = $region60
      $region59: #{forward.1} parent=5 // pred_region
        %s349 = ssub.s32 %s22, 1
        %p350 = scmp.lt.s32.totalorder %s27, 1
        %s351 = scalar_select %p350, %s27, 1
        %s352 = smul.addr %s351, 52
        %s353 = smul.addr %s352, 8
        %s354 = scalar_lea.vmem %s0, %s353
        %p355 = pneg %p48
        %p356 = pneg %p45
        %p357 = pneg %p69
        %p358 = pneg %p66
        %p359 = pneg %p90
        %p360 = pneg %p87
        %p361 = pneg %p111
        %p362 = pneg %p108
        %p363 = pneg %p132
        %p364 = pneg %p129
        %p365 = pneg %p153
        %p366 = pneg %p150
        %p367 = pneg %p174
        %p368 = pneg %p171
        %p369 = pneg %p195
        %p370 = pneg %p192
        %p371 = pneg %p216
        %p372 = pneg %p213
        %p373 = pneg %p237
        %p374 = pneg %p234
        %p375 = pneg %p263
        %p376 = pneg %p260
        %s377 = sand.u32 %s250, 1
        %s378 = scalar_lea.sflag [#allocation4], %s377
        %s379 = sand.u32 %s250, 1
        %s380 = smul.addr %s379, 2
        %s381 = scalar_lea.vmem [#allocation3], %s380
        %p382 = pneg %p289
        %p383 = pneg %p286
        %p384 = scmp.lt.s32.totalorder %s27, 1
        %s385 = scalar_select %p384, %s27, 1
        %s386 = smul.addr %s385, 4
        %s387 = smul.addr %s386, 2
        %s388 = scalar_lea.vmem %s11, %s387
        %p389 = scmp.lt.s32.totalorder %s27, 1
        %s390 = scalar_select %p389, %s27, 1
        %s391 = smul.addr %s390, 52
        %s392 = smul.addr %s391, 8
        %s393 = scalar_lea.vmem %s0, %s392
        %p394 = scmp.lt.s32.totalorder %s27, 1
        %s395 = scalar_select %p394, %s27, 1
        %s396 = smul.addr %s395, 4
        %s397 = smul.addr %s396, 2
        %s398 = scalar_lea.vmem %s11, %s397
        %v400 = vld [vmem:[%s393] sm:$0xff]
        %v401 = vld [vmem:[%s393 + $0x8] sm:$0xff]
        %v402 = vld [vmem:[%s393 + $0x10] sm:$0xff]
        %v403 = vld [vmem:[%s393 + $0x18] sm:$0xff]
        %v404 = vld [vmem:[%s393 + $0x20] sm:$0xff]
        %v405 = vld [vmem:[%s393 + $0x28] sm:$0xff]
        %v406 = vld [vmem:[%s393 + $0x30] sm:$0xff]
        %v407 = vld [vmem:[%s393 + $0x38] sm:$0xff]
        %v408 = vld [vmem:[%s393 + $0x40] sm:$0xff]
        %v409 = vld [vmem:[%s393 + $0x48] sm:$0xff]
        %v410 = vld [vmem:[%s393 + $0x50] sm:$0xff]
        %v411 = vld [vmem:[%s393 + $0x58] sm:$0xff]
        %v412 = vld [vmem:[%s393 + $0x60] sm:$0xff]
        %v413 = vld [vmem:[%s393 + $0x68] sm:$0xff]
        %v414 = vld [vmem:[%s393 + $0x70] sm:$0xff]
        %v415 = vld [vmem:[%s393 + $0x78] sm:$0xff]
        %v416 = vld [vmem:[%s393 + $0x80] sm:$0xff]
        %v417 = vld [vmem:[%s393 + $0x88] sm:$0xff]
        %v418 = vld [vmem:[%s393 + $0x90] sm:$0xff]
        %v419 = vld [vmem:[%s393 + $0x98] sm:$0xff]
        %v420 = vld [vmem:[%s393 + $0xa0] sm:$0xff]
        %v421 = vld [vmem:[%s393 + $0xa8] sm:$0xff]
        %v422 = vld [vmem:[%s393 + $0xb0] sm:$0xff]
        %v423 = vld [vmem:[%s393 + $0xb8] sm:$0xff]
        %v424 = vld [vmem:[%s393 + $0xc0] sm:$0xff]
        %v425 = vld [vmem:[%s393 + $0xc8] sm:$0xff]
        %v426 = vld [vmem:[%s393 + $0xd0] sm:$0xff]
        %v427 = vld [vmem:[%s393 + $0xd8] sm:$0xff]
        %v428 = vld [vmem:[%s393 + $0xe0] sm:$0xff]
        %v429 = vld [vmem:[%s393 + $0xe8] sm:$0xff]
        %v430 = vld [vmem:[%s393 + $0xf0] sm:$0xff]
        %v431 = vld [vmem:[%s393 + $0xf8] sm:$0xff]
        %v432 = vld [vmem:[%s393 + $0x100] sm:$0xff]
        %v433 = vld [vmem:[%s393 + $0x108] sm:$0xff]
        %v434 = vld [vmem:[%s393 + $0x110] sm:$0xff]
        %v435 = vld [vmem:[%s393 + $0x118] sm:$0xff]
        %v436 = vld [vmem:[%s393 + $0x120] sm:$0xff]
        %v437 = vld [vmem:[%s393 + $0x128] sm:$0xff]
        %v438 = vld [vmem:[%s393 + $0x130] sm:$0xff]
        %v439 = vld [vmem:[%s393 + $0x138] sm:$0xff]
        %v440 = vld [vmem:[%s393 + $0x140] sm:$0xff]
        %v441 = vld [vmem:[%s393 + $0x148] sm:$0xff]
        %v442 = vld [vmem:[%s393 + $0x150] sm:$0xff]
        %v443 = vld [vmem:[%s393 + $0x158] sm:$0xff]
        %v444 = vld [vmem:[%s393 + $0x160] sm:$0xff]
        %v445 = vld [vmem:[%s393 + $0x168] sm:$0xff]
        %v446 = vld [vmem:[%s393 + $0x170] sm:$0xff]
        %v447 = vld [vmem:[%s393 + $0x178] sm:$0xff]
        %v448 = vld [vmem:[%s393 + $0x180] sm:$0x3]
        %v449 = vld [vmem:[%s393 + $0x188] sm:$0x3]
        %v450 = vld [vmem:[%s393 + $0x190] sm:$0x3]
        %v451 = vld [vmem:[%s393 + $0x198] sm:$0x3]
        %v452 = vpack.c.bf16 %v404, %v400
        %v453 = vpack.c.bf16 %v405, %v401
        %v454 = vpack.c.bf16 %v406, %v402
        %v455 = vpack.c.bf16 %v407, %v403
        %v456 = vpack.c.bf16 %v412, %v408
        %v457 = vpack.c.bf16 %v413, %v409
        %v458 = vpack.c.bf16 %v414, %v410
        %v459 = vpack.c.bf16 %v415, %v411
        %v460 = vpack.c.bf16 %v420, %v416
        %v461 = vpack.c.bf16 %v421, %v417
        %v462 = vpack.c.bf16 %v422, %v418
        %v463 = vpack.c.bf16 %v423, %v419
        %v464 = vpack.c.bf16 %v428, %v424
        %v465 = vpack.c.bf16 %v429, %v425
        %v466 = vpack.c.bf16 %v430, %v426
        %v467 = vpack.c.bf16 %v431, %v427
        %v468 = vpack.c.bf16 %v436, %v432
        %v469 = vpack.c.bf16 %v437, %v433
        %v470 = vpack.c.bf16 %v438, %v434
        %v471 = vpack.c.bf16 %v439, %v435
        %v472 = vpack.c.bf16 %v444, %v440
        %v473 = vpack.c.bf16 %v445, %v441
        %v474 = vpack.c.bf16 %v446, %v442
        %v475 = vpack.c.bf16 %v447, %v443
        %v476 = vpack.c.bf16 %v448, %v448
        %v477 = vpack.c.bf16 %v449, %v449
        %v478 = vpack.c.bf16 %v450, %v450
        %v479 = vpack.c.bf16 %v451, %v451
        %v480 = vld [vmem:[%s1] sm:$0xf]
        %v481 = vld [vmem:[%s1 + $0x4] sm:$0xf]
        %v482 = vld [vmem:[%s1 + $0x8] sm:$0xf]
        %v483 = vld [vmem:[%s1 + $0xc] sm:$0xf]
        %v484 = vld [vmem:[%s1 + $0x10] sm:$0xf]
        %v485 = vld [vmem:[%s1 + $0x14] sm:$0xf]
        %v486 = vld [vmem:[%s1 + $0x18] sm:$0xf]
        %v487 = vld [vmem:[%s1 + $0x1c] sm:$0xf]
        %v488 = vld [vmem:[%s1 + $0x20] sm:$0xf]
        %v489 = vld [vmem:[%s1 + $0x24] sm:$0xf]
        %v490 = vld [vmem:[%s1 + $0x28] sm:$0xf]
        %v491 = vld [vmem:[%s1 + $0x2c] sm:$0xf]
        %v492 = vld [vmem:[%s1 + $0x30] sm:$0xf]
        %v493 = vld [vmem:[%s1 + $0x34] sm:$0xf]
        %v494 = vld [vmem:[%s1 + $0x38] sm:$0xf]
        %v495 = vld [vmem:[%s1 + $0x3c] sm:$0xf]
        %v496 = vld [vmem:[%s1 + $0x40] sm:$0xf]
        %v497 = vld [vmem:[%s1 + $0x44] sm:$0xf]
        %v498 = vld [vmem:[%s1 + $0x48] sm:$0xf]
        %v499 = vld [vmem:[%s1 + $0x4c] sm:$0xf]
        %v500 = vld [vmem:[%s1 + $0x50] sm:$0xf]
        %v501 = vld [vmem:[%s1 + $0x54] sm:$0xf]
        %v502 = vld [vmem:[%s1 + $0x58] sm:$0xf]
        %v503 = vld [vmem:[%s1 + $0x5c] sm:$0xf]
        %v504 = vld [vmem:[%s1 + $0x60] sm:$0xf]
        %v505 = vld [vmem:[%s1 + $0x64] sm:$0xf]
        %v506 = vld [vmem:[%s1 + $0x68] sm:$0xf]
        %v507 = vld [vmem:[%s1 + $0x6c] sm:$0xf]
        %v508 = vld [vmem:[%s1 + $0x70] sm:$0xf]
        %v509 = vld [vmem:[%s1 + $0x74] sm:$0xf]
        %v510 = vld [vmem:[%s1 + $0x78] sm:$0xf]
        %v511 = vld [vmem:[%s1 + $0x7c] sm:$0xf]
        %v512 = vld [vmem:[%s1 + $0x80] sm:$0xf]
        %v513 = vld [vmem:[%s1 + $0x84] sm:$0xf]
        %v514 = vld [vmem:[%s1 + $0x88] sm:$0xf]
        %v515 = vld [vmem:[%s1 + $0x8c] sm:$0xf]
        %v516 = vld [vmem:[%s1 + $0x90] sm:$0xf]
        %v517 = vld [vmem:[%s1 + $0x94] sm:$0xf]
        %v518 = vld [vmem:[%s1 + $0x98] sm:$0xf]
        %v519 = vld [vmem:[%s1 + $0x9c] sm:$0xf]
        %v520 = vld [vmem:[%s1 + $0xa0] sm:$0xf]
        %v521 = vld [vmem:[%s1 + $0xa4] sm:$0xf]
        %v522 = vld [vmem:[%s1 + $0xa8] sm:$0xf]
        %v523 = vld [vmem:[%s1 + $0xac] sm:$0xf]
        %v524 = vld [vmem:[%s1 + $0xb0] sm:$0xf]
        %v525 = vld [vmem:[%s1 + $0xb4] sm:$0xf]
        %v526 = vld [vmem:[%s1 + $0xb8] sm:$0xf]
        %v527 = vld [vmem:[%s1 + $0xbc] sm:$0xf]
        %v528 = vld [vmem:[%s1 + $0xc0] sm:$0xf]
        %v529 = vld [vmem:[%s1 + $0xc4] sm:$0xf]
        %v530 = vld [vmem:[%s1 + $0xc8] sm:$0xf]
        %v531 = vld [vmem:[%s1 + $0xcc] sm:$0xf]
        %v532 = vld [vmem:[%s1 + $0xd0] sm:$0xf]
        %v533 = vld [vmem:[%s1 + $0xd4] sm:$0xf]
        %v534 = vld [vmem:[%s1 + $0xd8] sm:$0xf]
        %v535 = vld [vmem:[%s1 + $0xdc] sm:$0xf]
        %v536 = vld [vmem:[%s1 + $0xe0] sm:$0xf]
        %v537 = vld [vmem:[%s1 + $0xe4] sm:$0xf]
        %v538 = vld [vmem:[%s1 + $0xe8] sm:$0xf]
        %v539 = vld [vmem:[%s1 + $0xec] sm:$0xf]
        %v540 = vld [vmem:[%s1 + $0xf0] sm:$0xf]
        %v541 = vld [vmem:[%s1 + $0xf4] sm:$0xf]
        %v542 = vld [vmem:[%s1 + $0xf8] sm:$0xf]
        %v543 = vld [vmem:[%s1 + $0xfc] sm:$0xf]
        %v544 = vld [vmem:[%s2] sm:$0x1]
        %v546 = vperm.slane %v544, 0
        %v612 = vunpack.c.l.b16 %v480
        %v613 = vunpack.c.l.b16 %v481
        %v614 = vunpack.c.l.b16 %v482
        %v615 = vunpack.c.l.b16 %v483
        %v616 = vunpack.c.l.b16 %v484
        %v617 = vunpack.c.l.b16 %v485
        %v618 = vunpack.c.l.b16 %v486
        %v619 = vunpack.c.l.b16 %v487
        %v620 = vunpack.c.l.b16 %v488
        %v621 = vunpack.c.l.b16 %v489
        %v622 = vunpack.c.l.b16 %v490
        %v623 = vunpack.c.l.b16 %v491
        %v624 = vunpack.c.l.b16 %v492
        %v625 = vunpack.c.l.b16 %v493
        %v626 = vunpack.c.l.b16 %v494
        %v627 = vunpack.c.l.b16 %v495
        %v628 = vunpack.c.l.b16 %v496
        %v629 = vunpack.c.l.b16 %v497
        %v630 = vunpack.c.l.b16 %v498
        %v631 = vunpack.c.l.b16 %v499
        %v632 = vunpack.c.l.b16 %v500
        %v633 = vunpack.c.l.b16 %v501
        %v634 = vunpack.c.l.b16 %v502
        %v635 = vunpack.c.l.b16 %v503
        %v636 = vunpack.c.l.b16 %v504
        %v637 = vunpack.c.l.b16 %v505
        %v638 = vunpack.c.l.b16 %v506
        %v639 = vunpack.c.l.b16 %v507
        %v640 = vunpack.c.l.b16 %v508
        %v641 = vunpack.c.l.b16 %v509
        %v642 = vunpack.c.l.b16 %v510
        %v643 = vunpack.c.l.b16 %v511
        %v644 = vunpack.c.l.b16 %v512
        %v645 = vunpack.c.l.b16 %v513
        %v646 = vunpack.c.l.b16 %v514
        %v647 = vunpack.c.l.b16 %v515
        %v648 = vunpack.c.l.b16 %v516
        %v649 = vunpack.c.l.b16 %v517
        %v650 = vunpack.c.l.b16 %v518
        %v651 = vunpack.c.l.b16 %v519
        %v652 = vunpack.c.l.b16 %v520
        %v653 = vunpack.c.l.b16 %v521
        %v654 = vunpack.c.l.b16 %v522
        %v655 = vunpack.c.l.b16 %v523
        %v656 = vunpack.c.l.b16 %v524
        %v657 = vunpack.c.l.b16 %v525
        %v658 = vunpack.c.l.b16 %v526
        %v659 = vunpack.c.l.b16 %v527
        %v660 = vunpack.c.l.b16 %v528
        %v661 = vunpack.c.l.b16 %v529
        %v662 = vunpack.c.l.b16 %v530
        %v663 = vunpack.c.l.b16 %v531
        %v664 = vunpack.c.l.b16 %v532
        %v665 = vunpack.c.l.b16 %v533
        %v666 = vunpack.c.l.b16 %v534
        %v667 = vunpack.c.l.b16 %v535
        %v668 = vunpack.c.l.b16 %v536
        %v669 = vunpack.c.l.b16 %v537
        %v670 = vunpack.c.l.b16 %v538
        %v671 = vunpack.c.l.b16 %v539
        %v672 = vunpack.c.l.b16 %v540
        %v673 = vunpack.c.l.b16 %v541
        %v674 = vunpack.c.l.b16 %v542
        %v675 = vunpack.c.l.b16 %v543
        %v676 = vpack.c.b16 %v613, %v612
        %v677 = vpack.c.b16 %v615, %v614
        %v678 = vpack.c.b16 %v617, %v616
        %v679 = vpack.c.b16 %v619, %v618
        %v680 = vpack.c.b16 %v621, %v620
        %v681 = vpack.c.b16 %v623, %v622
        %v682 = vpack.c.b16 %v625, %v624
        %v683 = vpack.c.b16 %v627, %v626
        %v684 = vpack.c.b16 %v629, %v628
        %v685 = vpack.c.b16 %v631, %v630
        %v686 = vpack.c.b16 %v633, %v632
        %v687 = vpack.c.b16 %v635, %v634
        %v688 = vpack.c.b16 %v637, %v636
        %v689 = vpack.c.b16 %v639, %v638
        %v690 = vpack.c.b16 %v641, %v640
        %v691 = vpack.c.b16 %v643, %v642
        %v692 = vpack.c.b16 %v645, %v644
        %v693 = vpack.c.b16 %v647, %v646
        %v694 = vpack.c.b16 %v649, %v648
        %v695 = vpack.c.b16 %v651, %v650
        %v696 = vpack.c.b16 %v653, %v652
        %v697 = vpack.c.b16 %v655, %v654
        %v698 = vpack.c.b16 %v657, %v656
        %v699 = vpack.c.b16 %v659, %v658
        %v700 = vpack.c.b16 %v661, %v660
        %v701 = vpack.c.b16 %v663, %v662
        %v702 = vpack.c.b16 %v665, %v664
        %v703 = vpack.c.b16 %v667, %v666
        %v704 = vpack.c.b16 %v669, %v668
        %v705 = vpack.c.b16 %v671, %v670
        %v706 = vpack.c.b16 %v673, %v672
        %v707 = vpack.c.b16 %v675, %v674
        %740 = vmatpush.bf16.msra.mxu0 %v683
        %741 = vmatpush.bf16.msra.mxu0 %v682
        %742 = vmatpush.bf16.msra.mxu0 %v681
        %743 = vmatpush.bf16.msra.mxu0 %v680
        %744 = vmatpush.bf16.msra.mxu0 %v679
        %745 = vmatpush.bf16.msra.mxu0 %v678
        %746 = vmatpush.bf16.msra.mxu0 %v677
        %747 = vmatpush.bf16.msra.mxu0 %v676
        %748 = vmatmul.bf16.gmra.mxu0 %v452
        %v749 = vpop.f32.mrf.mxu0
        %v750 = vadd.f32 %v546, %v749
        %v751 = vpop.f32.mrf.mxu0
        %v752 = vadd.f32 %v546, %v751
        %753 = vmatmul.bf16.gmra.mxu0 %v456
        %v754 = vpop.f32.mrf.mxu0
        %v755 = vadd.f32 %v546, %v754
        %v756 = vpop.f32.mrf.mxu0
        %v757 = vadd.f32 %v546, %v756
        %758 = vmatmul.bf16.gmra.mxu0 %v460
        %v759 = vpop.f32.mrf.mxu0
        %v760 = vadd.f32 %v546, %v759
        %v761 = vpop.f32.mrf.mxu0
        %v762 = vadd.f32 %v546, %v761
        %763 = vmatmul.bf16.gmra.mxu0 %v464
        %v764 = vpop.f32.mrf.mxu0
        %v765 = vadd.f32 %v546, %v764
        %v766 = vpop.f32.mrf.mxu0
        %v767 = vadd.f32 %v546, %v766
        %768 = vmatmul.bf16.gmra.mxu0 %v468
        %v769 = vpop.f32.mrf.mxu0
        %v770 = vadd.f32 %v546, %v769
        %v771 = vpop.f32.mrf.mxu0
        %v772 = vadd.f32 %v546, %v771
        %773 = vmatmul.bf16.gmra.mxu0 %v472
        %v774 = vpop.f32.mrf.mxu0
        %v775 = vadd.f32 %v546, %v774
        %v776 = vpop.f32.mrf.mxu0
        %v777 = vadd.f32 %v546, %v776
        %778 = vmatmul.bf16.gmra.mxu0 %v476
        %v779 = vpop.f32.mrf.mxu0
        %v780 = vadd.f32 %v546, %v779
        %v781 = vpop.f32.mrf.mxu0
        %782 = vdwg.mxu0
        %783 = vmatpush.bf16.msra.mxu0 %v691
        %784 = vmatpush.bf16.msra.mxu0 %v690
        %785 = vmatpush.bf16.msra.mxu0 %v689
        %786 = vmatpush.bf16.msra.mxu0 %v688
        %787 = vmatpush.bf16.msra.mxu0 %v687
        %788 = vmatpush.bf16.msra.mxu0 %v686
        %789 = vmatpush.bf16.msra.mxu0 %v685
        %790 = vmatpush.bf16.msra.mxu0 %v684
        %791 = vmatmul.bf16.gmra.mxu0 %v453
        %v792 = vpop.f32.mrf.mxu0
        %v793 = vadd.f32 %v750, %v792
        %v794 = vpop.f32.mrf.mxu0
        %v795 = vadd.f32 %v752, %v794
        %796 = vmatmul.bf16.gmra.mxu0 %v457
        %v797 = vpop.f32.mrf.mxu0
        %v798 = vadd.f32 %v755, %v797
        %v799 = vpop.f32.mrf.mxu0
        %v800 = vadd.f32 %v757, %v799
        %801 = vmatmul.bf16.gmra.mxu0 %v461
        %v802 = vpop.f32.mrf.mxu0
        %v803 = vadd.f32 %v760, %v802
        %v804 = vpop.f32.mrf.mxu0
        %v805 = vadd.f32 %v762, %v804
        %806 = vmatmul.bf16.gmra.mxu0 %v465
        %v807 = vpop.f32.mrf.mxu0
        %v808 = vadd.f32 %v765, %v807
        %v809 = vpop.f32.mrf.mxu0
        %v810 = vadd.f32 %v767, %v809
        %811 = vmatmul.bf16.gmra.mxu0 %v469
        %v812 = vpop.f32.mrf.mxu0
        %v813 = vadd.f32 %v770, %v812
        %v814 = vpop.f32.mrf.mxu0
        %v815 = vadd.f32 %v772, %v814
        %816 = vmatmul.bf16.gmra.mxu0 %v473
        %v817 = vpop.f32.mrf.mxu0
        %v818 = vadd.f32 %v775, %v817
        %v819 = vpop.f32.mrf.mxu0
        %v820 = vadd.f32 %v777, %v819
        %821 = vmatmul.bf16.gmra.mxu0 %v477
        %v822 = vpop.f32.mrf.mxu0
        %v823 = vadd.f32 %v780, %v822
        %v824 = vpop.f32.mrf.mxu0
        %825 = vdwg.mxu0
        %826 = vmatpush.bf16.msra.mxu0 %v699
        %827 = vmatpush.bf16.msra.mxu0 %v698
        %828 = vmatpush.bf16.msra.mxu0 %v697
        %829 = vmatpush.bf16.msra.mxu0 %v696
        %830 = vmatpush.bf16.msra.mxu0 %v695
        %831 = vmatpush.bf16.msra.mxu0 %v694
        %832 = vmatpush.bf16.msra.mxu0 %v693
        %833 = vmatpush.bf16.msra.mxu0 %v692
        %834 = vmatmul.bf16.gmra.mxu0 %v454
        %v835 = vpop.f32.mrf.mxu0
        %v836 = vadd.f32 %v793, %v835
        %v837 = vpop.f32.mrf.mxu0
        %v838 = vadd.f32 %v795, %v837
        %839 = vmatmul.bf16.gmra.mxu0 %v458
        %v840 = vpop.f32.mrf.mxu0
        %v841 = vadd.f32 %v798, %v840
        %v842 = vpop.f32.mrf.mxu0
        %v843 = vadd.f32 %v800, %v842
        %844 = vmatmul.bf16.gmra.mxu0 %v462
        %v845 = vpop.f32.mrf.mxu0
        %v846 = vadd.f32 %v803, %v845
        %v847 = vpop.f32.mrf.mxu0
        %v848 = vadd.f32 %v805, %v847
        %849 = vmatmul.bf16.gmra.mxu0 %v466
        %v850 = vpop.f32.mrf.mxu0
        %v851 = vadd.f32 %v808, %v850
        %v852 = vpop.f32.mrf.mxu0
        %v853 = vadd.f32 %v810, %v852
        %854 = vmatmul.bf16.gmra.mxu0 %v470
        %v855 = vpop.f32.mrf.mxu0
        %v856 = vadd.f32 %v813, %v855
        %v857 = vpop.f32.mrf.mxu0
        %v858 = vadd.f32 %v815, %v857
        %859 = vmatmul.bf16.gmra.mxu0 %v474
        %v860 = vpop.f32.mrf.mxu0
        %v861 = vadd.f32 %v818, %v860
        %v862 = vpop.f32.mrf.mxu0
        %v863 = vadd.f32 %v820, %v862
        %864 = vmatmul.bf16.gmra.mxu0 %v478
        %v865 = vpop.f32.mrf.mxu0
        %v866 = vadd.f32 %v823, %v865
        %v867 = vpop.f32.mrf.mxu0
        %868 = vdwg.mxu0
        %869 = vmatpush.bf16.msra.mxu0 %v707
        %870 = vmatpush.bf16.msra.mxu0 %v706
        %871 = vmatpush.bf16.msra.mxu0 %v705
        %872 = vmatpush.bf16.msra.mxu0 %v704
        %873 = vmatpush.bf16.msra.mxu0 %v703
        %874 = vmatpush.bf16.msra.mxu0 %v702
        %875 = vmatpush.bf16.msra.mxu0 %v701
        %876 = vmatpush.bf16.msra.mxu0 %v700
        %877 = vmatmul.bf16.gmra.mxu0 %v455
        %v878 = vpop.f32.mrf.mxu0
        %v879 = vadd.f32 %v836, %v878
        %v880 = vpop.f32.mrf.mxu0
        %v881 = vadd.f32 %v838, %v880
        %882 = vmatmul.bf16.gmra.mxu0 %v459
        %v883 = vpop.f32.mrf.mxu0
        %v884 = vadd.f32 %v841, %v883
        %v885 = vpop.f32.mrf.mxu0
        %v886 = vadd.f32 %v843, %v885
        %887 = vmatmul.bf16.gmra.mxu0 %v463
        %v888 = vpop.f32.mrf.mxu0
        %v889 = vadd.f32 %v846, %v888
        %v890 = vpop.f32.mrf.mxu0
        %v891 = vadd.f32 %v848, %v890
        %892 = vmatmul.bf16.gmra.mxu0 %v467
        %v893 = vpop.f32.mrf.mxu0
        %v894 = vadd.f32 %v851, %v893
        %v895 = vpop.f32.mrf.mxu0
        %v896 = vadd.f32 %v853, %v895
        %897 = vmatmul.bf16.gmra.mxu0 %v471
        %v898 = vpop.f32.mrf.mxu0
        %v899 = vadd.f32 %v856, %v898
        %v900 = vpop.f32.mrf.mxu0
        %v901 = vadd.f32 %v858, %v900
        %902 = vmatmul.bf16.gmra.mxu0 %v475
        %v903 = vpop.f32.mrf.mxu0
        %v904 = vadd.f32 %v861, %v903
        %v905 = vpop.f32.mrf.mxu0
        %v906 = vadd.f32 %v863, %v905
        %907 = vmatmul.bf16.gmra.mxu0 %v479
        %v908 = vpop.f32.mrf.mxu0
        %v909 = vadd.f32 %v866, %v908
        %v910 = vpop.f32.mrf.mxu0
        %911 = vdwg.mxu0
        %v912 = vpack.c.bf16 %v879, %v879
        %v913 = vpack.c.bf16 %v881, %v881
        %v914 = vpack.c.bf16 %v884, %v884
        %v915 = vpack.c.bf16 %v886, %v886
        %v916 = vpack.c.bf16 %v889, %v889
        %v917 = vpack.c.bf16 %v891, %v891
        %v918 = vpack.c.bf16 %v894, %v894
        %v919 = vpack.c.bf16 %v896, %v896
        %v920 = vpack.c.bf16 %v899, %v899
        %v921 = vpack.c.bf16 %v901, %v901
        %v922 = vpack.c.bf16 %v904, %v904
        %v923 = vpack.c.bf16 %v906, %v906
        %v924 = vpack.c.bf16 %v909, %v909
        %v925 = vld [vmem:[%s3] sm:$0xff]
        %v926 = vld [vmem:[%s3 + $0x8] sm:$0xff]
        %v927 = vld [vmem:[%s3 + $0x10] sm:$0xff]
        %v928 = vld [vmem:[%s3 + $0x18] sm:$0xff]
        %v929 = vld [vmem:[%s3 + $0x20] sm:$0xff]
        %v930 = vld [vmem:[%s3 + $0x28] sm:$0xff]
        %v931 = vld [vmem:[%s3 + $0x30] sm:$0xff]
        %v932 = vld [vmem:[%s3 + $0x38] sm:$0xff]
        %v933 = vld [vmem:[%s3 + $0x40] sm:$0xff]
        %v934 = vld [vmem:[%s3 + $0x48] sm:$0xff]
        %v935 = vld [vmem:[%s3 + $0x50] sm:$0xff]
        %v936 = vld [vmem:[%s3 + $0x58] sm:$0xff]
        %v937 = vld [vmem:[%s3 + $0x60] sm:$0xff]
        %v938 = vld [vmem:[%s3 + $0x68] sm:$0xff]
        %v939 = vld [vmem:[%s3 + $0x70] sm:$0xff]
        %v940 = vld [vmem:[%s3 + $0x78] sm:$0xff]
        %v941 = vld [vmem:[%s3 + $0x80] sm:$0xff]
        %v942 = vld [vmem:[%s3 + $0x88] sm:$0xff]
        %v943 = vld [vmem:[%s3 + $0x90] sm:$0xff]
        %v944 = vld [vmem:[%s3 + $0x98] sm:$0xff]
        %v945 = vld [vmem:[%s3 + $0xa0] sm:$0xff]
        %v946 = vld [vmem:[%s3 + $0xa8] sm:$0xff]
        %v947 = vld [vmem:[%s3 + $0xb0] sm:$0xff]
        %v948 = vld [vmem:[%s3 + $0xb8] sm:$0xff]
        %v949 = vld [vmem:[%s3 + $0xc0] sm:$0xff]
        %v950 = vld [vmem:[%s3 + $0xc8] sm:$0xff]
        %v951 = vld [vmem:[%s3 + $0xd0] sm:$0xff]
        %v952 = vld [vmem:[%s3 + $0xd8] sm:$0xff]
        %v953 = vld [vmem:[%s3 + $0xe0] sm:$0xff]
        %v954 = vld [vmem:[%s3 + $0xe8] sm:$0xff]
        %v955 = vld [vmem:[%s3 + $0xf0] sm:$0xff]
        %v956 = vld [vmem:[%s3 + $0xf8] sm:$0xff]
        %v957 = vld [vmem:[%s3 + $0x100] sm:$0xff]
        %v958 = vld [vmem:[%s3 + $0x108] sm:$0xff]
        %v959 = vld [vmem:[%s3 + $0x110] sm:$0xff]
        %v960 = vld [vmem:[%s3 + $0x118] sm:$0xff]
        %v961 = vld [vmem:[%s3 + $0x120] sm:$0xff]
        %v962 = vld [vmem:[%s3 + $0x128] sm:$0xff]
        %v963 = vld [vmem:[%s3 + $0x130] sm:$0xff]
        %v964 = vld [vmem:[%s3 + $0x138] sm:$0xff]
        %v965 = vld [vmem:[%s3 + $0x140] sm:$0xff]
        %v966 = vld [vmem:[%s3 + $0x148] sm:$0xff]
        %v967 = vld [vmem:[%s3 + $0x150] sm:$0xff]
        %v968 = vld [vmem:[%s3 + $0x158] sm:$0xff]
        %v969 = vld [vmem:[%s3 + $0x160] sm:$0xff]
        %v970 = vld [vmem:[%s3 + $0x168] sm:$0xff]
        %v971 = vld [vmem:[%s3 + $0x170] sm:$0xff]
        %v972 = vld [vmem:[%s3 + $0x178] sm:$0xff]
        %v973 = vld [vmem:[%s3 + $0x180] sm:$0xff]
        %v974 = vld [vmem:[%s3 + $0x188] sm:$0xff]
        %v975 = vld [vmem:[%s3 + $0x190] sm:$0xff]
        %v976 = vld [vmem:[%s3 + $0x198] sm:$0xff]
        %v977 = vld [vmem:[%s3 + $0x1a0] sm:$0xff]
        %v978 = vld [vmem:[%s3 + $0x1a8] sm:$0xff]
        %v979 = vld [vmem:[%s3 + $0x1b0] sm:$0xff]
        %v980 = vld [vmem:[%s3 + $0x1b8] sm:$0xff]
        %v981 = vld [vmem:[%s3 + $0x1c0] sm:$0xff]
        %v982 = vld [vmem:[%s3 + $0x1c8] sm:$0xff]
        %v983 = vld [vmem:[%s3 + $0x1d0] sm:$0xff]
        %v984 = vld [vmem:[%s3 + $0x1d8] sm:$0xff]
        %v985 = vld [vmem:[%s3 + $0x1e0] sm:$0xff]
        %v986 = vld [vmem:[%s3 + $0x1e8] sm:$0xff]
        %v987 = vld [vmem:[%s3 + $0x1f0] sm:$0xff]
        %v988 = vld [vmem:[%s3 + $0x1f8] sm:$0xff]
        %v989 = vld [vmem:[%s3 + $0x200] sm:$0xff]
        %v990 = vld [vmem:[%s3 + $0x208] sm:$0xff]
        %v991 = vld [vmem:[%s3 + $0x210] sm:$0xff]
        %v992 = vld [vmem:[%s3 + $0x218] sm:$0xff]
        %v993 = vld [vmem:[%s3 + $0x220] sm:$0xff]
        %v994 = vld [vmem:[%s3 + $0x228] sm:$0xff]
        %v995 = vld [vmem:[%s3 + $0x230] sm:$0xff]
        %v996 = vld [vmem:[%s3 + $0x238] sm:$0xff]
        %v997 = vld [vmem:[%s3 + $0x240] sm:$0xff]
        %v998 = vld [vmem:[%s3 + $0x248] sm:$0xff]
        %v999 = vld [vmem:[%s3 + $0x250] sm:$0xff]
        %v1000 = vld [vmem:[%s3 + $0x258] sm:$0xff]
        %v1001 = vld [vmem:[%s3 + $0x260] sm:$0xff]
        %v1002 = vld [vmem:[%s3 + $0x268] sm:$0xff]
        %v1003 = vld [vmem:[%s3 + $0x270] sm:$0xff]
        %v1004 = vld [vmem:[%s3 + $0x278] sm:$0xff]
        %v1005 = vld [vmem:[%s3 + $0x280] sm:$0xff]
        %v1006 = vld [vmem:[%s3 + $0x288] sm:$0xff]
        %v1007 = vld [vmem:[%s3 + $0x290] sm:$0xff]
        %v1008 = vld [vmem:[%s3 + $0x298] sm:$0xff]
        %v1009 = vld [vmem:[%s3 + $0x2a0] sm:$0xff]
        %v1010 = vld [vmem:[%s3 + $0x2a8] sm:$0xff]
        %v1011 = vld [vmem:[%s3 + $0x2b0] sm:$0xff]
        %v1012 = vld [vmem:[%s3 + $0x2b8] sm:$0xff]
        %v1013 = vld [vmem:[%s3 + $0x2c0] sm:$0xff]
        %v1014 = vld [vmem:[%s3 + $0x2c8] sm:$0xff]
        %v1015 = vld [vmem:[%s3 + $0x2d0] sm:$0xff]
        %v1016 = vld [vmem:[%s3 + $0x2d8] sm:$0xff]
        %v1017 = vld [vmem:[%s3 + $0x2e0] sm:$0xff]
        %v1018 = vld [vmem:[%s3 + $0x2e8] sm:$0xff]
        %v1019 = vld [vmem:[%s3 + $0x2f0] sm:$0xff]
        %v1020 = vld [vmem:[%s3 + $0x2f8] sm:$0xff]
        %v1021 = vld [vmem:[%s3 + $0x300] sm:$0xff]
        %v1022 = vld [vmem:[%s3 + $0x308] sm:$0xff]
        %v1023 = vld [vmem:[%s3 + $0x310] sm:$0xff]
        %v1024 = vld [vmem:[%s3 + $0x318] sm:$0xff]
        %v1025 = vld [vmem:[%s3 + $0x320] sm:$0xff]
        %v1026 = vld [vmem:[%s3 + $0x328] sm:$0xff]
        %v1027 = vld [vmem:[%s3 + $0x330] sm:$0xff]
        %v1028 = vld [vmem:[%s3 + $0x338] sm:$0xff]
        %v1029 = vld [vmem:[%s3 + $0x340] sm:$0xff]
        %v1030 = vld [vmem:[%s3 + $0x348] sm:$0xff]
        %v1031 = vld [vmem:[%s3 + $0x350] sm:$0xff]
        %v1032 = vld [vmem:[%s3 + $0x358] sm:$0xff]
        %v1033 = vld [vmem:[%s3 + $0x360] sm:$0xff]
        %v1034 = vld [vmem:[%s3 + $0x368] sm:$0xff]
        %v1035 = vld [vmem:[%s3 + $0x370] sm:$0xff]
        %v1036 = vld [vmem:[%s3 + $0x378] sm:$0xff]
        %v1037 = vld [vmem:[%s3 + $0x380] sm:$0xff]
        %v1038 = vld [vmem:[%s3 + $0x388] sm:$0xff]
        %v1039 = vld [vmem:[%s3 + $0x390] sm:$0xff]
        %v1040 = vld [vmem:[%s3 + $0x398] sm:$0xff]
        %v1041 = vld [vmem:[%s3 + $0x3a0] sm:$0xff]
        %v1042 = vld [vmem:[%s3 + $0x3a8] sm:$0xff]
        %v1043 = vld [vmem:[%s3 + $0x3b0] sm:$0xff]
        %v1044 = vld [vmem:[%s3 + $0x3b8] sm:$0xff]
        %v1045 = vld [vmem:[%s3 + $0x3c0] sm:$0xff]
        %v1046 = vld [vmem:[%s3 + $0x3c8] sm:$0xff]
        %v1047 = vld [vmem:[%s3 + $0x3d0] sm:$0xff]
        %v1048 = vld [vmem:[%s3 + $0x3d8] sm:$0xff]
        %v1049 = vld [vmem:[%s3 + $0x3e0] sm:$0xff]
        %v1050 = vld [vmem:[%s3 + $0x3e8] sm:$0xff]
        %v1051 = vld [vmem:[%s3 + $0x3f0] sm:$0xff]
        %v1052 = vld [vmem:[%s3 + $0x3f8] sm:$0xff]
        %v1053 = vld [vmem:[%s4] sm:$0xf]
        %v1055 = vperm.slane %v1053, 0
        %v1056 = vperm.slane %v1053, 1
        %v1057 = vperm.slane %v1053, 2
        %v1058 = vperm.slane %v1053, 3
        %v1191 = vunpack.c.l.b16 %v925
        %v1192 = vunpack.c.h.b16 %v925
        %v1193 = vunpack.c.l.b16 %v926
        %v1194 = vunpack.c.h.b16 %v926
        %v1195 = vunpack.c.l.b16 %v927
        %v1196 = vunpack.c.h.b16 %v927
        %v1197 = vunpack.c.l.b16 %v928
        %v1198 = vunpack.c.h.b16 %v928
        %v1199 = vunpack.c.l.b16 %v929
        %v1200 = vunpack.c.h.b16 %v929
        %v1201 = vunpack.c.l.b16 %v930
        %v1202 = vunpack.c.h.b16 %v930
        %v1203 = vunpack.c.l.b16 %v931
        %v1204 = vunpack.c.h.b16 %v931
        %v1205 = vunpack.c.l.b16 %v932
        %v1206 = vunpack.c.h.b16 %v932
        %v1207 = vunpack.c.l.b16 %v933
        %v1208 = vunpack.c.h.b16 %v933
        %v1209 = vunpack.c.l.b16 %v934
        %v1210 = vunpack.c.h.b16 %v934
        %v1211 = vunpack.c.l.b16 %v935
        %v1212 = vunpack.c.h.b16 %v935
        %v1213 = vunpack.c.l.b16 %v936
        %v1214 = vunpack.c.h.b16 %v936
        %v1215 = vunpack.c.l.b16 %v937
        %v1216 = vunpack.c.h.b16 %v937
        %v1217 = vunpack.c.l.b16 %v938
        %v1218 = vunpack.c.h.b16 %v938
        %v1219 = vunpack.c.l.b16 %v939
        %v1220 = vunpack.c.h.b16 %v939
        %v1221 = vunpack.c.l.b16 %v940
        %v1222 = vunpack.c.h.b16 %v940
        %v1223 = vunpack.c.l.b16 %v941
        %v1224 = vunpack.c.h.b16 %v941
        %v1225 = vunpack.c.l.b16 %v942
        %v1226 = vunpack.c.h.b16 %v942
        %v1227 = vunpack.c.l.b16 %v943
        %v1228 = vunpack.c.h.b16 %v943
        %v1229 = vunpack.c.l.b16 %v944
        %v1230 = vunpack.c.h.b16 %v944
        %v1231 = vunpack.c.l.b16 %v945
        %v1232 = vunpack.c.h.b16 %v945
        %v1233 = vunpack.c.l.b16 %v946
        %v1234 = vunpack.c.h.b16 %v946
        %v1235 = vunpack.c.l.b16 %v947
        %v1236 = vunpack.c.h.b16 %v947
        %v1237 = vunpack.c.l.b16 %v948
        %v1238 = vunpack.c.h.b16 %v948
        %v1239 = vunpack.c.l.b16 %v949
        %v1240 = vunpack.c.h.b16 %v949
        %v1241 = vunpack.c.l.b16 %v950
        %v1242 = vunpack.c.h.b16 %v950
        %v1243 = vunpack.c.l.b16 %v951
        %v1244 = vunpack.c.h.b16 %v951
        %v1245 = vunpack.c.l.b16 %v952
        %v1246 = vunpack.c.h.b16 %v952
        %v1247 = vunpack.c.l.b16 %v953
        %v1248 = vunpack.c.h.b16 %v953
        %v1249 = vunpack.c.l.b16 %v954
        %v1250 = vunpack.c.h.b16 %v954
        %v1251 = vunpack.c.l.b16 %v955
        %v1252 = vunpack.c.h.b16 %v955
        %v1253 = vunpack.c.l.b16 %v956
        %v1254 = vunpack.c.h.b16 %v956
        %v1255 = vunpack.c.l.b16 %v957
        %v1256 = vunpack.c.h.b16 %v957
        %v1257 = vunpack.c.l.b16 %v958
        %v1258 = vunpack.c.h.b16 %v958
        %v1259 = vunpack.c.l.b16 %v959
        %v1260 = vunpack.c.h.b16 %v959
        %v1261 = vunpack.c.l.b16 %v960
        %v1262 = vunpack.c.h.b16 %v960
        %v1263 = vunpack.c.l.b16 %v961
        %v1264 = vunpack.c.h.b16 %v961
        %v1265 = vunpack.c.l.b16 %v962
        %v1266 = vunpack.c.h.b16 %v962
        %v1267 = vunpack.c.l.b16 %v963
        %v1268 = vunpack.c.h.b16 %v963
        %v1269 = vunpack.c.l.b16 %v964
        %v1270 = vunpack.c.h.b16 %v964
        %v1271 = vunpack.c.l.b16 %v965
        %v1272 = vunpack.c.h.b16 %v965
        %v1273 = vunpack.c.l.b16 %v966
        %v1274 = vunpack.c.h.b16 %v966
        %v1275 = vunpack.c.l.b16 %v967
        %v1276 = vunpack.c.h.b16 %v967
        %v1277 = vunpack.c.l.b16 %v968
        %v1278 = vunpack.c.h.b16 %v968
        %v1279 = vunpack.c.l.b16 %v969
        %v1280 = vunpack.c.h.b16 %v969
        %v1281 = vunpack.c.l.b16 %v970
        %v1282 = vunpack.c.h.b16 %v970
        %v1283 = vunpack.c.l.b16 %v971
        %v1284 = vunpack.c.h.b16 %v971
        %v1285 = vunpack.c.l.b16 %v972
        %v1286 = vunpack.c.h.b16 %v972
        %v1287 = vunpack.c.l.b16 %v973
        %v1288 = vunpack.c.h.b16 %v973
        %v1289 = vunpack.c.l.b16 %v974
        %v1290 = vunpack.c.h.b16 %v974
        %v1291 = vunpack.c.l.b16 %v975
        %v1292 = vunpack.c.h.b16 %v975
        %v1293 = vunpack.c.l.b16 %v976
        %v1294 = vunpack.c.h.b16 %v976
        %v1295 = vunpack.c.l.b16 %v977
        %v1296 = vunpack.c.h.b16 %v977
        %v1297 = vunpack.c.l.b16 %v978
        %v1298 = vunpack.c.h.b16 %v978
        %v1299 = vunpack.c.l.b16 %v979
        %v1300 = vunpack.c.h.b16 %v979
        %v1301 = vunpack.c.l.b16 %v980
        %v1302 = vunpack.c.h.b16 %v980
        %v1303 = vunpack.c.l.b16 %v981
        %v1304 = vunpack.c.h.b16 %v981
        %v1305 = vunpack.c.l.b16 %v982
        %v1306 = vunpack.c.h.b16 %v982
        %v1307 = vunpack.c.l.b16 %v983
        %v1308 = vunpack.c.h.b16 %v983
        %v1309 = vunpack.c.l.b16 %v984
        %v1310 = vunpack.c.h.b16 %v984
        %v1311 = vunpack.c.l.b16 %v985
        %v1312 = vunpack.c.h.b16 %v985
        %v1313 = vunpack.c.l.b16 %v986
        %v1314 = vunpack.c.h.b16 %v986
        %v1315 = vunpack.c.l.b16 %v987
        %v1316 = vunpack.c.h.b16 %v987
        %v1317 = vunpack.c.l.b16 %v988
        %v1318 = vunpack.c.h.b16 %v988
        %v1319 = vunpack.c.l.b16 %v989
        %v1320 = vunpack.c.h.b16 %v989
        %v1321 = vunpack.c.l.b16 %v990
        %v1322 = vunpack.c.h.b16 %v990
        %v1323 = vunpack.c.l.b16 %v991
        %v1324 = vunpack.c.h.b16 %v991
        %v1325 = vunpack.c.l.b16 %v992
        %v1326 = vunpack.c.h.b16 %v992
        %v1327 = vunpack.c.l.b16 %v993
        %v1328 = vunpack.c.h.b16 %v993
        %v1329 = vunpack.c.l.b16 %v994
        %v1330 = vunpack.c.h.b16 %v994
        %v1331 = vunpack.c.l.b16 %v995
        %v1332 = vunpack.c.h.b16 %v995
        %v1333 = vunpack.c.l.b16 %v996
        %v1334 = vunpack.c.h.b16 %v996
        %v1335 = vunpack.c.l.b16 %v997
        %v1336 = vunpack.c.h.b16 %v997
        %v1337 = vunpack.c.l.b16 %v998
        %v1338 = vunpack.c.h.b16 %v998
        %v1339 = vunpack.c.l.b16 %v999
        %v1340 = vunpack.c.h.b16 %v999
        %v1341 = vunpack.c.l.b16 %v1000
        %v1342 = vunpack.c.h.b16 %v1000
        %v1343 = vunpack.c.l.b16 %v1001
        %v1344 = vunpack.c.h.b16 %v1001
        %v1345 = vunpack.c.l.b16 %v1002
        %v1346 = vunpack.c.h.b16 %v1002
        %v1347 = vunpack.c.l.b16 %v1003
        %v1348 = vunpack.c.h.b16 %v1003
        %v1349 = vunpack.c.l.b16 %v1004
        %v1350 = vunpack.c.h.b16 %v1004
        %v1351 = vunpack.c.l.b16 %v1005
        %v1352 = vunpack.c.h.b16 %v1005
        %v1353 = vunpack.c.l.b16 %v1006
        %v1354 = vunpack.c.h.b16 %v1006
        %v1355 = vunpack.c.l.b16 %v1007
        %v1356 = vunpack.c.h.b16 %v1007
        %v1357 = vunpack.c.l.b16 %v1008
        %v1358 = vunpack.c.h.b16 %v1008
        %v1359 = vunpack.c.l.b16 %v1009
        %v1360 = vunpack.c.h.b16 %v1009
        %v1361 = vunpack.c.l.b16 %v1010
        %v1362 = vunpack.c.h.b16 %v1010
        %v1363 = vunpack.c.l.b16 %v1011
        %v1364 = vunpack.c.h.b16 %v1011
        %v1365 = vunpack.c.l.b16 %v1012
        %v1366 = vunpack.c.h.b16 %v1012
        %v1367 = vunpack.c.l.b16 %v1013
        %v1368 = vunpack.c.h.b16 %v1013
        %v1369 = vunpack.c.l.b16 %v1014
        %v1370 = vunpack.c.h.b16 %v1014
        %v1371 = vunpack.c.l.b16 %v1015
        %v1372 = vunpack.c.h.b16 %v1015
        %v1373 = vunpack.c.l.b16 %v1016
        %v1374 = vunpack.c.h.b16 %v1016
        %v1375 = vunpack.c.l.b16 %v1017
        %v1376 = vunpack.c.h.b16 %v1017
        %v1377 = vunpack.c.l.b16 %v1018
        %v1378 = vunpack.c.h.b16 %v1018
        %v1379 = vunpack.c.l.b16 %v1019
        %v1380 = vunpack.c.h.b16 %v1019
        %v1381 = vunpack.c.l.b16 %v1020
        %v1382 = vunpack.c.h.b16 %v1020
        %v1383 = vunpack.c.l.b16 %v1021
        %v1384 = vunpack.c.h.b16 %v1021
        %v1385 = vunpack.c.l.b16 %v1022
        %v1386 = vunpack.c.h.b16 %v1022
        %v1387 = vunpack.c.l.b16 %v1023
        %v1388 = vunpack.c.h.b16 %v1023
        %v1389 = vunpack.c.l.b16 %v1024
        %v1390 = vunpack.c.h.b16 %v1024
        %v1391 = vunpack.c.l.b16 %v1025
        %v1392 = vunpack.c.h.b16 %v1025
        %v1393 = vunpack.c.l.b16 %v1026
        %v1394 = vunpack.c.h.b16 %v1026
        %v1395 = vunpack.c.l.b16 %v1027
        %v1396 = vunpack.c.h.b16 %v1027
        %v1397 = vunpack.c.l.b16 %v1028
        %v1398 = vunpack.c.h.b16 %v1028
        %v1399 = vunpack.c.l.b16 %v1029
        %v1400 = vunpack.c.h.b16 %v1029
        %v1401 = vunpack.c.l.b16 %v1030
        %v1402 = vunpack.c.h.b16 %v1030
        %v1403 = vunpack.c.l.b16 %v1031
        %v1404 = vunpack.c.h.b16 %v1031
        %v1405 = vunpack.c.l.b16 %v1032
        %v1406 = vunpack.c.h.b16 %v1032
        %v1407 = vunpack.c.l.b16 %v1033
        %v1408 = vunpack.c.h.b16 %v1033
        %v1409 = vunpack.c.l.b16 %v1034
        %v1410 = vunpack.c.h.b16 %v1034
        %v1411 = vunpack.c.l.b16 %v1035
        %v1412 = vunpack.c.h.b16 %v1035
        %v1413 = vunpack.c.l.b16 %v1036
        %v1414 = vunpack.c.h.b16 %v1036
        %v1415 = vunpack.c.l.b16 %v1037
        %v1416 = vunpack.c.h.b16 %v1037
        %v1417 = vunpack.c.l.b16 %v1038
        %v1418 = vunpack.c.h.b16 %v1038
        %v1419 = vunpack.c.l.b16 %v1039
        %v1420 = vunpack.c.h.b16 %v1039
        %v1421 = vunpack.c.l.b16 %v1040
        %v1422 = vunpack.c.h.b16 %v1040
        %v1423 = vunpack.c.l.b16 %v1041
        %v1424 = vunpack.c.h.b16 %v1041
        %v1425 = vunpack.c.l.b16 %v1042
        %v1426 = vunpack.c.h.b16 %v1042
        %v1427 = vunpack.c.l.b16 %v1043
        %v1428 = vunpack.c.h.b16 %v1043
        %v1429 = vunpack.c.l.b16 %v1044
        %v1430 = vunpack.c.h.b16 %v1044
        %v1431 = vunpack.c.l.b16 %v1045
        %v1432 = vunpack.c.h.b16 %v1045
        %v1433 = vunpack.c.l.b16 %v1046
        %v1434 = vunpack.c.h.b16 %v1046
        %v1435 = vunpack.c.l.b16 %v1047
        %v1436 = vunpack.c.h.b16 %v1047
        %v1437 = vunpack.c.l.b16 %v1048
        %v1438 = vunpack.c.h.b16 %v1048
        %v1439 = vunpack.c.l.b16 %v1049
        %v1440 = vunpack.c.h.b16 %v1049
        %v1441 = vunpack.c.l.b16 %v1050
        %v1442 = vunpack.c.h.b16 %v1050
        %v1443 = vunpack.c.l.b16 %v1051
        %v1444 = vunpack.c.h.b16 %v1051
        %v1445 = vunpack.c.l.b16 %v1052
        %v1446 = vunpack.c.h.b16 %v1052
        %v1447 = vpack.c.b16 %v1195, %v1191
        %v1448 = vpack.c.b16 %v1196, %v1192
        %v1449 = vpack.c.b16 %v1197, %v1193
        %v1450 = vpack.c.b16 %v1198, %v1194
        %v1451 = vpack.c.b16 %v1203, %v1199
        %v1452 = vpack.c.b16 %v1204, %v1200
        %v1453 = vpack.c.b16 %v1205, %v1201
        %v1454 = vpack.c.b16 %v1206, %v1202
        %v1455 = vpack.c.b16 %v1211, %v1207
        %v1456 = vpack.c.b16 %v1212, %v1208
        %v1457 = vpack.c.b16 %v1213, %v1209
        %v1458 = vpack.c.b16 %v1214, %v1210
        %v1459 = vpack.c.b16 %v1219, %v1215
        %v1460 = vpack.c.b16 %v1220, %v1216
        %v1461 = vpack.c.b16 %v1221, %v1217
        %v1462 = vpack.c.b16 %v1222, %v1218
        %v1463 = vpack.c.b16 %v1227, %v1223
        %v1464 = vpack.c.b16 %v1228, %v1224
        %v1465 = vpack.c.b16 %v1229, %v1225
        %v1466 = vpack.c.b16 %v1230, %v1226
        %v1467 = vpack.c.b16 %v1235, %v1231
        %v1468 = vpack.c.b16 %v1236, %v1232
        %v1469 = vpack.c.b16 %v1237, %v1233
        %v1470 = vpack.c.b16 %v1238, %v1234
        %v1471 = vpack.c.b16 %v1243, %v1239
        %v1472 = vpack.c.b16 %v1244, %v1240
        %v1473 = vpack.c.b16 %v1245, %v1241
        %v1474 = vpack.c.b16 %v1246, %v1242
        %v1475 = vpack.c.b16 %v1251, %v1247
        %v1476 = vpack.c.b16 %v1252, %v1248
        %v1477 = vpack.c.b16 %v1253, %v1249
        %v1478 = vpack.c.b16 %v1254, %v1250
        %v1479 = vpack.c.b16 %v1259, %v1255
        %v1480 = vpack.c.b16 %v1260, %v1256
        %v1481 = vpack.c.b16 %v1261, %v1257
        %v1482 = vpack.c.b16 %v1262, %v1258
        %v1483 = vpack.c.b16 %v1267, %v1263
        %v1484 = vpack.c.b16 %v1268, %v1264
        %v1485 = vpack.c.b16 %v1269, %v1265
        %v1486 = vpack.c.b16 %v1270, %v1266
        %v1487 = vpack.c.b16 %v1275, %v1271
        %v1488 = vpack.c.b16 %v1276, %v1272
        %v1489 = vpack.c.b16 %v1277, %v1273
        %v1490 = vpack.c.b16 %v1278, %v1274
        %v1491 = vpack.c.b16 %v1283, %v1279
        %v1492 = vpack.c.b16 %v1284, %v1280
        %v1493 = vpack.c.b16 %v1285, %v1281
        %v1494 = vpack.c.b16 %v1286, %v1282
        %v1495 = vpack.c.b16 %v1291, %v1287
        %v1496 = vpack.c.b16 %v1292, %v1288
        %v1497 = vpack.c.b16 %v1293, %v1289
        %v1498 = vpack.c.b16 %v1294, %v1290
        %v1499 = vpack.c.b16 %v1299, %v1295
        %v1500 = vpack.c.b16 %v1300, %v1296
        %v1501 = vpack.c.b16 %v1301, %v1297
        %v1502 = vpack.c.b16 %v1302, %v1298
        %v1503 = vpack.c.b16 %v1307, %v1303
        %v1504 = vpack.c.b16 %v1308, %v1304
        %v1505 = vpack.c.b16 %v1309, %v1305
        %v1506 = vpack.c.b16 %v1310, %v1306
        %v1507 = vpack.c.b16 %v1315, %v1311
        %v1508 = vpack.c.b16 %v1316, %v1312
        %v1509 = vpack.c.b16 %v1317, %v1313
        %v1510 = vpack.c.b16 %v1318, %v1314
        %v1511 = vpack.c.b16 %v1323, %v1319
        %v1512 = vpack.c.b16 %v1324, %v1320
        %v1513 = vpack.c.b16 %v1325, %v1321
        %v1514 = vpack.c.b16 %v1326, %v1322
        %v1515 = vpack.c.b16 %v1331, %v1327
        %v1516 = vpack.c.b16 %v1332, %v1328
        %v1517 = vpack.c.b16 %v1333, %v1329
        %v1518 = vpack.c.b16 %v1334, %v1330
        %v1519 = vpack.c.b16 %v1339, %v1335
        %v1520 = vpack.c.b16 %v1340, %v1336
        %v1521 = vpack.c.b16 %v1341, %v1337
        %v1522 = vpack.c.b16 %v1342, %v1338
        %v1523 = vpack.c.b16 %v1347, %v1343
        %v1524 = vpack.c.b16 %v1348, %v1344
        %v1525 = vpack.c.b16 %v1349, %v1345
        %v1526 = vpack.c.b16 %v1350, %v1346
        %v1527 = vpack.c.b16 %v1355, %v1351
        %v1528 = vpack.c.b16 %v1356, %v1352
        %v1529 = vpack.c.b16 %v1357, %v1353
        %v1530 = vpack.c.b16 %v1358, %v1354
        %v1531 = vpack.c.b16 %v1363, %v1359
        %v1532 = vpack.c.b16 %v1364, %v1360
        %v1533 = vpack.c.b16 %v1365, %v1361
        %v1534 = vpack.c.b16 %v1366, %v1362
        %v1535 = vpack.c.b16 %v1371, %v1367
        %v1536 = vpack.c.b16 %v1372, %v1368
        %v1537 = vpack.c.b16 %v1373, %v1369
        %v1538 = vpack.c.b16 %v1374, %v1370
        %v1539 = vpack.c.b16 %v1379, %v1375
        %v1540 = vpack.c.b16 %v1380, %v1376
        %v1541 = vpack.c.b16 %v1381, %v1377
        %v1542 = vpack.c.b16 %v1382, %v1378
        %v1543 = vpack.c.b16 %v1387, %v1383
        %v1544 = vpack.c.b16 %v1388, %v1384
        %v1545 = vpack.c.b16 %v1389, %v1385
        %v1546 = vpack.c.b16 %v1390, %v1386
        %v1547 = vpack.c.b16 %v1395, %v1391
        %v1548 = vpack.c.b16 %v1396, %v1392
        %v1549 = vpack.c.b16 %v1397, %v1393
        %v1550 = vpack.c.b16 %v1398, %v1394
        %v1551 = vpack.c.b16 %v1403, %v1399
        %v1552 = vpack.c.b16 %v1404, %v1400
        %v1553 = vpack.c.b16 %v1405, %v1401
        %v1554 = vpack.c.b16 %v1406, %v1402
        %v1555 = vpack.c.b16 %v1411, %v1407
        %v1556 = vpack.c.b16 %v1412, %v1408
        %v1557 = vpack.c.b16 %v1413, %v1409
        %v1558 = vpack.c.b16 %v1414, %v1410
        %v1559 = vpack.c.b16 %v1419, %v1415
        %v1560 = vpack.c.b16 %v1420, %v1416
        %v1561 = vpack.c.b16 %v1421, %v1417
        %v1562 = vpack.c.b16 %v1422, %v1418
        %v1563 = vpack.c.b16 %v1427, %v1423
        %v1564 = vpack.c.b16 %v1428, %v1424
        %v1565 = vpack.c.b16 %v1429, %v1425
        %v1566 = vpack.c.b16 %v1430, %v1426
        %v1567 = vpack.c.b16 %v1435, %v1431
        %v1568 = vpack.c.b16 %v1436, %v1432
        %v1569 = vpack.c.b16 %v1437, %v1433
        %v1570 = vpack.c.b16 %v1438, %v1434
        %v1571 = vpack.c.b16 %v1443, %v1439
        %v1572 = vpack.c.b16 %v1444, %v1440
        %v1573 = vpack.c.b16 %v1445, %v1441
        %v1574 = vpack.c.b16 %v1446, %v1442
        %1703 = vmatpush.bf16.msra.mxu0 %v1475
        %1704 = vmatpush.bf16.msra.mxu0 %v1471
        %1705 = vmatpush.bf16.msra.mxu0 %v1467
        %1706 = vmatpush.bf16.msra.mxu0 %v1463
        %1707 = vmatpush.bf16.msra.mxu0 %v1459
        %1708 = vmatpush.bf16.msra.mxu0 %v1455
        %1709 = vmatpush.bf16.msra.mxu0 %v1451
        %1710 = vmatpush.bf16.msra.mxu0 %v1447
        %1711 = vmatmul.bf16.gmra.mxu0 %v452
        %v1712 = vpop.f32.mrf.mxu0
        %v1713 = vadd.f32 %v1055, %v1712
        %v1714 = vpop.f32.mrf.mxu0
        %v1715 = vadd.f32 %v1055, %v1714
        %1716 = vmatmul.bf16.gmra.mxu0 %v456
        %v1717 = vpop.f32.mrf.mxu0
        %v1718 = vadd.f32 %v1055, %v1717
        %v1719 = vpop.f32.mrf.mxu0
        %v1720 = vadd.f32 %v1055, %v1719
        %1721 = vmatmul.bf16.gmra.mxu0 %v460
        %v1722 = vpop.f32.mrf.mxu0
        %v1723 = vadd.f32 %v1055, %v1722
        %v1724 = vpop.f32.mrf.mxu0
        %v1725 = vadd.f32 %v1055, %v1724
        %1726 = vmatmul.bf16.gmra.mxu0 %v464
        %v1727 = vpop.f32.mrf.mxu0
        %v1728 = vadd.f32 %v1055, %v1727
        %v1729 = vpop.f32.mrf.mxu0
        %v1730 = vadd.f32 %v1055, %v1729
        %1731 = vmatmul.bf16.gmra.mxu0 %v468
        %v1732 = vpop.f32.mrf.mxu0
        %v1733 = vadd.f32 %v1055, %v1732
        %v1734 = vpop.f32.mrf.mxu0
        %v1735 = vadd.f32 %v1055, %v1734
        %1736 = vmatmul.bf16.gmra.mxu0 %v472
        %v1737 = vpop.f32.mrf.mxu0
        %v1738 = vadd.f32 %v1055, %v1737
        %v1739 = vpop.f32.mrf.mxu0
        %v1740 = vadd.f32 %v1055, %v1739
        %1741 = vmatmul.bf16.gmra.mxu0 %v476
        %v1742 = vpop.f32.mrf.mxu0
        %v1743 = vadd.f32 %v1055, %v1742
        %v1744 = vpop.f32.mrf.mxu0
        %1745 = vdwg.mxu0
        %1746 = vmatpush.bf16.msra.mxu0 %v1507
        %1747 = vmatpush.bf16.msra.mxu0 %v1503
        %1748 = vmatpush.bf16.msra.mxu0 %v1499
        %1749 = vmatpush.bf16.msra.mxu0 %v1495
        %1750 = vmatpush.bf16.msra.mxu0 %v1491
        %1751 = vmatpush.bf16.msra.mxu0 %v1487
        %1752 = vmatpush.bf16.msra.mxu0 %v1483
        %1753 = vmatpush.bf16.msra.mxu0 %v1479
        %1754 = vmatmul.bf16.gmra.mxu0 %v453
        %v1755 = vpop.f32.mrf.mxu0
        %v1756 = vadd.f32 %v1713, %v1755
        %v1757 = vpop.f32.mrf.mxu0
        %v1758 = vadd.f32 %v1715, %v1757
        %1759 = vmatmul.bf16.gmra.mxu0 %v457
        %v1760 = vpop.f32.mrf.mxu0
        %v1761 = vadd.f32 %v1718, %v1760
        %v1762 = vpop.f32.mrf.mxu0
        %v1763 = vadd.f32 %v1720, %v1762
        %1764 = vmatmul.bf16.gmra.mxu0 %v461
        %v1765 = vpop.f32.mrf.mxu0
        %v1766 = vadd.f32 %v1723, %v1765
        %v1767 = vpop.f32.mrf.mxu0
        %v1768 = vadd.f32 %v1725, %v1767
        %1769 = vmatmul.bf16.gmra.mxu0 %v465
        %v1770 = vpop.f32.mrf.mxu0
        %v1771 = vadd.f32 %v1728, %v1770
        %v1772 = vpop.f32.mrf.mxu0
        %v1773 = vadd.f32 %v1730, %v1772
        %1774 = vmatmul.bf16.gmra.mxu0 %v469
        %v1775 = vpop.f32.mrf.mxu0
        %v1776 = vadd.f32 %v1733, %v1775
        %v1777 = vpop.f32.mrf.mxu0
        %v1778 = vadd.f32 %v1735, %v1777
        %1779 = vmatmul.bf16.gmra.mxu0 %v473
        %v1780 = vpop.f32.mrf.mxu0
        %v1781 = vadd.f32 %v1738, %v1780
        %v1782 = vpop.f32.mrf.mxu0
        %v1783 = vadd.f32 %v1740, %v1782
        %1784 = vmatmul.bf16.gmra.mxu0 %v477
        %v1785 = vpop.f32.mrf.mxu0
        %v1786 = vadd.f32 %v1743, %v1785
        %v1787 = vpop.f32.mrf.mxu0
        %1788 = vdwg.mxu0
        %1789 = vmatpush.bf16.msra.mxu0 %v1539
        %1790 = vmatpush.bf16.msra.mxu0 %v1535
        %1791 = vmatpush.bf16.msra.mxu0 %v1531
        %1792 = vmatpush.bf16.msra.mxu0 %v1527
        %1793 = vmatpush.bf16.msra.mxu0 %v1523
        %1794 = vmatpush.bf16.msra.mxu0 %v1519
        %1795 = vmatpush.bf16.msra.mxu0 %v1515
        %1796 = vmatpush.bf16.msra.mxu0 %v1511
        %1797 = vmatmul.bf16.gmra.mxu0 %v454
        %v1798 = vpop.f32.mrf.mxu0
        %v1799 = vadd.f32 %v1756, %v1798
        %v1800 = vpop.f32.mrf.mxu0
        %v1801 = vadd.f32 %v1758, %v1800
        %1802 = vmatmul.bf16.gmra.mxu0 %v458
        %v1803 = vpop.f32.mrf.mxu0
        %v1804 = vadd.f32 %v1761, %v1803
        %v1805 = vpop.f32.mrf.mxu0
        %v1806 = vadd.f32 %v1763, %v1805
        %1807 = vmatmul.bf16.gmra.mxu0 %v462
        %v1808 = vpop.f32.mrf.mxu0
        %v1809 = vadd.f32 %v1766, %v1808
        %v1810 = vpop.f32.mrf.mxu0
        %v1811 = vadd.f32 %v1768, %v1810
        %1812 = vmatmul.bf16.gmra.mxu0 %v466
        %v1813 = vpop.f32.mrf.mxu0
        %v1814 = vadd.f32 %v1771, %v1813
        %v1815 = vpop.f32.mrf.mxu0
        %v1816 = vadd.f32 %v1773, %v1815
        %1817 = vmatmul.bf16.gmra.mxu0 %v470
        %v1818 = vpop.f32.mrf.mxu0
        %v1819 = vadd.f32 %v1776, %v1818
        %v1820 = vpop.f32.mrf.mxu0
        %v1821 = vadd.f32 %v1778, %v1820
        %1822 = vmatmul.bf16.gmra.mxu0 %v474
        %v1823 = vpop.f32.mrf.mxu0
        %v1824 = vadd.f32 %v1781, %v1823
        %v1825 = vpop.f32.mrf.mxu0
        %v1826 = vadd.f32 %v1783, %v1825
        %1827 = vmatmul.bf16.gmra.mxu0 %v478
        %v1828 = vpop.f32.mrf.mxu0
        %v1829 = vadd.f32 %v1786, %v1828
        %v1830 = vpop.f32.mrf.mxu0
        %1831 = vdwg.mxu0
        %1832 = vmatpush.bf16.msra.mxu0 %v1571
        %1833 = vmatpush.bf16.msra.mxu0 %v1567
        %1834 = vmatpush.bf16.msra.mxu0 %v1563
        %1835 = vmatpush.bf16.msra.mxu0 %v1559
        %1836 = vmatpush.bf16.msra.mxu0 %v1555
        %1837 = vmatpush.bf16.msra.mxu0 %v1551
        %1838 = vmatpush.bf16.msra.mxu0 %v1547
        %1839 = vmatpush.bf16.msra.mxu0 %v1543
        %1840 = vmatmul.bf16.gmra.mxu0 %v455
        %v1841 = vpop.f32.mrf.mxu0
        %v1842 = vadd.f32 %v1799, %v1841
        %v1843 = vpop.f32.mrf.mxu0
        %v1844 = vadd.f32 %v1801, %v1843
        %1845 = vmatmul.bf16.gmra.mxu0 %v459
        %v1846 = vpop.f32.mrf.mxu0
        %v1847 = vadd.f32 %v1804, %v1846
        %v1848 = vpop.f32.mrf.mxu0
        %v1849 = vadd.f32 %v1806, %v1848
        %1850 = vmatmul.bf16.gmra.mxu0 %v463
        %v1851 = vpop.f32.mrf.mxu0
        %v1852 = vadd.f32 %v1809, %v1851
        %v1853 = vpop.f32.mrf.mxu0
        %v1854 = vadd.f32 %v1811, %v1853
        %1855 = vmatmul.bf16.gmra.mxu0 %v467
        %v1856 = vpop.f32.mrf.mxu0
        %v1857 = vadd.f32 %v1814, %v1856
        %v1858 = vpop.f32.mrf.mxu0
        %v1859 = vadd.f32 %v1816, %v1858
        %1860 = vmatmul.bf16.gmra.mxu0 %v471
        %v1861 = vpop.f32.mrf.mxu0
        %v1862 = vadd.f32 %v1819, %v1861
        %v1863 = vpop.f32.mrf.mxu0
        %v1864 = vadd.f32 %v1821, %v1863
        %1865 = vmatmul.bf16.gmra.mxu0 %v475
        %v1866 = vpop.f32.mrf.mxu0
        %v1867 = vadd.f32 %v1824, %v1866
        %v1868 = vpop.f32.mrf.mxu0
        %v1869 = vadd.f32 %v1826, %v1868
        %1870 = vmatmul.bf16.gmra.mxu0 %v479
        %v1871 = vpop.f32.mrf.mxu0
        %v1872 = vadd.f32 %v1829, %v1871
        %v1873 = vpop.f32.mrf.mxu0
        %1874 = vdwg.mxu0
        %1875 = vmatpush.bf16.msra.mxu0 %v1476
        %1876 = vmatpush.bf16.msra.mxu0 %v1472
        %1877 = vmatpush.bf16.msra.mxu0 %v1468
        %1878 = vmatpush.bf16.msra.mxu0 %v1464
        %1879 = vmatpush.bf16.msra.mxu0 %v1460
        %1880 = vmatpush.bf16.msra.mxu0 %v1456
        %1881 = vmatpush.bf16.msra.mxu0 %v1452
        %1882 = vmatpush.bf16.msra.mxu0 %v1448
        %1883 = vmatmul.bf16.gmra.mxu0 %v452
        %v1884 = vpop.f32.mrf.mxu0
        %v1885 = vadd.f32 %v1056, %v1884
        %v1886 = vpop.f32.mrf.mxu0
        %v1887 = vadd.f32 %v1056, %v1886
        %1888 = vmatmul.bf16.gmra.mxu0 %v456
        %v1889 = vpop.f32.mrf.mxu0
        %v1890 = vadd.f32 %v1056, %v1889
        %v1891 = vpop.f32.mrf.mxu0
        %v1892 = vadd.f32 %v1056, %v1891
        %1893 = vmatmul.bf16.gmra.mxu0 %v460
        %v1894 = vpop.f32.mrf.mxu0
        %v1895 = vadd.f32 %v1056, %v1894
        %v1896 = vpop.f32.mrf.mxu0
        %v1897 = vadd.f32 %v1056, %v1896
        %1898 = vmatmul.bf16.gmra.mxu0 %v464
        %v1899 = vpop.f32.mrf.mxu0
        %v1900 = vadd.f32 %v1056, %v1899
        %v1901 = vpop.f32.mrf.mxu0
        %v1902 = vadd.f32 %v1056, %v1901
        %1903 = vmatmul.bf16.gmra.mxu0 %v468
        %v1904 = vpop.f32.mrf.mxu0
        %v1905 = vadd.f32 %v1056, %v1904
        %v1906 = vpop.f32.mrf.mxu0
        %v1907 = vadd.f32 %v1056, %v1906
        %1908 = vmatmul.bf16.gmra.mxu0 %v472
        %v1909 = vpop.f32.mrf.mxu0
        %v1910 = vadd.f32 %v1056, %v1909
        %v1911 = vpop.f32.mrf.mxu0
        %v1912 = vadd.f32 %v1056, %v1911
        %1913 = vmatmul.bf16.gmra.mxu0 %v476
        %v1914 = vpop.f32.mrf.mxu0
        %v1915 = vadd.f32 %v1056, %v1914
        %v1916 = vpop.f32.mrf.mxu0
        %1917 = vdwg.mxu0
        %1918 = vmatpush.bf16.msra.mxu0 %v1508
        %1919 = vmatpush.bf16.msra.mxu0 %v1504
        %1920 = vmatpush.bf16.msra.mxu0 %v1500
        %1921 = vmatpush.bf16.msra.mxu0 %v1496
        %1922 = vmatpush.bf16.msra.mxu0 %v1492
        %1923 = vmatpush.bf16.msra.mxu0 %v1488
        %1924 = vmatpush.bf16.msra.mxu0 %v1484
        %1925 = vmatpush.bf16.msra.mxu0 %v1480
        %1926 = vmatmul.bf16.gmra.mxu0 %v453
        %v1927 = vpop.f32.mrf.mxu0
        %v1928 = vadd.f32 %v1885, %v1927
        %v1929 = vpop.f32.mrf.mxu0
        %v1930 = vadd.f32 %v1887, %v1929
        %1931 = vmatmul.bf16.gmra.mxu0 %v457
        %v1932 = vpop.f32.mrf.mxu0
        %v1933 = vadd.f32 %v1890, %v1932
        %v1934 = vpop.f32.mrf.mxu0
        %v1935 = vadd.f32 %v1892, %v1934
        %1936 = vmatmul.bf16.gmra.mxu0 %v461
        %v1937 = vpop.f32.mrf.mxu0
        %v1938 = vadd.f32 %v1895, %v1937
        %v1939 = vpop.f32.mrf.mxu0
        %v1940 = vadd.f32 %v1897, %v1939
        %1941 = vmatmul.bf16.gmra.mxu0 %v465
        %v1942 = vpop.f32.mrf.mxu0
        %v1943 = vadd.f32 %v1900, %v1942
        %v1944 = vpop.f32.mrf.mxu0
        %v1945 = vadd.f32 %v1902, %v1944
        %1946 = vmatmul.bf16.gmra.mxu0 %v469
        %v1947 = vpop.f32.mrf.mxu0
        %v1948 = vadd.f32 %v1905, %v1947
        %v1949 = vpop.f32.mrf.mxu0
        %v1950 = vadd.f32 %v1907, %v1949
        %1951 = vmatmul.bf16.gmra.mxu0 %v473
        %v1952 = vpop.f32.mrf.mxu0
        %v1953 = vadd.f32 %v1910, %v1952
        %v1954 = vpop.f32.mrf.mxu0
        %v1955 = vadd.f32 %v1912, %v1954
        %1956 = vmatmul.bf16.gmra.mxu0 %v477
        %v1957 = vpop.f32.mrf.mxu0
        %v1958 = vadd.f32 %v1915, %v1957
        %v1959 = vpop.f32.mrf.mxu0
        %1960 = vdwg.mxu0
        %1961 = vmatpush.bf16.msra.mxu0 %v1540
        %1962 = vmatpush.bf16.msra.mxu0 %v1536
        %1963 = vmatpush.bf16.msra.mxu0 %v1532
        %1964 = vmatpush.bf16.msra.mxu0 %v1528
        %1965 = vmatpush.bf16.msra.mxu0 %v1524
        %1966 = vmatpush.bf16.msra.mxu0 %v1520
        %1967 = vmatpush.bf16.msra.mxu0 %v1516
        %1968 = vmatpush.bf16.msra.mxu0 %v1512
        %1969 = vmatmul.bf16.gmra.mxu0 %v454
        %v1970 = vpop.f32.mrf.mxu0
        %v1971 = vadd.f32 %v1928, %v1970
        %v1972 = vpop.f32.mrf.mxu0
        %v1973 = vadd.f32 %v1930, %v1972
        %1974 = vmatmul.bf16.gmra.mxu0 %v458
        %v1975 = vpop.f32.mrf.mxu0
        %v1976 = vadd.f32 %v1933, %v1975
        %v1977 = vpop.f32.mrf.mxu0
        %v1978 = vadd.f32 %v1935, %v1977
        %1979 = vmatmul.bf16.gmra.mxu0 %v462
        %v1980 = vpop.f32.mrf.mxu0
        %v1981 = vadd.f32 %v1938, %v1980
        %v1982 = vpop.f32.mrf.mxu0
        %v1983 = vadd.f32 %v1940, %v1982
        %1984 = vmatmul.bf16.gmra.mxu0 %v466
        %v1985 = vpop.f32.mrf.mxu0
        %v1986 = vadd.f32 %v1943, %v1985
        %v1987 = vpop.f32.mrf.mxu0
        %v1988 = vadd.f32 %v1945, %v1987
        %1989 = vmatmul.bf16.gmra.mxu0 %v470
        %v1990 = vpop.f32.mrf.mxu0
        %v1991 = vadd.f32 %v1948, %v1990
        %v1992 = vpop.f32.mrf.mxu0
        %v1993 = vadd.f32 %v1950, %v1992
        %1994 = vmatmul.bf16.gmra.mxu0 %v474
        %v1995 = vpop.f32.mrf.mxu0
        %v1996 = vadd.f32 %v1953, %v1995
        %v1997 = vpop.f32.mrf.mxu0
        %v1998 = vadd.f32 %v1955, %v1997
        %1999 = vmatmul.bf16.gmra.mxu0 %v478
        %v2000 = vpop.f32.mrf.mxu0
        %v2001 = vadd.f32 %v1958, %v2000
        %v2002 = vpop.f32.mrf.mxu0
        %2003 = vdwg.mxu0
        %2004 = vmatpush.bf16.msra.mxu0 %v1572
        %2005 = vmatpush.bf16.msra.mxu0 %v1568
        %2006 = vmatpush.bf16.msra.mxu0 %v1564
        %2007 = vmatpush.bf16.msra.mxu0 %v1560
        %2008 = vmatpush.bf16.msra.mxu0 %v1556
        %2009 = vmatpush.bf16.msra.mxu0 %v1552
        %2010 = vmatpush.bf16.msra.mxu0 %v1548
        %2011 = vmatpush.bf16.msra.mxu0 %v1544
        %2012 = vmatmul.bf16.gmra.mxu0 %v455
        %v2013 = vpop.f32.mrf.mxu0
        %v2014 = vadd.f32 %v1971, %v2013
        %v2015 = vpop.f32.mrf.mxu0
        %v2016 = vadd.f32 %v1973, %v2015
        %2017 = vmatmul.bf16.gmra.mxu0 %v459
        %v2018 = vpop.f32.mrf.mxu0
        %v2019 = vadd.f32 %v1976, %v2018
        %v2020 = vpop.f32.mrf.mxu0
        %v2021 = vadd.f32 %v1978, %v2020
        %2022 = vmatmul.bf16.gmra.mxu0 %v463
        %v2023 = vpop.f32.mrf.mxu0
        %v2024 = vadd.f32 %v1981, %v2023
        %v2025 = vpop.f32.mrf.mxu0
        %v2026 = vadd.f32 %v1983, %v2025
        %2027 = vmatmul.bf16.gmra.mxu0 %v467
        %v2028 = vpop.f32.mrf.mxu0
        %v2029 = vadd.f32 %v1986, %v2028
        %v2030 = vpop.f32.mrf.mxu0
        %v2031 = vadd.f32 %v1988, %v2030
        %2032 = vmatmul.bf16.gmra.mxu0 %v471
        %v2033 = vpop.f32.mrf.mxu0
        %v2034 = vadd.f32 %v1991, %v2033
        %v2035 = vpop.f32.mrf.mxu0
        %v2036 = vadd.f32 %v1993, %v2035
        %2037 = vmatmul.bf16.gmra.mxu0 %v475
        %v2038 = vpop.f32.mrf.mxu0
        %v2039 = vadd.f32 %v1996, %v2038
        %v2040 = vpop.f32.mrf.mxu0
        %v2041 = vadd.f32 %v1998, %v2040
        %2042 = vmatmul.bf16.gmra.mxu0 %v479
        %v2043 = vpop.f32.mrf.mxu0
        %v2044 = vadd.f32 %v2001, %v2043
        %v2045 = vpop.f32.mrf.mxu0
        %2046 = vdwg.mxu0
        %2047 = vmatpush.bf16.msra.mxu0 %v1477
        %2048 = vmatpush.bf16.msra.mxu0 %v1473
        %2049 = vmatpush.bf16.msra.mxu0 %v1469
        %2050 = vmatpush.bf16.msra.mxu0 %v1465
        %2051 = vmatpush.bf16.msra.mxu0 %v1461
        %2052 = vmatpush.bf16.msra.mxu0 %v1457
        %2053 = vmatpush.bf16.msra.mxu0 %v1453
        %2054 = vmatpush.bf16.msra.mxu0 %v1449
        %2055 = vmatmul.bf16.gmra.mxu0 %v452
        %v2056 = vpop.f32.mrf.mxu0
        %v2057 = vadd.f32 %v1057, %v2056
        %v2058 = vpop.f32.mrf.mxu0
        %v2059 = vadd.f32 %v1057, %v2058
        %2060 = vmatmul.bf16.gmra.mxu0 %v456
        %v2061 = vpop.f32.mrf.mxu0
        %v2062 = vadd.f32 %v1057, %v2061
        %v2063 = vpop.f32.mrf.mxu0
        %v2064 = vadd.f32 %v1057, %v2063
        %2065 = vmatmul.bf16.gmra.mxu0 %v460
        %v2066 = vpop.f32.mrf.mxu0
        %v2067 = vadd.f32 %v1057, %v2066
        %v2068 = vpop.f32.mrf.mxu0
        %v2069 = vadd.f32 %v1057, %v2068
        %2070 = vmatmul.bf16.gmra.mxu0 %v464
        %v2071 = vpop.f32.mrf.mxu0
        %v2072 = vadd.f32 %v1057, %v2071
        %v2073 = vpop.f32.mrf.mxu0
        %v2074 = vadd.f32 %v1057, %v2073
        %2075 = vmatmul.bf16.gmra.mxu0 %v468
        %v2076 = vpop.f32.mrf.mxu0
        %v2077 = vadd.f32 %v1057, %v2076
        %v2078 = vpop.f32.mrf.mxu0
        %v2079 = vadd.f32 %v1057, %v2078
        %2080 = vmatmul.bf16.gmra.mxu0 %v472
        %v2081 = vpop.f32.mrf.mxu0
        %v2082 = vadd.f32 %v1057, %v2081
        %v2083 = vpop.f32.mrf.mxu0
        %v2084 = vadd.f32 %v1057, %v2083
        %2085 = vmatmul.bf16.gmra.mxu0 %v476
        %v2086 = vpop.f32.mrf.mxu0
        %v2087 = vadd.f32 %v1057, %v2086
        %v2088 = vpop.f32.mrf.mxu0
        %2089 = vdwg.mxu0
        %2090 = vmatpush.bf16.msra.mxu0 %v1509
        %2091 = vmatpush.bf16.msra.mxu0 %v1505
        %2092 = vmatpush.bf16.msra.mxu0 %v1501
        %2093 = vmatpush.bf16.msra.mxu0 %v1497
        %2094 = vmatpush.bf16.msra.mxu0 %v1493
        %2095 = vmatpush.bf16.msra.mxu0 %v1489
        %2096 = vmatpush.bf16.msra.mxu0 %v1485
        %2097 = vmatpush.bf16.msra.mxu0 %v1481
        %2098 = vmatmul.bf16.gmra.mxu0 %v453
        %v2099 = vpop.f32.mrf.mxu0
        %v2100 = vadd.f32 %v2057, %v2099
        %v2101 = vpop.f32.mrf.mxu0
        %v2102 = vadd.f32 %v2059, %v2101
        %2103 = vmatmul.bf16.gmra.mxu0 %v457
        %v2104 = vpop.f32.mrf.mxu0
        %v2105 = vadd.f32 %v2062, %v2104
        %v2106 = vpop.f32.mrf.mxu0
        %v2107 = vadd.f32 %v2064, %v2106
        %2108 = vmatmul.bf16.gmra.mxu0 %v461
        %v2109 = vpop.f32.mrf.mxu0
        %v2110 = vadd.f32 %v2067, %v2109
        %v2111 = vpop.f32.mrf.mxu0
        %v2112 = vadd.f32 %v2069, %v2111
        %2113 = vmatmul.bf16.gmra.mxu0 %v465
        %v2114 = vpop.f32.mrf.mxu0
        %v2115 = vadd.f32 %v2072, %v2114
        %v2116 = vpop.f32.mrf.mxu0
        %v2117 = vadd.f32 %v2074, %v2116
        %2118 = vmatmul.bf16.gmra.mxu0 %v469
        %v2119 = vpop.f32.mrf.mxu0
        %v2120 = vadd.f32 %v2077, %v2119
        %v2121 = vpop.f32.mrf.mxu0
        %v2122 = vadd.f32 %v2079, %v2121
        %2123 = vmatmul.bf16.gmra.mxu0 %v473
        %v2124 = vpop.f32.mrf.mxu0
        %v2125 = vadd.f32 %v2082, %v2124
        %v2126 = vpop.f32.mrf.mxu0
        %v2127 = vadd.f32 %v2084, %v2126
        %2128 = vmatmul.bf16.gmra.mxu0 %v477
        %v2129 = vpop.f32.mrf.mxu0
        %v2130 = vadd.f32 %v2087, %v2129
        %v2131 = vpop.f32.mrf.mxu0
        %2132 = vdwg.mxu0
        %2133 = vmatpush.bf16.msra.mxu0 %v1541
        %2134 = vmatpush.bf16.msra.mxu0 %v1537
        %2135 = vmatpush.bf16.msra.mxu0 %v1533
        %2136 = vmatpush.bf16.msra.mxu0 %v1529
        %2137 = vmatpush.bf16.msra.mxu0 %v1525
        %2138 = vmatpush.bf16.msra.mxu0 %v1521
        %2139 = vmatpush.bf16.msra.mxu0 %v1517
        %2140 = vmatpush.bf16.msra.mxu0 %v1513
        %2141 = vmatmul.bf16.gmra.mxu0 %v454
        %v2142 = vpop.f32.mrf.mxu0
        %v2143 = vadd.f32 %v2100, %v2142
        %v2144 = vpop.f32.mrf.mxu0
        %v2145 = vadd.f32 %v2102, %v2144
        %2146 = vmatmul.bf16.gmra.mxu0 %v458
        %v2147 = vpop.f32.mrf.mxu0
        %v2148 = vadd.f32 %v2105, %v2147
        %v2149 = vpop.f32.mrf.mxu0
        %v2150 = vadd.f32 %v2107, %v2149
        %2151 = vmatmul.bf16.gmra.mxu0 %v462
        %v2152 = vpop.f32.mrf.mxu0
        %v2153 = vadd.f32 %v2110, %v2152
        %v2154 = vpop.f32.mrf.mxu0
        %v2155 = vadd.f32 %v2112, %v2154
        %2156 = vmatmul.bf16.gmra.mxu0 %v466
        %v2157 = vpop.f32.mrf.mxu0
        %v2158 = vadd.f32 %v2115, %v2157
        %v2159 = vpop.f32.mrf.mxu0
        %v2160 = vadd.f32 %v2117, %v2159
        %2161 = vmatmul.bf16.gmra.mxu0 %v470
        %v2162 = vpop.f32.mrf.mxu0
        %v2163 = vadd.f32 %v2120, %v2162
        %v2164 = vpop.f32.mrf.mxu0
        %v2165 = vadd.f32 %v2122, %v2164
        %2166 = vmatmul.bf16.gmra.mxu0 %v474
        %v2167 = vpop.f32.mrf.mxu0
        %v2168 = vadd.f32 %v2125, %v2167
        %v2169 = vpop.f32.mrf.mxu0
        %v2170 = vadd.f32 %v2127, %v2169
        %2171 = vmatmul.bf16.gmra.mxu0 %v478
        %v2172 = vpop.f32.mrf.mxu0
        %v2173 = vadd.f32 %v2130, %v2172
        %v2174 = vpop.f32.mrf.mxu0
        %2175 = vdwg.mxu0
        %2176 = vmatpush.bf16.msra.mxu0 %v1573
        %2177 = vmatpush.bf16.msra.mxu0 %v1569
        %2178 = vmatpush.bf16.msra.mxu0 %v1565
        %2179 = vmatpush.bf16.msra.mxu0 %v1561
        %2180 = vmatpush.bf16.msra.mxu0 %v1557
        %2181 = vmatpush.bf16.msra.mxu0 %v1553
        %2182 = vmatpush.bf16.msra.mxu0 %v1549
        %2183 = vmatpush.bf16.msra.mxu0 %v1545
        %2184 = vmatmul.bf16.gmra.mxu0 %v455
        %v2185 = vpop.f32.mrf.mxu0
        %v2186 = vadd.f32 %v2143, %v2185
        %v2187 = vpop.f32.mrf.mxu0
        %v2188 = vadd.f32 %v2145, %v2187
        %2189 = vmatmul.bf16.gmra.mxu0 %v459
        %v2190 = vpop.f32.mrf.mxu0
        %v2191 = vadd.f32 %v2148, %v2190
        %v2192 = vpop.f32.mrf.mxu0
        %v2193 = vadd.f32 %v2150, %v2192
        %2194 = vmatmul.bf16.gmra.mxu0 %v463
        %v2195 = vpop.f32.mrf.mxu0
        %v2196 = vadd.f32 %v2153, %v2195
        %v2197 = vpop.f32.mrf.mxu0
        %v2198 = vadd.f32 %v2155, %v2197
        %2199 = vmatmul.bf16.gmra.mxu0 %v467
        %v2200 = vpop.f32.mrf.mxu0
        %v2201 = vadd.f32 %v2158, %v2200
        %v2202 = vpop.f32.mrf.mxu0
        %v2203 = vadd.f32 %v2160, %v2202
        %2204 = vmatmul.bf16.gmra.mxu0 %v471
        %v2205 = vpop.f32.mrf.mxu0
        %v2206 = vadd.f32 %v2163, %v2205
        %v2207 = vpop.f32.mrf.mxu0
        %v2208 = vadd.f32 %v2165, %v2207
        %2209 = vmatmul.bf16.gmra.mxu0 %v475
        %v2210 = vpop.f32.mrf.mxu0
        %v2211 = vadd.f32 %v2168, %v2210
        %v2212 = vpop.f32.mrf.mxu0
        %v2213 = vadd.f32 %v2170, %v2212
        %2214 = vmatmul.bf16.gmra.mxu0 %v479
        %v2215 = vpop.f32.mrf.mxu0
        %v2216 = vadd.f32 %v2173, %v2215
        %v2217 = vpop.f32.mrf.mxu0
        %2218 = vdwg.mxu0
        %2219 = vmatpush.bf16.msra.mxu0 %v1478
        %2220 = vmatpush.bf16.msra.mxu0 %v1474
        %2221 = vmatpush.bf16.msra.mxu0 %v1470
        %2222 = vmatpush.bf16.msra.mxu0 %v1466
        %2223 = vmatpush.bf16.msra.mxu0 %v1462
        %2224 = vmatpush.bf16.msra.mxu0 %v1458
        %2225 = vmatpush.bf16.msra.mxu0 %v1454
        %2226 = vmatpush.bf16.msra.mxu0 %v1450
        %2227 = vmatmul.bf16.gmra.mxu0 %v452
        %v2228 = vpop.f32.mrf.mxu0
        %v2229 = vadd.f32 %v1058, %v2228
        %v2230 = vpop.f32.mrf.mxu0
        %v2231 = vadd.f32 %v1058, %v2230
        %2232 = vmatmul.bf16.gmra.mxu0 %v456
        %v2233 = vpop.f32.mrf.mxu0
        %v2234 = vadd.f32 %v1058, %v2233
        %v2235 = vpop.f32.mrf.mxu0
        %v2236 = vadd.f32 %v1058, %v2235
        %2237 = vmatmul.bf16.gmra.mxu0 %v460
        %v2238 = vpop.f32.mrf.mxu0
        %v2239 = vadd.f32 %v1058, %v2238
        %v2240 = vpop.f32.mrf.mxu0
        %v2241 = vadd.f32 %v1058, %v2240
        %2242 = vmatmul.bf16.gmra.mxu0 %v464
        %v2243 = vpop.f32.mrf.mxu0
        %v2244 = vadd.f32 %v1058, %v2243
        %v2245 = vpop.f32.mrf.mxu0
        %v2246 = vadd.f32 %v1058, %v2245
        %2247 = vmatmul.bf16.gmra.mxu0 %v468
        %v2248 = vpop.f32.mrf.mxu0
        %v2249 = vadd.f32 %v1058, %v2248
        %v2250 = vpop.f32.mrf.mxu0
        %v2251 = vadd.f32 %v1058, %v2250
        %2252 = vmatmul.bf16.gmra.mxu0 %v472
        %v2253 = vpop.f32.mrf.mxu0
        %v2254 = vadd.f32 %v1058, %v2253
        %v2255 = vpop.f32.mrf.mxu0
        %v2256 = vadd.f32 %v1058, %v2255
        %2257 = vmatmul.bf16.gmra.mxu0 %v476
        %v2258 = vpop.f32.mrf.mxu0
        %v2259 = vadd.f32 %v1058, %v2258
        %v2260 = vpop.f32.mrf.mxu0
        %2261 = vdwg.mxu0
        %2262 = vmatpush.bf16.msra.mxu0 %v1510
        %2263 = vmatpush.bf16.msra.mxu0 %v1506
        %2264 = vmatpush.bf16.msra.mxu0 %v1502
        %2265 = vmatpush.bf16.msra.mxu0 %v1498
        %2266 = vmatpush.bf16.msra.mxu0 %v1494
        %2267 = vmatpush.bf16.msra.mxu0 %v1490
        %2268 = vmatpush.bf16.msra.mxu0 %v1486
        %2269 = vmatpush.bf16.msra.mxu0 %v1482
        %2270 = vmatmul.bf16.gmra.mxu0 %v453
        %v2271 = vpop.f32.mrf.mxu0
        %v2272 = vadd.f32 %v2229, %v2271
        %v2273 = vpop.f32.mrf.mxu0
        %v2274 = vadd.f32 %v2231, %v2273
        %2275 = vmatmul.bf16.gmra.mxu0 %v457
        %v2276 = vpop.f32.mrf.mxu0
        %v2277 = vadd.f32 %v2234, %v2276
        %v2278 = vpop.f32.mrf.mxu0
        %v2279 = vadd.f32 %v2236, %v2278
        %2280 = vmatmul.bf16.gmra.mxu0 %v461
        %v2281 = vpop.f32.mrf.mxu0
        %v2282 = vadd.f32 %v2239, %v2281
        %v2283 = vpop.f32.mrf.mxu0
        %v2284 = vadd.f32 %v2241, %v2283
        %2285 = vmatmul.bf16.gmra.mxu0 %v465
        %v2286 = vpop.f32.mrf.mxu0
        %v2287 = vadd.f32 %v2244, %v2286
        %v2288 = vpop.f32.mrf.mxu0
        %v2289 = vadd.f32 %v2246, %v2288
        %2290 = vmatmul.bf16.gmra.mxu0 %v469
        %v2291 = vpop.f32.mrf.mxu0
        %v2292 = vadd.f32 %v2249, %v2291
        %v2293 = vpop.f32.mrf.mxu0
        %v2294 = vadd.f32 %v2251, %v2293
        %2295 = vmatmul.bf16.gmra.mxu0 %v473
        %v2296 = vpop.f32.mrf.mxu0
        %v2297 = vadd.f32 %v2254, %v2296
        %v2298 = vpop.f32.mrf.mxu0
        %v2299 = vadd.f32 %v2256, %v2298
        %2300 = vmatmul.bf16.gmra.mxu0 %v477
        %v2301 = vpop.f32.mrf.mxu0
        %v2302 = vadd.f32 %v2259, %v2301
        %v2303 = vpop.f32.mrf.mxu0
        %2304 = vdwg.mxu0
        %2305 = vmatpush.bf16.msra.mxu0 %v1542
        %2306 = vmatpush.bf16.msra.mxu0 %v1538
        %2307 = vmatpush.bf16.msra.mxu0 %v1534
        %2308 = vmatpush.bf16.msra.mxu0 %v1530
        %2309 = vmatpush.bf16.msra.mxu0 %v1526
        %2310 = vmatpush.bf16.msra.mxu0 %v1522
        %2311 = vmatpush.bf16.msra.mxu0 %v1518
        %2312 = vmatpush.bf16.msra.mxu0 %v1514
        %2313 = vmatmul.bf16.gmra.mxu0 %v454
        %v2314 = vpop.f32.mrf.mxu0
        %v2315 = vadd.f32 %v2272, %v2314
        %v2316 = vpop.f32.mrf.mxu0
        %v2317 = vadd.f32 %v2274, %v2316
        %2318 = vmatmul.bf16.gmra.mxu0 %v458
        %v2319 = vpop.f32.mrf.mxu0
        %v2320 = vadd.f32 %v2277, %v2319
        %v2321 = vpop.f32.mrf.mxu0
        %v2322 = vadd.f32 %v2279, %v2321
        %2323 = vmatmul.bf16.gmra.mxu0 %v462
        %v2324 = vpop.f32.mrf.mxu0
        %v2325 = vadd.f32 %v2282, %v2324
        %v2326 = vpop.f32.mrf.mxu0
        %v2327 = vadd.f32 %v2284, %v2326
        %2328 = vmatmul.bf16.gmra.mxu0 %v466
        %v2329 = vpop.f32.mrf.mxu0
        %v2330 = vadd.f32 %v2287, %v2329
        %v2331 = vpop.f32.mrf.mxu0
        %v2332 = vadd.f32 %v2289, %v2331
        %2333 = vmatmul.bf16.gmra.mxu0 %v470
        %v2334 = vpop.f32.mrf.mxu0
        %v2335 = vadd.f32 %v2292, %v2334
        %v2336 = vpop.f32.mrf.mxu0
        %v2337 = vadd.f32 %v2294, %v2336
        %2338 = vmatmul.bf16.gmra.mxu0 %v474
        %v2339 = vpop.f32.mrf.mxu0
        %v2340 = vadd.f32 %v2297, %v2339
        %v2341 = vpop.f32.mrf.mxu0
        %v2342 = vadd.f32 %v2299, %v2341
        %2343 = vmatmul.bf16.gmra.mxu0 %v478
        %v2344 = vpop.f32.mrf.mxu0
        %v2345 = vadd.f32 %v2302, %v2344
        %v2346 = vpop.f32.mrf.mxu0
        %2347 = vdwg.mxu0
        %2348 = vmatpush.bf16.msra.mxu0 %v1574
        %2349 = vmatpush.bf16.msra.mxu0 %v1570
        %2350 = vmatpush.bf16.msra.mxu0 %v1566
        %2351 = vmatpush.bf16.msra.mxu0 %v1562
        %2352 = vmatpush.bf16.msra.mxu0 %v1558
        %2353 = vmatpush.bf16.msra.mxu0 %v1554
        %2354 = vmatpush.bf16.msra.mxu0 %v1550
        %2355 = vmatpush.bf16.msra.mxu0 %v1546
        %2356 = vmatmul.bf16.gmra.mxu0 %v455
        %v2357 = vpop.f32.mrf.mxu0
        %v2358 = vadd.f32 %v2315, %v2357
        %v2359 = vpop.f32.mrf.mxu0
        %v2360 = vadd.f32 %v2317, %v2359
        %2361 = vmatmul.bf16.gmra.mxu0 %v459
        %v2362 = vpop.f32.mrf.mxu0
        %v2363 = vadd.f32 %v2320, %v2362
        %v2364 = vpop.f32.mrf.mxu0
        %v2365 = vadd.f32 %v2322, %v2364
        %2366 = vmatmul.bf16.gmra.mxu0 %v463
        %v2367 = vpop.f32.mrf.mxu0
        %v2368 = vadd.f32 %v2325, %v2367
        %v2369 = vpop.f32.mrf.mxu0
        %v2370 = vadd.f32 %v2327, %v2369
        %2371 = vmatmul.bf16.gmra.mxu0 %v467
        %v2372 = vpop.f32.mrf.mxu0
        %v2373 = vadd.f32 %v2330, %v2372
        %v2374 = vpop.f32.mrf.mxu0
        %v2375 = vadd.f32 %v2332, %v2374
        %2376 = vmatmul.bf16.gmra.mxu0 %v471
        %v2377 = vpop.f32.mrf.mxu0
        %v2378 = vadd.f32 %v2335, %v2377
        %v2379 = vpop.f32.mrf.mxu0
        %v2380 = vadd.f32 %v2337, %v2379
        %2381 = vmatmul.bf16.gmra.mxu0 %v475
        %v2382 = vpop.f32.mrf.mxu0
        %v2383 = vadd.f32 %v2340, %v2382
        %v2384 = vpop.f32.mrf.mxu0
        %v2385 = vadd.f32 %v2342, %v2384
        %2386 = vmatmul.bf16.gmra.mxu0 %v479
        %v2387 = vpop.f32.mrf.mxu0
        %v2388 = vadd.f32 %v2345, %v2387
        %v2389 = vpop.f32.mrf.mxu0
        %2390 = vdwg.mxu0
        %v2391 = vpack.c.bf16 %v1844, %v1842
        %v2392 = vpack.c.bf16 %v2016, %v2014
        %v2393 = vpack.c.bf16 %v2188, %v2186
        %v2394 = vpack.c.bf16 %v2360, %v2358
        %v2395 = vpack.c.bf16 %v1849, %v1847
        %v2396 = vpack.c.bf16 %v2021, %v2019
        %v2397 = vpack.c.bf16 %v2193, %v2191
        %v2398 = vpack.c.bf16 %v2365, %v2363
        %v2399 = vpack.c.bf16 %v1854, %v1852
        %v2400 = vpack.c.bf16 %v2026, %v2024
        %v2401 = vpack.c.bf16 %v2198, %v2196
        %v2402 = vpack.c.bf16 %v2370, %v2368
        %v2403 = vpack.c.bf16 %v1859, %v1857
        %v2404 = vpack.c.bf16 %v2031, %v2029
        %v2405 = vpack.c.bf16 %v2203, %v2201
        %v2406 = vpack.c.bf16 %v2375, %v2373
        %v2407 = vpack.c.bf16 %v1864, %v1862
        %v2408 = vpack.c.bf16 %v2036, %v2034
        %v2409 = vpack.c.bf16 %v2208, %v2206
        %v2410 = vpack.c.bf16 %v2380, %v2378
        %v2411 = vpack.c.bf16 %v1869, %v1867
        %v2412 = vpack.c.bf16 %v2041, %v2039
        %v2413 = vpack.c.bf16 %v2213, %v2211
        %v2414 = vpack.c.bf16 %v2385, %v2383
        %v2415 = vpack.c.bf16 %v1872, %v1872
        %v2416 = vpack.c.bf16 %v2044, %v2044
        %v2417 = vpack.c.bf16 %v2216, %v2216
        %v2418 = vpack.c.bf16 %v2388, %v2388
        %v2419 = vld [vmem:[%s5] sm:$0xff]
        %v2420 = vld [vmem:[%s5 + $0x8] sm:$0xff]
        %v2421 = vld [vmem:[%s5 + $0x10] sm:$0xff]
        %v2422 = vld [vmem:[%s5 + $0x18] sm:$0xff]
        %v2423 = vld [vmem:[%s5 + $0x20] sm:$0xff]
        %v2424 = vld [vmem:[%s5 + $0x28] sm:$0xff]
        %v2425 = vld [vmem:[%s5 + $0x30] sm:$0xff]
        %v2426 = vld [vmem:[%s5 + $0x38] sm:$0xff]
        %v2427 = vld [vmem:[%s5 + $0x40] sm:$0xff]
        %v2428 = vld [vmem:[%s5 + $0x48] sm:$0xff]
        %v2429 = vld [vmem:[%s5 + $0x50] sm:$0xff]
        %v2430 = vld [vmem:[%s5 + $0x58] sm:$0xff]
        %v2431 = vld [vmem:[%s5 + $0x60] sm:$0x3]
        %v2445 = vunpack.c.l.b16 %v912
        %v2446 = vunpack.c.l.b16 %v913
        %v2447 = vunpack.c.l.b16 %v914
        %v2448 = vunpack.c.l.b16 %v915
        %v2449 = vunpack.c.l.b16 %v916
        %v2450 = vunpack.c.l.b16 %v917
        %v2451 = vunpack.c.l.b16 %v918
        %v2452 = vunpack.c.l.b16 %v919
        %v2453 = vunpack.c.l.b16 %v920
        %v2454 = vunpack.c.l.b16 %v921
        %v2455 = vunpack.c.l.b16 %v922
        %v2456 = vunpack.c.l.b16 %v923
        %v2457 = vunpack.c.l.b16 %v924
        %v2458 = vpack.c.b16 %v2446, %v2445
        %v2459 = vpack.c.b16 %v2448, %v2447
        %v2460 = vpack.c.b16 %v2450, %v2449
        %v2461 = vpack.c.b16 %v2452, %v2451
        %v2462 = vpack.c.b16 %v2454, %v2453
        %v2463 = vpack.c.b16 %v2456, %v2455
        %v2464 = vpack.c.b16 %v2457, %v2457
        %2465 = vrot.lane.b32.xlu0 %v2458, 64
        %v2466 = vpop.permute.xlu0 %2465
        %2467 = vrot.lane.b32.xlu0 %v2459, 64
        %v2468 = vpop.permute.xlu0 %2467
        %2469 = vrot.lane.b32.xlu0 %v2460, 64
        %v2470 = vpop.permute.xlu0 %2469
        %2471 = vrot.lane.b32.xlu0 %v2461, 64
        %v2472 = vpop.permute.xlu0 %2471
        %2473 = vrot.lane.b32.xlu0 %v2462, 64
        %v2474 = vpop.permute.xlu0 %2473
        %2475 = vrot.lane.b32.xlu0 %v2463, 64
        %v2476 = vpop.permute.xlu0 %2475
        %2477 = vrot.lane.b32.xlu0 %v2464, 64
        %v2478 = vpop.permute.xlu0 %2477
        %vm2479 = vcmask 523264
        %v2481 = vsel %vm2479, %v2458, 0
        %v2484 = vsel %vm2479, %v2459, 0
        %v2487 = vsel %vm2479, %v2460, 0
        %v2490 = vsel %vm2479, %v2461, 0
        %v2493 = vsel %vm2479, %v2462, 0
        %v2496 = vsel %vm2479, %v2463, 0
        %v2499 = vsel %vm2479, %v2464, 0
        %v2502 = vsel %vm2479, %v2466, 0
        %v2505 = vsel %vm2479, %v2468, 0
        %v2508 = vsel %vm2479, %v2470, 0
        %v2511 = vsel %vm2479, %v2472, 0
        %v2514 = vsel %vm2479, %v2474, 0
        %v2517 = vsel %vm2479, %v2476, 0
        %v2520 = vsel %vm2479, %v2478, 0
        %2522 = vmatpush.bf16.xpose.msra.mxu0 0
        %2523 = vmatpush.bf16.xpose.msra.mxu0 %v2520
        %2524 = vmatpush.bf16.xpose.msra.mxu0 %v2517
        %2525 = vmatpush.bf16.xpose.msra.mxu0 %v2514
        %2526 = vmatpush.bf16.xpose.msra.mxu0 %v2511
        %2527 = vmatpush.bf16.xpose.msra.mxu0 %v2508
        %2528 = vmatpush.bf16.xpose.msra.mxu0 %v2505
        %2529 = vmatpush.bf16.xpose.msra.mxu0 %v2502
        %2530 = vmatmul.bf16.gmra.mxu0 %v2481
        %v2531 = vpop.f32.mrf.mxu0
        %v2532 = vadd.f32 %v2419, %v2531
        %v2533 = vpop.f32.mrf.mxu0
        %v2534 = vadd.f32 %v2420, %v2533
        %2535 = vmatmul.bf16.gmra.mxu0 %v2484
        %v2536 = vpop.f32.mrf.mxu0
        %v2537 = vadd.f32 %v2421, %v2536
        %v2538 = vpop.f32.mrf.mxu0
        %v2539 = vadd.f32 %v2422, %v2538
        %2540 = vmatmul.bf16.gmra.mxu0 %v2487
        %v2541 = vpop.f32.mrf.mxu0
        %v2542 = vadd.f32 %v2423, %v2541
        %v2543 = vpop.f32.mrf.mxu0
        %v2544 = vadd.f32 %v2424, %v2543
        %2545 = vmatmul.bf16.gmra.mxu0 %v2490
        %v2546 = vpop.f32.mrf.mxu0
        %v2547 = vadd.f32 %v2425, %v2546
        %v2548 = vpop.f32.mrf.mxu0
        %v2549 = vadd.f32 %v2426, %v2548
        %2550 = vmatmul.bf16.gmra.mxu0 %v2493
        %v2551 = vpop.f32.mrf.mxu0
        %v2552 = vadd.f32 %v2427, %v2551
        %v2553 = vpop.f32.mrf.mxu0
        %v2554 = vadd.f32 %v2428, %v2553
        %2555 = vmatmul.bf16.gmra.mxu0 %v2496
        %v2556 = vpop.f32.mrf.mxu0
        %v2557 = vadd.f32 %v2429, %v2556
        %v2558 = vpop.f32.mrf.mxu0
        %v2559 = vadd.f32 %v2430, %v2558
        %2560 = vmatmul.bf16.gmra.mxu0 %v2499
        %v2561 = vpop.f32.mrf.mxu0
        %v2562 = vadd.f32 %v2431, %v2561
        %v2563 = vpop.f32.mrf.mxu0
        %2564 = vdwg.mxu0
        %vm2565 = vcmask 801792
        %v2566 = vsel %vm2565, %v2532, -inf
        %2567 = vmax.xlane.f32.xlu0 %v2566
        %v2568 = vpop.xlane.xlu0 %2567
        %v2569 = vsel %vm2565, %v2534, -inf
        %2570 = vmax.xlane.f32.xlu0 %v2569
        %v2571 = vpop.xlane.xlu0 %2570
        %v2572 = vsel %vm2565, %v2537, -inf
        %2573 = vmax.xlane.f32.xlu0 %v2572
        %v2574 = vpop.xlane.xlu0 %2573
        %v2575 = vsel %vm2565, %v2539, -inf
        %2576 = vmax.xlane.f32.xlu0 %v2575
        %v2577 = vpop.xlane.xlu0 %2576
        %v2578 = vsel %vm2565, %v2542, -inf
        %2579 = vmax.xlane.f32.xlu0 %v2578
        %v2580 = vpop.xlane.xlu0 %2579
        %v2581 = vsel %vm2565, %v2544, -inf
        %2582 = vmax.xlane.f32.xlu0 %v2581
        %v2583 = vpop.xlane.xlu0 %2582
        %v2584 = vsel %vm2565, %v2547, -inf
        %2585 = vmax.xlane.f32.xlu0 %v2584
        %v2586 = vpop.xlane.xlu0 %2585
        %v2587 = vsel %vm2565, %v2549, -inf
        %2588 = vmax.xlane.f32.xlu0 %v2587
        %v2589 = vpop.xlane.xlu0 %2588
        %v2590 = vsel %vm2565, %v2552, -inf
        %2591 = vmax.xlane.f32.xlu0 %v2590
        %v2592 = vpop.xlane.xlu0 %2591
        %v2593 = vsel %vm2565, %v2554, -inf
        %2594 = vmax.xlane.f32.xlu0 %v2593
        %v2595 = vpop.xlane.xlu0 %2594
        %v2596 = vsel %vm2565, %v2557, -inf
        %2597 = vmax.xlane.f32.xlu0 %v2596
        %v2598 = vpop.xlane.xlu0 %2597
        %v2599 = vsel %vm2565, %v2559, -inf
        %2600 = vmax.xlane.f32.xlu0 %v2599
        %v2601 = vpop.xlane.xlu0 %2600
        %vm2602 = vcmask 795648
        %v2603 = vsel %vm2602, %v2562, -inf
        %2604 = vmax.xlane.f32.xlu0 %v2603
        %v2605 = vpop.xlane.xlu0 %2604
        %v2606 = vsub.f32 %v2532, %v2568
        %v2607 = vsub.f32 %v2534, %v2571
        %v2608 = vsub.f32 %v2537, %v2574
        %v2609 = vsub.f32 %v2539, %v2577
        %v2610 = vsub.f32 %v2542, %v2580
        %v2611 = vsub.f32 %v2544, %v2583
        %v2612 = vsub.f32 %v2547, %v2586
        %v2613 = vsub.f32 %v2549, %v2589
        %v2614 = vsub.f32 %v2552, %v2592
        %v2615 = vsub.f32 %v2554, %v2595
        %v2616 = vsub.f32 %v2557, %v2598
        %v2617 = vsub.f32 %v2559, %v2601
        %v2618 = vsub.f32 %v2562, %v2605
        %v2619 = vmul.f32 %v2606, 1.442695
        %v2620 = vpow.pop %v2619
        %v2621 = vmul.f32 %v2607, 1.442695
        %v2622 = vpow.pop %v2621
        %v2623 = vmul.f32 %v2608, 1.442695
        %v2624 = vpow.pop %v2623
        %v2625 = vmul.f32 %v2609, 1.442695
        %v2626 = vpow.pop %v2625
        %v2627 = vmul.f32 %v2610, 1.442695
        %v2628 = vpow.pop %v2627
        %v2629 = vmul.f32 %v2611, 1.442695
        %v2630 = vpow.pop %v2629
        %v2631 = vmul.f32 %v2612, 1.442695
        %v2632 = vpow.pop %v2631
        %v2633 = vmul.f32 %v2613, 1.442695
        %v2634 = vpow.pop %v2633
        %v2635 = vmul.f32 %v2614, 1.442695
        %v2636 = vpow.pop %v2635
        %v2637 = vmul.f32 %v2615, 1.442695
        %v2638 = vpow.pop %v2637
        %v2639 = vmul.f32 %v2616, 1.442695
        %v2640 = vpow.pop %v2639
        %v2641 = vmul.f32 %v2617, 1.442695
        %v2642 = vpow.pop %v2641
        %v2643 = vmul.f32 %v2618, 1.442695
        %v2644 = vpow.pop %v2643
        %v2645 = vsel %vm2565, %v2620, 0.0
        %2646 = vadd.xlane.f32.xlu0 %v2645
        %v2647 = vpop.xlane.xlu0 %2646
        %v2648 = vsel %vm2565, %v2622, 0.0
        %2649 = vadd.xlane.f32.xlu0 %v2648
        %v2650 = vpop.xlane.xlu0 %2649
        %v2651 = vsel %vm2565, %v2624, 0.0
        %2652 = vadd.xlane.f32.xlu0 %v2651
        %v2653 = vpop.xlane.xlu0 %2652
        %v2654 = vsel %vm2565, %v2626, 0.0
        %2655 = vadd.xlane.f32.xlu0 %v2654
        %v2656 = vpop.xlane.xlu0 %2655
        %v2657 = vsel %vm2565, %v2628, 0.0
        %2658 = vadd.xlane.f32.xlu0 %v2657
        %v2659 = vpop.xlane.xlu0 %2658
        %v2660 = vsel %vm2565, %v2630, 0.0
        %2661 = vadd.xlane.f32.xlu0 %v2660
        %v2662 = vpop.xlane.xlu0 %2661
        %v2663 = vsel %vm2565, %v2632, 0.0
        %2664 = vadd.xlane.f32.xlu0 %v2663
        %v2665 = vpop.xlane.xlu0 %2664
        %v2666 = vsel %vm2565, %v2634, 0.0
        %2667 = vadd.xlane.f32.xlu0 %v2666
        %v2668 = vpop.xlane.xlu0 %2667
        %v2669 = vsel %vm2565, %v2636, 0.0
        %2670 = vadd.xlane.f32.xlu0 %v2669
        %v2671 = vpop.xlane.xlu0 %2670
        %v2672 = vsel %vm2565, %v2638, 0.0
        %2673 = vadd.xlane.f32.xlu0 %v2672
        %v2674 = vpop.xlane.xlu0 %2673
        %v2675 = vsel %vm2565, %v2640, 0.0
        %2676 = vadd.xlane.f32.xlu0 %v2675
        %v2677 = vpop.xlane.xlu0 %2676
        %v2678 = vsel %vm2565, %v2642, 0.0
        %2679 = vadd.xlane.f32.xlu0 %v2678
        %v2680 = vpop.xlane.xlu0 %2679
        %v2681 = vsel %vm2602, %v2644, 0.0
        %2682 = vadd.xlane.f32.xlu0 %v2681
        %v2683 = vpop.xlane.xlu0 %2682
        %v2684 = vrcp.pop %v2647
        %v2685 = vrcp.pop %v2650
        %v2686 = vrcp.pop %v2653
        %v2687 = vrcp.pop %v2656
        %v2688 = vrcp.pop %v2659
        %v2689 = vrcp.pop %v2662
        %v2690 = vrcp.pop %v2665
        %v2691 = vrcp.pop %v2668
        %v2692 = vrcp.pop %v2671
        %v2693 = vrcp.pop %v2674
        %v2694 = vrcp.pop %v2677
        %v2695 = vrcp.pop %v2680
        %v2696 = vrcp.pop %v2683
        %v2697 = vmul.f32 %v2620, %v2684
        %v2698 = vmul.f32 %v2622, %v2685
        %v2699 = vmul.f32 %v2624, %v2686
        %v2700 = vmul.f32 %v2626, %v2687
        %v2701 = vmul.f32 %v2628, %v2688
        %v2702 = vmul.f32 %v2630, %v2689
        %v2703 = vmul.f32 %v2632, %v2690
        %v2704 = vmul.f32 %v2634, %v2691
        %v2705 = vmul.f32 %v2636, %v2692
        %v2706 = vmul.f32 %v2638, %v2693
        %v2707 = vmul.f32 %v2640, %v2694
        %v2708 = vmul.f32 %v2642, %v2695
        %v2709 = vmul.f32 %v2644, %v2696
        %v2710 = vpack.c.bf16 %v2698, %v2697
        %v2711 = vpack.c.bf16 %v2700, %v2699
        %v2712 = vpack.c.bf16 %v2702, %v2701
        %v2713 = vpack.c.bf16 %v2704, %v2703
        %v2714 = vpack.c.bf16 %v2706, %v2705
        %v2715 = vpack.c.bf16 %v2708, %v2707
        %v2716 = vpack.c.bf16 %v2709, %v2709
        %v2718 = vsel %vm2565, %v2710, 0
        %v2721 = vsel %vm2565, %v2711, 0
        %v2724 = vsel %vm2565, %v2712, 0
        %v2727 = vsel %vm2565, %v2713, 0
        %v2730 = vsel %vm2565, %v2714, 0
        %v2733 = vsel %vm2565, %v2715, 0
        %v2736 = vsel %vm2565, %v2716, 0
        %vm2738 = vcmask 1040384
        %v2740 = vsel %vm2738, %v2415, 0
        %v2743 = vsel %vm2738, %v2416, 0
        %v2746 = vsel %vm2738, %v2417, 0
        %v2749 = vsel %vm2738, %v2418, 0
        %2751 = vmatpush.bf16.msra.mxu0 0
        %2752 = vmatpush.bf16.msra.mxu0 %v2740
        %2753 = vmatpush.bf16.msra.mxu0 %v2411
        %2754 = vmatpush.bf16.msra.mxu0 %v2407
        %2755 = vmatpush.bf16.msra.mxu0 %v2403
        %2756 = vmatpush.bf16.msra.mxu0 %v2399
        %2757 = vmatpush.bf16.msra.mxu0 %v2395
        %2758 = vmatpush.bf16.msra.mxu0 %v2391
        %2759 = vmatmul.bf16.gmra.mxu0 %v2718
        %v2760 = vpop.f32.mrf.mxu0
        %v2761 = vadd.f32 0.0, %v2760
        %v2762 = vpop.f32.mrf.mxu0
        %v2763 = vadd.f32 0.0, %v2762
        %2764 = vmatmul.bf16.gmra.mxu0 %v2721
        %v2765 = vpop.f32.mrf.mxu0
        %v2766 = vadd.f32 0.0, %v2765
        %v2767 = vpop.f32.mrf.mxu0
        %v2768 = vadd.f32 0.0, %v2767
        %2769 = vmatmul.bf16.gmra.mxu0 %v2724
        %v2770 = vpop.f32.mrf.mxu0
        %v2771 = vadd.f32 0.0, %v2770
        %v2772 = vpop.f32.mrf.mxu0
        %v2773 = vadd.f32 0.0, %v2772
        %2774 = vmatmul.bf16.gmra.mxu0 %v2727
        %v2775 = vpop.f32.mrf.mxu0
        %v2776 = vadd.f32 0.0, %v2775
        %v2777 = vpop.f32.mrf.mxu0
        %v2778 = vadd.f32 0.0, %v2777
        %2779 = vmatmul.bf16.gmra.mxu0 %v2730
        %v2780 = vpop.f32.mrf.mxu0
        %v2781 = vadd.f32 0.0, %v2780
        %v2782 = vpop.f32.mrf.mxu0
        %v2783 = vadd.f32 0.0, %v2782
        %2784 = vmatmul.bf16.gmra.mxu0 %v2733
        %v2785 = vpop.f32.mrf.mxu0
        %v2786 = vadd.f32 0.0, %v2785
        %v2787 = vpop.f32.mrf.mxu0
        %v2788 = vadd.f32 0.0, %v2787
        %2789 = vmatmul.bf16.gmra.mxu0 %v2736
        %v2790 = vpop.f32.mrf.mxu0
        %v2791 = vadd.f32 0.0, %v2790
        %v2792 = vpop.f32.mrf.mxu0
        %2793 = vdwg.mxu0
        %2794 = vmatpush.bf16.msra.mxu0 0
        %2795 = vmatpush.bf16.msra.mxu0 %v2743
        %2796 = vmatpush.bf16.msra.mxu0 %v2412
        %2797 = vmatpush.bf16.msra.mxu0 %v2408
        %2798 = vmatpush.bf16.msra.mxu0 %v2404
        %2799 = vmatpush.bf16.msra.mxu0 %v2400
        %2800 = vmatpush.bf16.msra.mxu0 %v2396
        %2801 = vmatpush.bf16.msra.mxu0 %v2392
        %2802 = vmatmul.bf16.gmra.mxu0 %v2718
        %v2803 = vpop.f32.mrf.mxu0
        %v2804 = vadd.f32 0.0, %v2803
        %v2805 = vpop.f32.mrf.mxu0
        %v2806 = vadd.f32 0.0, %v2805
        %2807 = vmatmul.bf16.gmra.mxu0 %v2721
        %v2808 = vpop.f32.mrf.mxu0
        %v2809 = vadd.f32 0.0, %v2808
        %v2810 = vpop.f32.mrf.mxu0
        %v2811 = vadd.f32 0.0, %v2810
        %2812 = vmatmul.bf16.gmra.mxu0 %v2724
        %v2813 = vpop.f32.mrf.mxu0
        %v2814 = vadd.f32 0.0, %v2813
        %v2815 = vpop.f32.mrf.mxu0
        %v2816 = vadd.f32 0.0, %v2815
        %2817 = vmatmul.bf16.gmra.mxu0 %v2727
        %v2818 = vpop.f32.mrf.mxu0
        %v2819 = vadd.f32 0.0, %v2818
        %v2820 = vpop.f32.mrf.mxu0
        %v2821 = vadd.f32 0.0, %v2820
        %2822 = vmatmul.bf16.gmra.mxu0 %v2730
        %v2823 = vpop.f32.mrf.mxu0
        %v2824 = vadd.f32 0.0, %v2823
        %v2825 = vpop.f32.mrf.mxu0
        %v2826 = vadd.f32 0.0, %v2825
        %2827 = vmatmul.bf16.gmra.mxu0 %v2733
        %v2828 = vpop.f32.mrf.mxu0
        %v2829 = vadd.f32 0.0, %v2828
        %v2830 = vpop.f32.mrf.mxu0
        %v2831 = vadd.f32 0.0, %v2830
        %2832 = vmatmul.bf16.gmra.mxu0 %v2736
        %v2833 = vpop.f32.mrf.mxu0
        %v2834 = vadd.f32 0.0, %v2833
        %v2835 = vpop.f32.mrf.mxu0
        %2836 = vdwg.mxu0
        %2837 = vmatpush.bf16.msra.mxu0 0
        %2838 = vmatpush.bf16.msra.mxu0 %v2746
        %2839 = vmatpush.bf16.msra.mxu0 %v2413
        %2840 = vmatpush.bf16.msra.mxu0 %v2409
        %2841 = vmatpush.bf16.msra.mxu0 %v2405
        %2842 = vmatpush.bf16.msra.mxu0 %v2401
        %2843 = vmatpush.bf16.msra.mxu0 %v2397
        %2844 = vmatpush.bf16.msra.mxu0 %v2393
        %2845 = vmatmul.bf16.gmra.mxu0 %v2718
        %v2846 = vpop.f32.mrf.mxu0
        %v2847 = vadd.f32 0.0, %v2846
        %v2848 = vpop.f32.mrf.mxu0
        %v2849 = vadd.f32 0.0, %v2848
        %2850 = vmatmul.bf16.gmra.mxu0 %v2721
        %v2851 = vpop.f32.mrf.mxu0
        %v2852 = vadd.f32 0.0, %v2851
        %v2853 = vpop.f32.mrf.mxu0
        %v2854 = vadd.f32 0.0, %v2853
        %2855 = vmatmul.bf16.gmra.mxu0 %v2724
        %v2856 = vpop.f32.mrf.mxu0
        %v2857 = vadd.f32 0.0, %v2856
        %v2858 = vpop.f32.mrf.mxu0
        %v2859 = vadd.f32 0.0, %v2858
        %2860 = vmatmul.bf16.gmra.mxu0 %v2727
        %v2861 = vpop.f32.mrf.mxu0
        %v2862 = vadd.f32 0.0, %v2861
        %v2863 = vpop.f32.mrf.mxu0
        %v2864 = vadd.f32 0.0, %v2863
        %2865 = vmatmul.bf16.gmra.mxu0 %v2730
        %v2866 = vpop.f32.mrf.mxu0
        %v2867 = vadd.f32 0.0, %v2866
        %v2868 = vpop.f32.mrf.mxu0
        %v2869 = vadd.f32 0.0, %v2868
        %2870 = vmatmul.bf16.gmra.mxu0 %v2733
        %v2871 = vpop.f32.mrf.mxu0
        %v2872 = vadd.f32 0.0, %v2871
        %v2873 = vpop.f32.mrf.mxu0
        %v2874 = vadd.f32 0.0, %v2873
        %2875 = vmatmul.bf16.gmra.mxu0 %v2736
        %v2876 = vpop.f32.mrf.mxu0
        %v2877 = vadd.f32 0.0, %v2876
        %v2878 = vpop.f32.mrf.mxu0
        %2879 = vdwg.mxu0
        %2880 = vmatpush.bf16.msra.mxu0 0
        %2881 = vmatpush.bf16.msra.mxu0 %v2749
        %2882 = vmatpush.bf16.msra.mxu0 %v2414
        %2883 = vmatpush.bf16.msra.mxu0 %v2410
        %2884 = vmatpush.bf16.msra.mxu0 %v2406
        %2885 = vmatpush.bf16.msra.mxu0 %v2402
        %2886 = vmatpush.bf16.msra.mxu0 %v2398
        %2887 = vmatpush.bf16.msra.mxu0 %v2394
        %2888 = vmatmul.bf16.gmra.mxu0 %v2718
        %v2889 = vpop.f32.mrf.mxu0
        %v2890 = vadd.f32 0.0, %v2889
        %v2891 = vpop.f32.mrf.mxu0
        %v2892 = vadd.f32 0.0, %v2891
        %2893 = vmatmul.bf16.gmra.mxu0 %v2721
        %v2894 = vpop.f32.mrf.mxu0
        %v2895 = vadd.f32 0.0, %v2894
        %v2896 = vpop.f32.mrf.mxu0
        %v2897 = vadd.f32 0.0, %v2896
        %2898 = vmatmul.bf16.gmra.mxu0 %v2724
        %v2899 = vpop.f32.mrf.mxu0
        %v2900 = vadd.f32 0.0, %v2899
        %v2901 = vpop.f32.mrf.mxu0
        %v2902 = vadd.f32 0.0, %v2901
        %2903 = vmatmul.bf16.gmra.mxu0 %v2727
        %v2904 = vpop.f32.mrf.mxu0
        %v2905 = vadd.f32 0.0, %v2904
        %v2906 = vpop.f32.mrf.mxu0
        %v2907 = vadd.f32 0.0, %v2906
        %2908 = vmatmul.bf16.gmra.mxu0 %v2730
        %v2909 = vpop.f32.mrf.mxu0
        %v2910 = vadd.f32 0.0, %v2909
        %v2911 = vpop.f32.mrf.mxu0
        %v2912 = vadd.f32 0.0, %v2911
        %2913 = vmatmul.bf16.gmra.mxu0 %v2733
        %v2914 = vpop.f32.mrf.mxu0
        %v2915 = vadd.f32 0.0, %v2914
        %v2916 = vpop.f32.mrf.mxu0
        %v2917 = vadd.f32 0.0, %v2916
        %2918 = vmatmul.bf16.gmra.mxu0 %v2736
        %v2919 = vpop.f32.mrf.mxu0
        %v2920 = vadd.f32 0.0, %v2919
        %v2921 = vpop.f32.mrf.mxu0
        %2922 = vdwg.mxu0
        %s2923 = sld [smem:[#allocation2]]
        %v2924 = vstv %s2923
        %v2925 = vmul.f32 %v2924, %v2761
        %v2926 = vmul.f32 %v2924, %v2804
        %v2927 = vmul.f32 %v2924, %v2847
        %v2928 = vmul.f32 %v2924, %v2890
        %v2929 = vmul.f32 %v2924, %v2763
        %v2930 = vmul.f32 %v2924, %v2806
        %v2931 = vmul.f32 %v2924, %v2849
        %v2932 = vmul.f32 %v2924, %v2892
        %v2933 = vmul.f32 %v2924, %v2766
        %v2934 = vmul.f32 %v2924, %v2809
        %v2935 = vmul.f32 %v2924, %v2852
        %v2936 = vmul.f32 %v2924, %v2895
        %v2937 = vmul.f32 %v2924, %v2768
        %v2938 = vmul.f32 %v2924, %v2811
        %v2939 = vmul.f32 %v2924, %v2854
        %v2940 = vmul.f32 %v2924, %v2897
        %v2941 = vmul.f32 %v2924, %v2771
        %v2942 = vmul.f32 %v2924, %v2814
        %v2943 = vmul.f32 %v2924, %v2857
        %v2944 = vmul.f32 %v2924, %v2900
        %v2945 = vmul.f32 %v2924, %v2773
        %v2946 = vmul.f32 %v2924, %v2816
        %v2947 = vmul.f32 %v2924, %v2859
        %v2948 = vmul.f32 %v2924, %v2902
        %v2949 = vmul.f32 %v2924, %v2776
        %v2950 = vmul.f32 %v2924, %v2819
        %v2951 = vmul.f32 %v2924, %v2862
        %v2952 = vmul.f32 %v2924, %v2905
        %v2953 = vmul.f32 %v2924, %v2778
        %v2954 = vmul.f32 %v2924, %v2821
        %v2955 = vmul.f32 %v2924, %v2864
        %v2956 = vmul.f32 %v2924, %v2907
        %v2957 = vmul.f32 %v2924, %v2781
        %v2958 = vmul.f32 %v2924, %v2824
        %v2959 = vmul.f32 %v2924, %v2867
        %v2960 = vmul.f32 %v2924, %v2910
        %v2961 = vmul.f32 %v2924, %v2783
        %v2962 = vmul.f32 %v2924, %v2826
        %v2963 = vmul.f32 %v2924, %v2869
        %v2964 = vmul.f32 %v2924, %v2912
        %v2965 = vmul.f32 %v2924, %v2786
        %v2966 = vmul.f32 %v2924, %v2829
        %v2967 = vmul.f32 %v2924, %v2872
        %v2968 = vmul.f32 %v2924, %v2915
        %v2969 = vmul.f32 %v2924, %v2788
        %v2970 = vmul.f32 %v2924, %v2831
        %v2971 = vmul.f32 %v2924, %v2874
        %v2972 = vmul.f32 %v2924, %v2917
        %v2973 = vmul.f32 %v2924, %v2791
        %v2974 = vmul.f32 %v2924, %v2834
        %v2975 = vmul.f32 %v2924, %v2877
        %v2976 = vmul.f32 %v2924, %v2920
        %v2977 = vadd.f32 %v2925, %v400
        %v2978 = vadd.f32 %v2926, %v401
        %v2979 = vadd.f32 %v2927, %v402
        %v2980 = vadd.f32 %v2928, %v403
        %v2981 = vadd.f32 %v2929, %v404
        %v2982 = vadd.f32 %v2930, %v405
        %v2983 = vadd.f32 %v2931, %v406
        %v2984 = vadd.f32 %v2932, %v407
        %v2985 = vadd.f32 %v2933, %v408
        %v2986 = vadd.f32 %v2934, %v409
        %v2987 = vadd.f32 %v2935, %v410
        %v2988 = vadd.f32 %v2936, %v411
        %v2989 = vadd.f32 %v2937, %v412
        %v2990 = vadd.f32 %v2938, %v413
        %v2991 = vadd.f32 %v2939, %v414
        %v2992 = vadd.f32 %v2940, %v415
        %v2993 = vadd.f32 %v2941, %v416
        %v2994 = vadd.f32 %v2942, %v417
        %v2995 = vadd.f32 %v2943, %v418
        %v2996 = vadd.f32 %v2944, %v419
        %v2997 = vadd.f32 %v2945, %v420
        %v2998 = vadd.f32 %v2946, %v421
        %v2999 = vadd.f32 %v2947, %v422
        %v3000 = vadd.f32 %v2948, %v423
        %v3001 = vadd.f32 %v2949, %v424
        %v3002 = vadd.f32 %v2950, %v425
        %v3003 = vadd.f32 %v2951, %v426
        %v3004 = vadd.f32 %v2952, %v427
        %v3005 = vadd.f32 %v2953, %v428
        %v3006 = vadd.f32 %v2954, %v429
        %v3007 = vadd.f32 %v2955, %v430
        %v3008 = vadd.f32 %v2956, %v431
        %v3009 = vadd.f32 %v2957, %v432
        %v3010 = vadd.f32 %v2958, %v433
        %v3011 = vadd.f32 %v2959, %v434
        %v3012 = vadd.f32 %v2960, %v435
        %v3013 = vadd.f32 %v2961, %v436
        %v3014 = vadd.f32 %v2962, %v437
        %v3015 = vadd.f32 %v2963, %v438
        %v3016 = vadd.f32 %v2964, %v439
        %v3017 = vadd.f32 %v2965, %v440
        %v3018 = vadd.f32 %v2966, %v441
        %v3019 = vadd.f32 %v2967, %v442
        %v3020 = vadd.f32 %v2968, %v443
        %v3021 = vadd.f32 %v2969, %v444
        %v3022 = vadd.f32 %v2970, %v445
        %v3023 = vadd.f32 %v2971, %v446
        %v3024 = vadd.f32 %v2972, %v447
        %v3025 = vadd.f32 %v2973, %v448
        %v3026 = vadd.f32 %v2974, %v449
        %v3027 = vadd.f32 %v2975, %v450
        %v3028 = vadd.f32 %v2976, %v451
        %v3029 = vld [vmem:[%s6] sm:$0x3]
        %v3031 = vsel %vm2565, %v3029, 0
        %vm3033 = vcmask 1041408
        %v3035 = vsel %vm3033, %v3025, 0
        %v3038 = vsel %vm3033, %v3026, 0
        %v3041 = vsel %vm3033, %v3027, 0
        %v3044 = vsel %vm3033, %v3028, 0
        %3046 = vmatpush.msra.mxu0 0.0
        %3047 = vmatpush.msra.mxu0 0.0
        %3048 = vmatpush.msra.mxu0 0.0
        %3049 = vmatpush.msra.mxu0 %v3035
        %3050 = vmatpush.msra.mxu0 %v3021
        %3051 = vmatpush.msra.mxu0 %v3017
        %3052 = vmatpush.msra.mxu0 %v3013
        %3053 = vmatpush.msra.mxu0 %v3009
        %3054 = vmatpush.msra.mxu0 %v3005
        %3055 = vmatpush.msra.mxu0 %v3001
        %3056 = vmatpush.msra.mxu0 %v2997
        %3057 = vmatpush.msra.mxu0 %v2993
        %3058 = vmatpush.msra.mxu0 %v2989
        %3059 = vmatpush.msra.mxu0 %v2985
        %3060 = vmatpush.msra.mxu0 %v2981
        %3061 = vmatpush.msra.mxu0 %v2977
        %3062 = vmatmul.f32.gmra.mxu0 %v3031
        %v3063 = vpop.f32.mrf.mxu0
        %v3064 = vadd.f32 0.0, %v3063
        %3065 = vdwg.mxu0
        %3066 = vmatpush.msra.mxu0 0.0
        %3067 = vmatpush.msra.mxu0 0.0
        %3068 = vmatpush.msra.mxu0 0.0
        %3069 = vmatpush.msra.mxu0 %v3038
        %3070 = vmatpush.msra.mxu0 %v3022
        %3071 = vmatpush.msra.mxu0 %v3018
        %3072 = vmatpush.msra.mxu0 %v3014
        %3073 = vmatpush.msra.mxu0 %v3010
        %3074 = vmatpush.msra.mxu0 %v3006
        %3075 = vmatpush.msra.mxu0 %v3002
        %3076 = vmatpush.msra.mxu0 %v2998
        %3077 = vmatpush.msra.mxu0 %v2994
        %3078 = vmatpush.msra.mxu0 %v2990
        %3079 = vmatpush.msra.mxu0 %v2986
        %3080 = vmatpush.msra.mxu0 %v2982
        %3081 = vmatpush.msra.mxu0 %v2978
        %3082 = vmatmul.f32.gmra.mxu0 %v3031
        %v3083 = vpop.f32.mrf.mxu0
        %v3084 = vadd.f32 0.0, %v3083
        %3085 = vdwg.mxu0
        %3086 = vmatpush.msra.mxu0 0.0
        %3087 = vmatpush.msra.mxu0 0.0
        %3088 = vmatpush.msra.mxu0 0.0
        %3089 = vmatpush.msra.mxu0 %v3041
        %3090 = vmatpush.msra.mxu0 %v3023
        %3091 = vmatpush.msra.mxu0 %v3019
        %3092 = vmatpush.msra.mxu0 %v3015
        %3093 = vmatpush.msra.mxu0 %v3011
        %3094 = vmatpush.msra.mxu0 %v3007
        %3095 = vmatpush.msra.mxu0 %v3003
        %3096 = vmatpush.msra.mxu0 %v2999
        %3097 = vmatpush.msra.mxu0 %v2995
        %3098 = vmatpush.msra.mxu0 %v2991
        %3099 = vmatpush.msra.mxu0 %v2987
        %3100 = vmatpush.msra.mxu0 %v2983
        %3101 = vmatpush.msra.mxu0 %v2979
        %3102 = vmatmul.f32.gmra.mxu0 %v3031
        %v3103 = vpop.f32.mrf.mxu0
        %v3104 = vadd.f32 0.0, %v3103
        %3105 = vdwg.mxu0
        %3106 = vmatpush.msra.mxu0 0.0
        %3107 = vmatpush.msra.mxu0 0.0
        %3108 = vmatpush.msra.mxu0 0.0
        %3109 = vmatpush.msra.mxu0 %v3044
        %3110 = vmatpush.msra.mxu0 %v3024
        %3111 = vmatpush.msra.mxu0 %v3020
        %3112 = vmatpush.msra.mxu0 %v3016
        %3113 = vmatpush.msra.mxu0 %v3012
        %3114 = vmatpush.msra.mxu0 %v3008
        %3115 = vmatpush.msra.mxu0 %v3004
        %3116 = vmatpush.msra.mxu0 %v3000
        %3117 = vmatpush.msra.mxu0 %v2996
        %3118 = vmatpush.msra.mxu0 %v2992
        %3119 = vmatpush.msra.mxu0 %v2988
        %3120 = vmatpush.msra.mxu0 %v2984
        %3121 = vmatpush.msra.mxu0 %v2980
        %3122 = vmatmul.f32.gmra.mxu0 %v3031
        %v3123 = vpop.f32.mrf.mxu0
        %v3124 = vadd.f32 0.0, %v3123
        %3125 = vdwg.mxu0
        %v3130 = vrot.slane %v3084, 6
        %v3131 = vrot.slane %v3104, 4
        %v3132 = vrot.slane %v3124, 2
        %v3133 = vsel %vm3033, %v3064, %v3130
        %vm3134 = vcmask 1045508
        %v3135 = vsel %vm3134, %v3131, %v3132
        %vm3136 = vcmask 1043456
        %v3137 = vsel %vm3136, %v3133, %v3135
        %3139 = vst [vmem:[%s398] sm:$0xff] %v3137
        %v3140 = vpack.c.bf16 %v3064, %v3064
        %v3141 = vpack.c.bf16 %v3084, %v3084
        %v3142 = vpack.c.bf16 %v3104, %v3104
        %v3143 = vpack.c.bf16 %v3124, %v3124
        %v3144 = vld [vmem:[%s8] sm:$0xf]
        %v3145 = vld [vmem:[%s8 + $0x4] sm:$0xf]
        %v3146 = vld [vmem:[%s8 + $0x8] sm:$0xf]
        %v3147 = vld [vmem:[%s8 + $0xc] sm:$0xf]
        %v3148 = vld [vmem:[%s8 + $0x10] sm:$0xf]
        %v3149 = vld [vmem:[%s8 + $0x14] sm:$0xf]
        %v3150 = vld [vmem:[%s8 + $0x18] sm:$0xf]
        %v3151 = vld [vmem:[%s8 + $0x1c] sm:$0xf]
        %v3152 = vld [vmem:[%s8 + $0x20] sm:$0xf]
        %v3153 = vld [vmem:[%s8 + $0x24] sm:$0xf]
        %v3154 = vld [vmem:[%s8 + $0x28] sm:$0xf]
        %v3155 = vld [vmem:[%s8 + $0x2c] sm:$0xf]
        %v3156 = vld [vmem:[%s8 + $0x30] sm:$0xf]
        %v3157 = vld [vmem:[%s8 + $0x34] sm:$0xf]
        %v3158 = vld [vmem:[%s8 + $0x38] sm:$0xf]
        %v3159 = vld [vmem:[%s8 + $0x3c] sm:$0xf]
        %v3160 = vld [vmem:[%s8 + $0x40] sm:$0xf]
        %v3161 = vld [vmem:[%s8 + $0x44] sm:$0xf]
        %v3162 = vld [vmem:[%s8 + $0x48] sm:$0xf]
        %v3163 = vld [vmem:[%s8 + $0x4c] sm:$0xf]
        %v3164 = vld [vmem:[%s8 + $0x50] sm:$0xf]
        %v3165 = vld [vmem:[%s8 + $0x54] sm:$0xf]
        %v3166 = vld [vmem:[%s8 + $0x58] sm:$0xf]
        %v3167 = vld [vmem:[%s8 + $0x5c] sm:$0xf]
        %v3168 = vld [vmem:[%s8 + $0x60] sm:$0xf]
        %v3169 = vld [vmem:[%s8 + $0x64] sm:$0xf]
        %v3170 = vld [vmem:[%s8 + $0x68] sm:$0xf]
        %v3171 = vld [vmem:[%s8 + $0x6c] sm:$0xf]
        %v3172 = vld [vmem:[%s8 + $0x70] sm:$0xf]
        %v3173 = vld [vmem:[%s8 + $0x74] sm:$0xf]
        %v3174 = vld [vmem:[%s8 + $0x78] sm:$0xf]
        %v3175 = vld [vmem:[%s8 + $0x7c] sm:$0xf]
        %v3176 = vld [vmem:[%s8 + $0x80] sm:$0xf]
        %v3177 = vld [vmem:[%s8 + $0x84] sm:$0xf]
        %v3178 = vld [vmem:[%s8 + $0x88] sm:$0xf]
        %v3179 = vld [vmem:[%s8 + $0x8c] sm:$0xf]
        %v3180 = vld [vmem:[%s8 + $0x90] sm:$0xf]
        %v3181 = vld [vmem:[%s8 + $0x94] sm:$0xf]
        %v3182 = vld [vmem:[%s8 + $0x98] sm:$0xf]
        %v3183 = vld [vmem:[%s8 + $0x9c] sm:$0xf]
        %v3184 = vld [vmem:[%s8 + $0xa0] sm:$0xf]
        %v3185 = vld [vmem:[%s8 + $0xa4] sm:$0xf]
        %v3186 = vld [vmem:[%s8 + $0xa8] sm:$0xf]
        %v3187 = vld [vmem:[%s8 + $0xac] sm:$0xf]
        %v3188 = vld [vmem:[%s8 + $0xb0] sm:$0xf]
        %v3189 = vld [vmem:[%s8 + $0xb4] sm:$0xf]
        %v3190 = vld [vmem:[%s8 + $0xb8] sm:$0xf]
        %v3191 = vld [vmem:[%s8 + $0xbc] sm:$0xf]
        %v3192 = vld [vmem:[%s8 + $0xc0] sm:$0xf]
        %v3193 = vld [vmem:[%s8 + $0xc4] sm:$0xf]
        %v3194 = vld [vmem:[%s8 + $0xc8] sm:$0xf]
        %v3195 = vld [vmem:[%s8 + $0xcc] sm:$0xf]
        %v3196 = vld [vmem:[%s8 + $0xd0] sm:$0xf]
        %v3197 = vld [vmem:[%s8 + $0xd4] sm:$0xf]
        %v3198 = vld [vmem:[%s8 + $0xd8] sm:$0xf]
        %v3199 = vld [vmem:[%s8 + $0xdc] sm:$0xf]
        %v3200 = vld [vmem:[%s8 + $0xe0] sm:$0xf]
        %v3201 = vld [vmem:[%s8 + $0xe4] sm:$0xf]
        %v3202 = vld [vmem:[%s8 + $0xe8] sm:$0xf]
        %v3203 = vld [vmem:[%s8 + $0xec] sm:$0xf]
        %v3204 = vld [vmem:[%s8 + $0xf0] sm:$0xf]
        %v3205 = vld [vmem:[%s8 + $0xf4] sm:$0xf]
        %v3206 = vld [vmem:[%s8 + $0xf8] sm:$0xf]
        %v3207 = vld [vmem:[%s8 + $0xfc] sm:$0xf]
        %v3208 = vld [vmem:[%s9] sm:$0x1]
        %v3210 = vperm.slane %v3208, 0
        %v3276 = vunpack.c.l.b16 %v3144
        %v3277 = vunpack.c.l.b16 %v3145
        %v3278 = vunpack.c.l.b16 %v3146
        %v3279 = vunpack.c.l.b16 %v3147
        %v3280 = vunpack.c.l.b16 %v3148
        %v3281 = vunpack.c.l.b16 %v3149
        %v3282 = vunpack.c.l.b16 %v3150
        %v3283 = vunpack.c.l.b16 %v3151
        %v3284 = vunpack.c.l.b16 %v3152
        %v3285 = vunpack.c.l.b16 %v3153
        %v3286 = vunpack.c.l.b16 %v3154
        %v3287 = vunpack.c.l.b16 %v3155
        %v3288 = vunpack.c.l.b16 %v3156
        %v3289 = vunpack.c.l.b16 %v3157
        %v3290 = vunpack.c.l.b16 %v3158
        %v3291 = vunpack.c.l.b16 %v3159
        %v3292 = vunpack.c.l.b16 %v3160
        %v3293 = vunpack.c.l.b16 %v3161
        %v3294 = vunpack.c.l.b16 %v3162
        %v3295 = vunpack.c.l.b16 %v3163
        %v3296 = vunpack.c.l.b16 %v3164
        %v3297 = vunpack.c.l.b16 %v3165
        %v3298 = vunpack.c.l.b16 %v3166
        %v3299 = vunpack.c.l.b16 %v3167
        %v3300 = vunpack.c.l.b16 %v3168
        %v3301 = vunpack.c.l.b16 %v3169
        %v3302 = vunpack.c.l.b16 %v3170
        %v3303 = vunpack.c.l.b16 %v3171
        %v3304 = vunpack.c.l.b16 %v3172
        %v3305 = vunpack.c.l.b16 %v3173
        %v3306 = vunpack.c.l.b16 %v3174
        %v3307 = vunpack.c.l.b16 %v3175
        %v3308 = vunpack.c.l.b16 %v3176
        %v3309 = vunpack.c.l.b16 %v3177
        %v3310 = vunpack.c.l.b16 %v3178
        %v3311 = vunpack.c.l.b16 %v3179
        %v3312 = vunpack.c.l.b16 %v3180
        %v3313 = vunpack.c.l.b16 %v3181
        %v3314 = vunpack.c.l.b16 %v3182
        %v3315 = vunpack.c.l.b16 %v3183
        %v3316 = vunpack.c.l.b16 %v3184
        %v3317 = vunpack.c.l.b16 %v3185
        %v3318 = vunpack.c.l.b16 %v3186
        %v3319 = vunpack.c.l.b16 %v3187
        %v3320 = vunpack.c.l.b16 %v3188
        %v3321 = vunpack.c.l.b16 %v3189
        %v3322 = vunpack.c.l.b16 %v3190
        %v3323 = vunpack.c.l.b16 %v3191
        %v3324 = vunpack.c.l.b16 %v3192
        %v3325 = vunpack.c.l.b16 %v3193
        %v3326 = vunpack.c.l.b16 %v3194
        %v3327 = vunpack.c.l.b16 %v3195
        %v3328 = vunpack.c.l.b16 %v3196
        %v3329 = vunpack.c.l.b16 %v3197
        %v3330 = vunpack.c.l.b16 %v3198
        %v3331 = vunpack.c.l.b16 %v3199
        %v3332 = vunpack.c.l.b16 %v3200
        %v3333 = vunpack.c.l.b16 %v3201
        %v3334 = vunpack.c.l.b16 %v3202
        %v3335 = vunpack.c.l.b16 %v3203
        %v3336 = vunpack.c.l.b16 %v3204
        %v3337 = vunpack.c.l.b16 %v3205
        %v3338 = vunpack.c.l.b16 %v3206
        %v3339 = vunpack.c.l.b16 %v3207
        %v3340 = vpack.c.b16 %v3277, %v3276
        %v3341 = vpack.c.b16 %v3279, %v3278
        %v3342 = vpack.c.b16 %v3281, %v3280
        %v3343 = vpack.c.b16 %v3283, %v3282
        %v3344 = vpack.c.b16 %v3285, %v3284
        %v3345 = vpack.c.b16 %v3287, %v3286
        %v3346 = vpack.c.b16 %v3289, %v3288
        %v3347 = vpack.c.b16 %v3291, %v3290
        %v3348 = vpack.c.b16 %v3293, %v3292
        %v3349 = vpack.c.b16 %v3295, %v3294
        %v3350 = vpack.c.b16 %v3297, %v3296
        %v3351 = vpack.c.b16 %v3299, %v3298
        %v3352 = vpack.c.b16 %v3301, %v3300
        %v3353 = vpack.c.b16 %v3303, %v3302
        %v3354 = vpack.c.b16 %v3305, %v3304
        %v3355 = vpack.c.b16 %v3307, %v3306
        %v3356 = vpack.c.b16 %v3309, %v3308
        %v3357 = vpack.c.b16 %v3311, %v3310
        %v3358 = vpack.c.b16 %v3313, %v3312
        %v3359 = vpack.c.b16 %v3315, %v3314
        %v3360 = vpack.c.b16 %v3317, %v3316
        %v3361 = vpack.c.b16 %v3319, %v3318
        %v3362 = vpack.c.b16 %v3321, %v3320
        %v3363 = vpack.c.b16 %v3323, %v3322
        %v3364 = vpack.c.b16 %v3325, %v3324
        %v3365 = vpack.c.b16 %v3327, %v3326
        %v3366 = vpack.c.b16 %v3329, %v3328
        %v3367 = vpack.c.b16 %v3331, %v3330
        %v3368 = vpack.c.b16 %v3333, %v3332
        %v3369 = vpack.c.b16 %v3335, %v3334
        %v3370 = vpack.c.b16 %v3337, %v3336
        %v3371 = vpack.c.b16 %v3339, %v3338
        %3404 = vmatpush.bf16.msra.mxu0 %v3347
        %3405 = vmatpush.bf16.msra.mxu0 %v3346
        %3406 = vmatpush.bf16.msra.mxu0 %v3345
        %3407 = vmatpush.bf16.msra.mxu0 %v3344
        %3408 = vmatpush.bf16.msra.mxu0 %v3343
        %3409 = vmatpush.bf16.msra.mxu0 %v3342
        %3410 = vmatpush.bf16.msra.mxu0 %v3341
        %3411 = vmatpush.bf16.msra.mxu0 %v3340
        %3412 = vmatmul.bf16.gmra.mxu0 %v3140
        %v3413 = vpop.f32.mrf.mxu0
        %v3414 = vadd.f32 %v3210, %v3413
        %v3415 = vpop.f32.mrf.mxu0
        %3416 = vdwg.mxu0
        %3417 = vmatpush.bf16.msra.mxu0 %v3355
        %3418 = vmatpush.bf16.msra.mxu0 %v3354
        %3419 = vmatpush.bf16.msra.mxu0 %v3353
        %3420 = vmatpush.bf16.msra.mxu0 %v3352
        %3421 = vmatpush.bf16.msra.mxu0 %v3351
        %3422 = vmatpush.bf16.msra.mxu0 %v3350
        %3423 = vmatpush.bf16.msra.mxu0 %v3349
        %3424 = vmatpush.bf16.msra.mxu0 %v3348
        %3425 = vmatmul.bf16.gmra.mxu0 %v3141
        %v3426 = vpop.f32.mrf.mxu0
        %v3427 = vadd.f32 %v3414, %v3426
        %v3428 = vpop.f32.mrf.mxu0
        %3429 = vdwg.mxu0
        %3430 = vmatpush.bf16.msra.mxu0 %v3363
        %3431 = vmatpush.bf16.msra.mxu0 %v3362
        %3432 = vmatpush.bf16.msra.mxu0 %v3361
        %3433 = vmatpush.bf16.msra.mxu0 %v3360
        %3434 = vmatpush.bf16.msra.mxu0 %v3359
        %3435 = vmatpush.bf16.msra.mxu0 %v3358
        %3436 = vmatpush.bf16.msra.mxu0 %v3357
        %3437 = vmatpush.bf16.msra.mxu0 %v3356
        %3438 = vmatmul.bf16.gmra.mxu0 %v3142
        %v3439 = vpop.f32.mrf.mxu0
        %v3440 = vadd.f32 %v3427, %v3439
        %v3441 = vpop.f32.mrf.mxu0
        %3442 = vdwg.mxu0
        %3443 = vmatpush.bf16.msra.mxu0 %v3371
        %3444 = vmatpush.bf16.msra.mxu0 %v3370
        %3445 = vmatpush.bf16.msra.mxu0 %v3369
        %3446 = vmatpush.bf16.msra.mxu0 %v3368
        %3447 = vmatpush.bf16.msra.mxu0 %v3367
        %3448 = vmatpush.bf16.msra.mxu0 %v3366
        %3449 = vmatpush.bf16.msra.mxu0 %v3365
        %3450 = vmatpush.bf16.msra.mxu0 %v3364
        %3451 = vmatmul.bf16.gmra.mxu0 %v3143
        %v3452 = vpop.f32.mrf.mxu0
        %v3453 = vadd.f32 %v3440, %v3452
        %v3454 = vpop.f32.mrf.mxu0
        %3455 = vdwg.mxu0
        %3456 = vst [vmem:[%s381] sm:$0x3] %v3453
        %s3457 = sand.u32 %s250, 1
        %s3458 = scalar_lea.sflag [#allocation4], %s3457
        %s3459 = sand.u32 %s250, 1
        %s3460 = smul.addr %s3459, 2
        %s3461 = scalar_lea.vmem [#allocation3], %s3460
        %p3462 = scmp.lt.s32.totalorder %s27, 1
        %s3463 = scalar_select %p3462, %s27, 1
        %s3464 = smul.addr %s3463, 4
        %s3465 = smul.addr %s3464, 2
        %s3466 = scalar_lea.vmem %s11, %s3465
        // Predicated region
        $region61: #{forward.1} parent=59 // pred_check
          %p3467 = pneg %p260
        $region62: #{forward.1} parent=59 // pred_check_branch
          %3469 = sbr.rel (%p3467) target = $region64
        $region63: #{forward.1} parent=59 // pred_region
          %3471 = vsyncadd %s3458, 0
          %s3472 = smul.addr %s27, 2
          %s3473 = scalar_lea.hbm %s10, %s3472
          %s3475 = sshll.u32 %s3461, 4
          %s3476 = int_to_ptr.vmem [resolvable:$true] %s3475
          %s3477 = sshll.u32 %s3473, 4
          %s3478 = int_to_ptr.hbm [resolvable:$true] %s3477
          %3480 = dma.vmem_to_hbm [thread:$0]  %s3476, 32, %s3478, %s3458
        $region64: #{forward.1} parent=59 // pred_fallthru
          _
        // Predicated region
        $region65: #{forward.1} parent=59 // pred_check
          %p3481 = pneg %p286
        $region66: #{forward.1} parent=59 // pred_check_branch
          %3483 = sbr.rel (%p3481) target = $region68
        $region67: #{forward.1} parent=59 // pred_region
          _
        $region68: #{forward.1} parent=59 // pred_fallthru
          _
      $region60: #{forward.1} parent=5 // pred_fallthru
        _
      %p3484 = scmp.le.s32.totalorder 2, %s22
      // Predicated region
      $region69: #{forward.1} parent=5 // pred_check
        %p3485 = pneg %p3484
      $region70: #{forward.1} parent=5 // pred_check_branch
        %3487 = sbr.rel (%p3485) target = $region72
      $region71: #{forward.1} parent=5 // pred_region
        %s3488 = ssub.s32 %s22, 2
        // Predicated region
        $region73: #{forward.1} parent=71 // pred_check
          %p3489 = pneg %p266
        $region74: #{forward.1} parent=71 // pred_check_branch
          %3491 = sbr.rel (%p3489) target = $region76
        $region75: #{forward.1} parent=71 // pred_region
          %s3492 = sand.u32 %s251, 1
          %s3493 = scalar_lea.sflag [#allocation4], %s3492
          %s3494 = sand.u32 %s251, 1
          %s3495 = smul.addr %s3494, 2
          %s3496 = scalar_lea.vmem [#allocation3], %s3495
          %3498 = dma.done %s3493, 32
        $region76: #{forward.1} parent=71 // pred_fallthru
          _
        // Predicated region
        $region77: #{forward.1} parent=71 // pred_check
          %p3499 = pneg %p292
        $region78: #{forward.1} parent=71 // pred_check_branch
          %3501 = sbr.rel (%p3499) target = $region80
        $region79: #{forward.1} parent=71 // pred_region
          %p3502 = scmp.lt.s32.totalorder %s28, 1
          %s3503 = scalar_select %p3502, %s28, 1
          %s3504 = smul.addr %s3503, 4
          %s3505 = smul.addr %s3504, 2
          %s3506 = scalar_lea.vmem %s11, %s3505
        $region80: #{forward.1} parent=71 // pred_fallthru
          _
      $region72: #{forward.1} parent=5 // pred_fallthru
        _
    $region6: #{forward.1} parent=1 // loop_footer
      %s26 = sadd.s32 1, %s22
    $region7: #{forward.1} parent=1 // loop_footer_branch
      %21 = sbr.rel target = $region3
    $region8: #{forward.1} parent=1 // loop_exit
      _
    %3507 = vsyncpa [#allocation4], 1
    %s3508 = scalar_lea.sflag [#allocation4], 1
    %3509 = vsyncpa %s3508, 1

</llo_original>
